<compile_context>
chip_gen: v7x
topology: tpu7x:2x2x1
jax: 0.10.0
libtpu: 0.0.40
codegen_flags: <defaults>
</compile_context>

<pallas_src>
import functools

import jax
import jax.numpy as jnp
from jax import lax
from jax.experimental import pallas as pl
from jax.experimental.pallas import tpu as pltpu


# ---------------------------------------------------------------------------
# Fused kernel: 3x (dwconv3x3 + BN) -> QKV proj -> MHA -> out proj (+cls reorder)
# ---------------------------------------------------------------------------
def _fused_attention_kernel(xsp_ref, cls_ref, wconv_ref, bns_ref, bnb_ref,
                            wqkv_ref, wp_ref, bp_ref, o_ref, xpad_ref,
                            *, num_heads, scale, h, w, pack, n_pk):
    # xsp_ref : (n_pk, H, W, Cpk)   spatial tokens, `pack` images packed on lanes
    # cls_ref : (n_pk, 1, Cpk)      packed cls tokens
    # wconv_ref: (3, 9, Cpk)        depthwise taps per branch (tiled over pack)
    # bns_ref/bnb_ref: (3, Cpk)     folded BN scale / bias per branch (tiled)
    # wqkv_ref: (3, Cpk, Copk)      block-diagonal q/k/v projection weights
    # wp_ref  : (Copk, Copk)        block-diagonal output projection weight
    # bp_ref  : (1, Copk)           output projection bias (tiled)
    # o_ref   : (n_pk, T, Copk)     packed output (cls first, like the module)
    # xpad_ref: VMEM (n_pk, H+2, W+2, Cpk) halo scratch
    H, W = h, w
    HW = H * W
    T = HW + 1
    Cpk = xsp_ref.shape[-1]
    Copk = wp_ref.shape[-1]
    Cout = Copk // pack
    d = Cout // num_heads
    f32, bf16 = jnp.float32, jnp.bfloat16

    # ---- halo padding in VMEM: zero ONLY the 4 border strips, interior once ----
    xpad_ref[:, 0:1, :, :] = jnp.zeros((n_pk, 1, W + 2, Cpk), f32)
    xpad_ref[:, H + 1:H + 2, :, :] = jnp.zeros((n_pk, 1, W + 2, Cpk), f32)
    xpad_ref[:, 1:H + 1, 0:1, :] = jnp.zeros((n_pk, H, 1, Cpk), f32)
    xpad_ref[:, 1:H + 1, W + 1:W + 2, :] = jnp.zeros((n_pk, H, 1, Cpk), f32)
    xpad_ref[:, 1:H + 1, 1:W + 1, :] = xsp_ref[...].astype(f32)
    xpad = xpad_ref[...]                                   # (n_pk, H+2, W+2, Cpk)

    # ---- 3 depthwise 3x3 convs: shifted halo views built ONCE, shared by q/k/v ----
    wconv = wconv_ref[...].astype(f32)                     # (3, 9, Cpk)
    accs = [jnp.zeros((n_pk, H, W, Cpk), f32) for _ in range(3)]
    for kx in range(3):                                    # sublane shift: built once per kx
        xkx = xpad[:, :, kx:kx + W, :]                     # (n_pk, H+2, W, Cpk)
        for ky in range(3):                                # cheap row-offset views
            xk = xkx[:, ky:ky + H, :, :]                   # (n_pk, H, W, Cpk)
            tap = ky * 3 + kx
            for br in range(3):
                wtap = wconv[br, tap, :].reshape(1, 1, 1, Cpk)
                accs[br] = accs[br] + xk * wtap

    # ---- folded BN + token assembly (cls token appended LAST -> aligned rows) ----
    bns = bns_ref[...].astype(f32)                         # (3, Cpk)
    bnb = bnb_ref[...].astype(f32)
    cls_pk = cls_ref[...].reshape(n_pk, Cpk).astype(f32)   # (n_pk, Cpk)
    toks = []
    for br in range(3):
        sc = bns[br, :].reshape(1, 1, 1, Cpk)
        bi = bnb[br, :].reshape(1, 1, 1, Cpk)
        y = accs[br] * sc + bi                             # (n_pk, H, W, Cpk)
        sp = y.reshape(n_pk * HW, Cpk)                     # spatial tokens, slice-major
        toks.append(jnp.concatenate([sp, cls_pk], axis=0)) # (n_pk*HW + n_pk, Cpk)

    # ---- QKV projections: block-diag packed weights, bf16 on MXU, f32 accum ----
    def proj(tok, br):
        return jnp.dot(tok.astype(bf16), wqkv_ref[br].astype(bf16),
                       preferred_element_type=f32)

    qb = (proj(toks[0], 0) * scale).astype(bf16)           # cast once, reuse per head
    kb = proj(toks[1], 1).astype(bf16)
    vb = proj(toks[2], 2).astype(bf16)

    # ---- multi-head attention + output projection, per packed image-slice ----
    wp = wp_ref[...].astype(bf16)                          # (Copk, Copk)
    bpv = bp_ref[...].astype(f32)                          # (1, Copk)
    n_sp = n_pk * HW
    for p in range(n_pk):
        r0 = p * HW                                        # aligned spatial rows
        cr = n_sp + p                                      # this slice's cls row
        ctx_cols = []
        for par in range(pack):                            # image within the lane pack
            for hh in range(num_heads):
                c0 = par * Cout + hh * d
                qh = jnp.concatenate([qb[r0:r0 + HW, c0:c0 + d],
                                      qb[cr:cr + 1, c0:c0 + d]], axis=0)  # (T, d)
                kh = jnp.concatenate([kb[r0:r0 + HW, c0:c0 + d],
                                      kb[cr:cr + 1, c0:c0 + d]], axis=0)
                vh = jnp.concatenate([vb[r0:r0 + HW, c0:c0 + d],
                                      vb[cr:cr + 1, c0:c0 + d]], axis=0)
                # q @ k^T without materializing a transpose
                s = lax.dot_general(qh, kh, (((1,), (1,)), ((), ())),
                                    preferred_element_type=f32)           # (T, T)
                m = jnp.max(s, axis=-1, keepdims=True)
                e = jnp.exp(s - m)                                        # unnormalized
                denom = jnp.sum(e, axis=-1, keepdims=True)
                ctx_h = jnp.dot(e.astype(bf16), vh,
                                preferred_element_type=f32)               # (T, d)
                # normalize the small (T,d) context; reciprocal runs on the EUP
                ctx_cols.append(ctx_h * pl.reciprocal(denom, approx=True))
        # register-level lane concat (no masked VMEM slab writes)
        ctx = jnp.concatenate(ctx_cols, axis=-1)           # (T, Copk)
        out = jnp.dot(ctx.astype(bf16), wp, preferred_element_type=f32) + bpv
        out = out.astype(o_ref.dtype)                      # rows: [spatial(HW), cls]
        # module token order is [cls, spatial]; reorder only at the final store
        o_ref[p, 0:1, :] = out[HW:HW + 1, :]
        o_ref[p, 1:T, :] = out[0:HW, :]


# ---------------------------------------------------------------------------
# Wrapper: packs images on the lane axis, builds block-diag weights, calls kernel
# ---------------------------------------------------------------------------
def _block_diag(wm, pack):
    if pack == 1:
        return wm
    ci, co = wm.shape
    out = jnp.zeros((pack * ci, pack * co), wm.dtype)
    for p in range(pack):
        out = out.at[p * ci:(p + 1) * ci, p * co:(p + 1) * co].set(wm)
    return out


def attention_forward(params, x, h, w, num_heads, dim_out):
    B, T, Cin = x.shape
    Cout = dim_out
    HW = h * w
    assert T == 1 + HW

    # Pack pairs of images along the channel/lane axis when that fills a 128-lane vreg.
    pack = 2 if (B % 2 == 0 and Cin <= 64 and Cout <= 64) else 1
    n_total = B // pack                      # packed image-slices
    n_pk = 1                                 # packed slices per grid step (batch blocking)
    for cand in (4, 2):
        if n_total % cand == 0:
            n_pk = cand
            break
    grid = (n_total // n_pk,)
    Cpk, Copk = pack * Cin, pack * Cout

    cls = x[:, 0, :]                                            # (B, Cin)
    xs = x[:, 1:, :].reshape(B, h, w, Cin)                      # NHWC, free rearrange
    x_pk = xs.reshape(n_total, pack, h, w, Cin).transpose(0, 2, 3, 1, 4) \
             .reshape(n_total, h, w, Cpk)
    cls_pk = cls.reshape(n_total, 1, Cpk)

    # Per-branch conv/BN params, tiled over the lane pack; QKV / proj weights block-diag.
    wconv = jnp.stack([jnp.tile(params[f"conv_{n}_w"].reshape(9, Cin), (1, pack))
                       for n in ("q", "k", "v")], axis=0)       # (3, 9, Cpk)
    bns = jnp.stack([jnp.tile(params[f"bn_{n}_scale"], pack) for n in ("q", "k", "v")])
    bnb = jnp.stack([jnp.tile(params[f"bn_{n}_bias"], pack) for n in ("q", "k", "v")])
    wqkv = jnp.stack([_block_diag(params[n], pack) for n in ("wq", "wk", "wv")])
    wp = _block_diag(params["wp"], pack)                        # (Copk, Copk)
    bp = jnp.tile(params["bp"], pack).reshape(1, Copk)

    scale = float(dim_out) ** (-0.5)
    kernel = functools.partial(_fused_attention_kernel, num_heads=num_heads,
                               scale=scale, h=h, w=w, pack=pack, n_pk=n_pk)

    out_pk = pl.pallas_call(
        kernel,
        out_shape=jax.ShapeDtypeStruct((n_total, T, Copk), x.dtype),
        grid=grid,
        in_specs=[
            pl.BlockSpec((n_pk, h, w, Cpk), lambda g: (g, 0, 0, 0)),
            pl.BlockSpec((n_pk, 1, Cpk), lambda g: (g, 0, 0)),
            pl.BlockSpec((3, 9, Cpk), lambda g: (0, 0, 0)),
            pl.BlockSpec((3, Cpk), lambda g: (0, 0)),
            pl.BlockSpec((3, Cpk), lambda g: (0, 0)),
            pl.BlockSpec((3, Cpk, Copk), lambda g: (0, 0, 0)),
            pl.BlockSpec((Copk, Copk), lambda g: (0, 0)),
            pl.BlockSpec((1, Copk), lambda g: (0, 0)),
        ],
        out_specs=pl.BlockSpec((n_pk, T, Copk), lambda g: (g, 0, 0)),
        scratch_shapes=[
            pltpu.VMEM((n_pk, h + 2, w + 2, Cpk), jnp.float32),  # halo-padded conv input
        ],
        compiler_params=pltpu.CompilerParams(
            dimension_semantics=("parallel",),
        ),
    )(x_pk, cls_pk, wconv, bns, bnb, wqkv, wp, bp)

    # Unpack lane-packed output back to (B, T, Cout).
    out = out_pk.reshape(n_total, T, pack, Cout).transpose(0, 2, 1, 3).reshape(B, T, Cout)
    return out


# ---------------------------------------------------------------------------
# Pure-JAX reference (for correctness check)
# ---------------------------------------------------------------------------
def ref_forward(params, x, h, w, num_heads, dim_out):
    B, T, Cin = x.shape
    cls_tok, x_sp = x[:, :1, :], x[:, 1:, :]
    x_nchw = x_sp.reshape(B, h, w, Cin).transpose(0, 3, 1, 2)

    def branch(name):
        w_oihw = params[f"conv_{name}_w"].transpose(2, 0, 1)[:, None, :, :]  # (C,1,3,3)
        y = lax.conv_general_dilated(x_nchw, w_oihw, (1, 1), ((1, 1), (1, 1)),
                                     dimension_numbers=("NCHW", "OIHW", "NCHW"),
                                     feature_group_count=Cin)
        y = y * params[f"bn_{name}_scale"][None, :, None, None] \
            + params[f"bn_{name}_bias"][None, :, None, None]
        y = y.transpose(0, 2, 3, 1).reshape(B, h * w, Cin)
        return jnp.concatenate([cls_tok, y], axis=1)

    qt, kt, vt = branch("q"), branch("k"), branch("v")
    q, k, v = qt @ params["wq"], kt @ params["wk"], vt @ params["wv"]
    d = dim_out // num_heads
    q = q.reshape(B, -1, num_heads, d).transpose(0, 2, 1, 3)
    k = k.reshape(B, -1, num_heads, d).transpose(0, 2, 1, 3)
    v = v.reshape(B, -1, num_heads, d).transpose(0, 2, 1, 3)
    s = jnp.einsum("bhld,bhtd->bhlt", q, k) * (float(dim_out) ** -0.5)
    p = jax.nn.softmax(s, axis=-1)
    o = jnp.einsum("bhlt,bhtd->bhld", p, v)
    o = o.transpose(0, 2, 1, 3).reshape(B, -1, dim_out)
    return o @ params["wp"] + params["bp"]


# ---------------------------------------------------------------------------
if __name__ == "__main__":
    B, Cin, Cout, num_heads, h, w = 2, 64, 64, 2, 8, 8
    T = 1 + h * w                                 # cls token + h*w patches
    eps = 1e-5

    key = jax.random.PRNGKey(0)
    keys = jax.random.split(key, 24)
    ki = iter(keys)

    params = {}
    for name in ("q", "k", "v"):
        # Conv2d(Cin, Cin, 3, groups=Cin, bias=False) -> depthwise weight stored (3,3,C)
        params[f"conv_{name}_w"] = 0.2 * jax.random.normal(next(ki), (3, 3, Cin), jnp.float32)
        gamma = 1.0 + 0.1 * jax.random.normal(next(ki), (Cin,), jnp.float32)
        beta = 0.1 * jax.random.normal(next(ki), (Cin,), jnp.float32)
        run_mean = 0.1 * jax.random.normal(next(ki), (Cin,), jnp.float32)
        run_var = 1.0 + 0.05 * jnp.abs(jax.random.normal(next(ki), (Cin,), jnp.float32))
        s = gamma / jnp.sqrt(run_var + eps)       # BN (eval mode) folded to scale/bias
        params[f"bn_{name}_scale"] = s
        params[f"bn_{name}_bias"] = beta - run_mean * s

    # nn.Linear(Cin, Cout, bias=False) for q/k/v; weights stored pre-transposed (Cin, Cout)
    params["wq"] = 0.05 * jax.random.normal(next(ki), (Cin, Cout), jnp.float32)
    params["wk"] = 0.05 * jax.random.normal(next(ki), (Cin, Cout), jnp.float32)
    params["wv"] = 0.05 * jax.random.normal(next(ki), (Cin, Cout), jnp.float32)
    # nn.Linear(Cout, Cout) with bias
    params["wp"] = 0.05 * jax.random.normal(next(ki), (Cout, Cout), jnp.float32)
    params["bp"] = 0.05 * jax.random.normal(next(ki), (Cout,), jnp.float32)

    x = jax.random.normal(next(ki), (B, T, Cin), jnp.float32)

    out = attention_forward(params, x, h, w, num_heads, Cout)
    out = jax.block_until_ready(out)

    ref = ref_forward(params, x, h, w, num_heads, Cout)
    assert out.shape == (B, T, Cout), out.shape
    max_err = float(jnp.max(jnp.abs(out - ref)))
    assert max_err < 5e-2, f"mismatch vs reference: max_err={max_err}"

    print("KERNEL_OK")
</pallas_src>

<mosaic_0001>
module attributes {stable_mosaic.version = 11 : i64} {
  func.func @_fused_attention_kernel(%arg0: i32, %arg1: memref<1x8x8x128xf32, #tpu.memory_space<vmem>>, %arg2: memref<1x1x128xf32, #tpu.memory_space<vmem>>, %arg3: memref<3x9x128xf32, #tpu.memory_space<vmem>>, %arg4: memref<3x128xf32, #tpu.memory_space<vmem>>, %arg5: memref<3x128xf32, #tpu.memory_space<vmem>>, %arg6: memref<3x128x128xf32, #tpu.memory_space<vmem>>, %arg7: memref<128x128xf32, #tpu.memory_space<vmem>>, %arg8: memref<1x128xf32, #tpu.memory_space<vmem>>, %arg9: memref<1x65x128xf32, #tpu.memory_space<vmem>>, %arg10: memref<1x10x10x128xf32, #tpu.memory_space<vmem>>) attributes {dimension_semantics = [#tpu.dimension_semantics<parallel>], iteration_bounds = array<i64: 1>, scalar_prefetch = 0 : i64, scratch_operands = 1 : i64, tpu.core_type = #tpu.core_type<tc>, window_params = [{transform_indices = @transform_0, window_bounds = array<i64: 1, 8, 8, 128>}, {transform_indices = @transform_1, window_bounds = array<i64: 1, 1, 128>}, {pipeline_mode = #tpu.pipeline_mode<synchronous>, transform_indices = @transform_2, window_bounds = array<i64: 3, 9, 128>}, {pipeline_mode = #tpu.pipeline_mode<synchronous>, transform_indices = @transform_3, window_bounds = array<i64: 3, 128>}, {pipeline_mode = #tpu.pipeline_mode<synchronous>, transform_indices = @transform_4, window_bounds = array<i64: 3, 128>}, {pipeline_mode = #tpu.pipeline_mode<synchronous>, transform_indices = @transform_5, window_bounds = array<i64: 3, 128, 128>}, {pipeline_mode = #tpu.pipeline_mode<synchronous>, transform_indices = @transform_6, window_bounds = array<i64: 128, 128>}, {pipeline_mode = #tpu.pipeline_mode<synchronous>, transform_indices = @transform_7, window_bounds = array<i64: 1, 128>}, {transform_indices = @transform_8, window_bounds = array<i64: 1, 65, 128>}]} {
    %cst = arith.constant 0.000000e+00 : f32
    %0 = vector.broadcast %cst : f32 to vector<1x1x10x128xf32>
    %c0 = arith.constant 0 : index
    %c0_0 = arith.constant 0 : index
    %c0_1 = arith.constant 0 : index
    %c0_2 = arith.constant 0 : index
    %1 = vector.load %arg10[%c0, %c0_0, %c0_1, %c0_2] : memref<1x10x10x128xf32, #tpu.memory_space<vmem>>, vector<1x1x10x128xf32>
    tpu.vector_store %arg10[%c0, %c0_0, %c0_1, %c0_2], %0 {strides = array<i32>} : memref<1x10x10x128xf32, #tpu.memory_space<vmem>>, vector<1x1x10x128xf32>,
    %cst_3 = arith.constant 0.000000e+00 : f32
    %2 = vector.broadcast %cst_3 : f32 to vector<1x1x10x128xf32>
    %c0_4 = arith.constant 0 : index
    %c9 = arith.constant 9 : index
    %c0_5 = arith.constant 0 : index
    %c0_6 = arith.constant 0 : index
    %3 = vector.load %arg10[%c0_4, %c9, %c0_5, %c0_6] : memref<1x10x10x128xf32, #tpu.memory_space<vmem>>, vector<1x1x10x128xf32>
    tpu.vector_store %arg10[%c0_4, %c9, %c0_5, %c0_6], %2 {strides = array<i32>} : memref<1x10x10x128xf32, #tpu.memory_space<vmem>>, vector<1x1x10x128xf32>,
    %cst_7 = arith.constant 0.000000e+00 : f32
    %4 = vector.broadcast %cst_7 : f32 to vector<1x8x1x128xf32>
    %c0_8 = arith.constant 0 : index
    %c1 = arith.constant 1 : index
    %c0_9 = arith.constant 0 : index
    %c0_10 = arith.constant 0 : index
    %5 = vector.load %arg10[%c0_8, %c1, %c0_9, %c0_10] : memref<1x10x10x128xf32, #tpu.memory_space<vmem>>, vector<1x8x1x128xf32>
    tpu.vector_store %arg10[%c0_8, %c1, %c0_9, %c0_10], %4 {strides = array<i32>} : memref<1x10x10x128xf32, #tpu.memory_space<vmem>>, vector<1x8x1x128xf32>,
    %cst_11 = arith.constant 0.000000e+00 : f32
    %6 = vector.broadcast %cst_11 : f32 to vector<1x8x1x128xf32>
    %c0_12 = arith.constant 0 : index
    %c1_13 = arith.constant 1 : index
    %c9_14 = arith.constant 9 : index
    %c0_15 = arith.constant 0 : index
    %7 = vector.load %arg10[%c0_12, %c1_13, %c9_14, %c0_15] : memref<1x10x10x128xf32, #tpu.memory_space<vmem>>, vector<1x8x1x128xf32>
    tpu.vector_store %arg10[%c0_12, %c1_13, %c9_14, %c0_15], %6 {strides = array<i32>} : memref<1x10x10x128xf32, #tpu.memory_space<vmem>>, vector<1x8x1x128xf32>,
    %c0_16 = arith.constant 0 : index
    %c0_17 = arith.constant 0 : index
    %c0_18 = arith.constant 0 : index
    %c0_19 = arith.constant 0 : index
    %8 = vector.load %arg1[%c0_16, %c0_17, %c0_18, %c0_19] : memref<1x8x8x128xf32, #tpu.memory_space<vmem>>, vector<1x8x8x128xf32>
    %c0_20 = arith.constant 0 : index
    %c1_21 = arith.constant 1 : index
    %c1_22 = arith.constant 1 : index
    %c0_23 = arith.constant 0 : index
    %9 = vector.load %arg10[%c0_20, %c1_21, %c1_22, %c0_23] : memref<1x10x10x128xf32, #tpu.memory_space<vmem>>, vector<1x8x8x128xf32>
    tpu.vector_store %arg10[%c0_20, %c1_21, %c1_22, %c0_23], %8 {strides = array<i32>} : memref<1x10x10x128xf32, #tpu.memory_space<vmem>>, vector<1x8x8x128xf32>,
    %c0_24 = arith.constant 0 : index
    %c0_25 = arith.constant 0 : index
    %c0_26 = arith.constant 0 : index
    %c0_27 = arith.constant 0 : index
    %10 = vector.load %arg10[%c0_24, %c0_25, %c0_26, %c0_27] : memref<1x10x10x128xf32, #tpu.memory_space<vmem>>, vector<1x10x10x128xf32>
    %c0_28 = arith.constant 0 : index
    %c0_29 = arith.constant 0 : index
    %c0_30 = arith.constant 0 : index
    %11 = vector.load %arg3[%c0_28, %c0_29, %c0_30] : memref<3x9x128xf32, #tpu.memory_space<vmem>>, vector<3x9x128xf32>
    %cst_31 = arith.constant 0.000000e+00 : f32
    %12 = vector.broadcast %cst_31 : f32 to vector<1x8x8x128xf32>
    %cst_32 = arith.constant 0.000000e+00 : f32
    %13 = vector.broadcast %cst_32 : f32 to vector<1x8x8x128xf32>
    %cst_33 = arith.constant 0.000000e+00 : f32
    %14 = vector.broadcast %cst_33 : f32 to vector<1x8x8x128xf32>
    %15 = vector.extract_strided_slice %10 {offsets = [0, 0, 0, 0], sizes = [1, 10, 8, 128], strides = [1, 1, 1, 1]} : vector<1x10x10x128xf32> to vector<1x10x8x128xf32>
    %16 = vector.extract_strided_slice %15 {offsets = [0, 0, 0, 0], sizes = [1, 8, 8, 128], strides = [1, 1, 1, 1]} : vector<1x10x8x128xf32> to vector<1x8x8x128xf32>
    %17 = vector.extract_strided_slice %11 {offsets = [0, 0, 0], sizes = [1, 1, 128], strides = [1, 1, 1]} : vector<3x9x128xf32> to vector<1x1x128xf32>
    %18 = vector.shape_cast %17 : vector<1x1x128xf32> to vector<128xf32>
    %19 = vector.shape_cast %18 : vector<128xf32> to vector<1x1x1x128xf32>
    %20 = vector.broadcast %19 : vector<1x1x1x128xf32> to vector<1x8x8x128xf32>
    %21 = arith.mulf %16, %20 : vector<1x8x8x128xf32>
    %22 = arith.addf %12, %21 : vector<1x8x8x128xf32>
    %23 = vector.extract_strided_slice %11 {offsets = [1, 0, 0], sizes = [1, 1, 128], strides = [1, 1, 1]} : vector<3x9x128xf32> to vector<1x1x128xf32>
    %24 = vector.shape_cast %23 : vector<1x1x128xf32> to vector<128xf32>
    %25 = vector.shape_cast %24 : vector<128xf32> to vector<1x1x1x128xf32>
    %26 = vector.broadcast %25 : vector<1x1x1x128xf32> to vector<1x8x8x128xf32>
    %27 = arith.mulf %16, %26 : vector<1x8x8x128xf32>
    %28 = arith.addf %13, %27 : vector<1x8x8x128xf32>
    %29 = vector.extract_strided_slice %11 {offsets = [2, 0, 0], sizes = [1, 1, 128], strides = [1, 1, 1]} : vector<3x9x128xf32> to vector<1x1x128xf32>
    %30 = vector.shape_cast %29 : vector<1x1x128xf32> to vector<128xf32>
    %31 = vector.shape_cast %30 : vector<128xf32> to vector<1x1x1x128xf32>
    %32 = vector.broadcast %31 : vector<1x1x1x128xf32> to vector<1x8x8x128xf32>
    %33 = arith.mulf %16, %32 : vector<1x8x8x128xf32>
    %34 = arith.addf %14, %33 : vector<1x8x8x128xf32>
    %35 = vector.extract_strided_slice %15 {offsets = [0, 1, 0, 0], sizes = [1, 8, 8, 128], strides = [1, 1, 1, 1]} : vector<1x10x8x128xf32> to vector<1x8x8x128xf32>
    %36 = vector.extract_strided_slice %11 {offsets = [0, 3, 0], sizes = [1, 1, 128], strides = [1, 1, 1]} : vector<3x9x128xf32> to vector<1x1x128xf32>
    %37 = vector.shape_cast %36 : vector<1x1x128xf32> to vector<128xf32>
    %38 = vector.shape_cast %37 : vector<128xf32> to vector<1x1x1x128xf32>
    %39 = vector.broadcast %38 : vector<1x1x1x128xf32> to vector<1x8x8x128xf32>
    %40 = arith.mulf %35, %39 : vector<1x8x8x128xf32>
    %41 = arith.addf %22, %40 : vector<1x8x8x128xf32>
    %42 = vector.extract_strided_slice %11 {offsets = [1, 3, 0], sizes = [1, 1, 128], strides = [1, 1, 1]} : vector<3x9x128xf32> to vector<1x1x128xf32>
    %43 = vector.shape_cast %42 : vector<1x1x128xf32> to vector<128xf32>
    %44 = vector.shape_cast %43 : vector<128xf32> to vector<1x1x1x128xf32>
    %45 = vector.broadcast %44 : vector<1x1x1x128xf32> to vector<1x8x8x128xf32>
    %46 = arith.mulf %35, %45 : vector<1x8x8x128xf32>
    %47 = arith.addf %28, %46 : vector<1x8x8x128xf32>
    %48 = vector.extract_strided_slice %11 {offsets = [2, 3, 0], sizes = [1, 1, 128], strides = [1, 1, 1]} : vector<3x9x128xf32> to vector<1x1x128xf32>
    %49 = vector.shape_cast %48 : vector<1x1x128xf32> to vector<128xf32>
    %50 = vector.shape_cast %49 : vector<128xf32> to vector<1x1x1x128xf32>
    %51 = vector.broadcast %50 : vector<1x1x1x128xf32> to vector<1x8x8x128xf32>
    %52 = arith.mulf %35, %51 : vector<1x8x8x128xf32>
    %53 = arith.addf %34, %52 : vector<1x8x8x128xf32>
    %54 = vector.extract_strided_slice %15 {offsets = [0, 2, 0, 0], sizes = [1, 8, 8, 128], strides = [1, 1, 1, 1]} : vector<1x10x8x128xf32> to vector<1x8x8x128xf32>
    %55 = vector.extract_strided_slice %11 {offsets = [0, 6, 0], sizes = [1, 1, 128], strides = [1, 1, 1]} : vector<3x9x128xf32> to vector<1x1x128xf32>
    %56 = vector.shape_cast %55 : vector<1x1x128xf32> to vector<128xf32>
    %57 = vector.shape_cast %56 : vector<128xf32> to vector<1x1x1x128xf32>
    %58 = vector.broadcast %57 : vector<1x1x1x128xf32> to vector<1x8x8x128xf32>
    %59 = arith.mulf %54, %58 : vector<1x8x8x128xf32>
    %60 = arith.addf %41, %59 : vector<1x8x8x128xf32>
    %61 = vector.extract_strided_slice %11 {offsets = [1, 6, 0], sizes = [1, 1, 128], strides = [1, 1, 1]} : vector<3x9x128xf32> to vector<1x1x128xf32>
    %62 = vector.shape_cast %61 : vector<1x1x128xf32> to vector<128xf32>
    %63 = vector.shape_cast %62 : vector<128xf32> to vector<1x1x1x128xf32>
    %64 = vector.broadcast %63 : vector<1x1x1x128xf32> to vector<1x8x8x128xf32>
    %65 = arith.mulf %54, %64 : vector<1x8x8x128xf32>
    %66 = arith.addf %47, %65 : vector<1x8x8x128xf32>
    %67 = vector.extract_strided_slice %11 {offsets = [2, 6, 0], sizes = [1, 1, 128], strides = [1, 1, 1]} : vector<3x9x128xf32> to vector<1x1x128xf32>
    %68 = vector.shape_cast %67 : vector<1x1x128xf32> to vector<128xf32>
    %69 = vector.shape_cast %68 : vector<128xf32> to vector<1x1x1x128xf32>
    %70 = vector.broadcast %69 : vector<1x1x1x128xf32> to vector<1x8x8x128xf32>
    %71 = arith.mulf %54, %70 : vector<1x8x8x128xf32>
    %72 = arith.addf %53, %71 : vector<1x8x8x128xf32>
    %73 = vector.extract_strided_slice %10 {offsets = [0, 0, 1, 0], sizes = [1, 10, 8, 128], strides = [1, 1, 1, 1]} : vector<1x10x10x128xf32> to vector<1x10x8x128xf32>
    %74 = vector.extract_strided_slice %73 {offsets = [0, 0, 0, 0], sizes = [1, 8, 8, 128], strides = [1, 1, 1, 1]} : vector<1x10x8x128xf32> to vector<1x8x8x128xf32>
    %75 = vector.extract_strided_slice %11 {offsets = [0, 1, 0], sizes = [1, 1, 128], strides = [1, 1, 1]} : vector<3x9x128xf32> to vector<1x1x128xf32>
    %76 = vector.shape_cast %75 : vector<1x1x128xf32> to vector<128xf32>
    %77 = vector.shape_cast %76 : vector<128xf32> to vector<1x1x1x128xf32>
    %78 = vector.broadcast %77 : vector<1x1x1x128xf32> to vector<1x8x8x128xf32>
    %79 = arith.mulf %74, %78 : vector<1x8x8x128xf32>
    %80 = arith.addf %60, %79 : vector<1x8x8x128xf32>
    %81 = vector.extract_strided_slice %11 {offsets = [1, 1, 0], sizes = [1, 1, 128], strides = [1, 1, 1]} : vector<3x9x128xf32> to vector<1x1x128xf32>
    %82 = vector.shape_cast %81 : vector<1x1x128xf32> to vector<128xf32>
    %83 = vector.shape_cast %82 : vector<128xf32> to vector<1x1x1x128xf32>
    %84 = vector.broadcast %83 : vector<1x1x1x128xf32> to vector<1x8x8x128xf32>
    %85 = arith.mulf %74, %84 : vector<1x8x8x128xf32>
    %86 = arith.addf %66, %85 : vector<1x8x8x128xf32>
    %87 = vector.extract_strided_slice %11 {offsets = [2, 1, 0], sizes = [1, 1, 128], strides = [1, 1, 1]} : vector<3x9x128xf32> to vector<1x1x128xf32>
    %88 = vector.shape_cast %87 : vector<1x1x128xf32> to vector<128xf32>
    %89 = vector.shape_cast %88 : vector<128xf32> to vector<1x1x1x128xf32>
    %90 = vector.broadcast %89 : vector<1x1x1x128xf32> to vector<1x8x8x128xf32>
    %91 = arith.mulf %74, %90 : vector<1x8x8x128xf32>
    %92 = arith.addf %72, %91 : vector<1x8x8x128xf32>
    %93 = vector.extract_strided_slice %73 {offsets = [0, 1, 0, 0], sizes = [1, 8, 8, 128], strides = [1, 1, 1, 1]} : vector<1x10x8x128xf32> to vector<1x8x8x128xf32>
    %94 = vector.extract_strided_slice %11 {offsets = [0, 4, 0], sizes = [1, 1, 128], strides = [1, 1, 1]} : vector<3x9x128xf32> to vector<1x1x128xf32>
    %95 = vector.shape_cast %94 : vector<1x1x128xf32> to vector<128xf32>
    %96 = vector.shape_cast %95 : vector<128xf32> to vector<1x1x1x128xf32>
    %97 = vector.broadcast %96 : vector<1x1x1x128xf32> to vector<1x8x8x128xf32>
    %98 = arith.mulf %93, %97 : vector<1x8x8x128xf32>
    %99 = arith.addf %80, %98 : vector<1x8x8x128xf32>
    %100 = vector.extract_strided_slice %11 {offsets = [1, 4, 0], sizes = [1, 1, 128], strides = [1, 1, 1]} : vector<3x9x128xf32> to vector<1x1x128xf32>
    %101 = vector.shape_cast %100 : vector<1x1x128xf32> to vector<128xf32>
    %102 = vector.shape_cast %101 : vector<128xf32> to vector<1x1x1x128xf32>
    %103 = vector.broadcast %102 : vector<1x1x1x128xf32> to vector<1x8x8x128xf32>
    %104 = arith.mulf %93, %103 : vector<1x8x8x128xf32>
    %105 = arith.addf %86, %104 : vector<1x8x8x128xf32>
    %106 = vector.extract_strided_slice %11 {offsets = [2, 4, 0], sizes = [1, 1, 128], strides = [1, 1, 1]} : vector<3x9x128xf32> to vector<1x1x128xf32>
    %107 = vector.shape_cast %106 : vector<1x1x128xf32> to vector<128xf32>
    %108 = vector.shape_cast %107 : vector<128xf32> to vector<1x1x1x128xf32>
    %109 = vector.broadcast %108 : vector<1x1x1x128xf32> to vector<1x8x8x128xf32>
    %110 = arith.mulf %93, %109 : vector<1x8x8x128xf32>
    %111 = arith.addf %92, %110 : vector<1x8x8x128xf32>
    %112 = vector.extract_strided_slice %73 {offsets = [0, 2, 0, 0], sizes = [1, 8, 8, 128], strides = [1, 1, 1, 1]} : vector<1x10x8x128xf32> to vector<1x8x8x128xf32>
    %113 = vector.extract_strided_slice %11 {offsets = [0, 7, 0], sizes = [1, 1, 128], strides = [1, 1, 1]} : vector<3x9x128xf32> to vector<1x1x128xf32>
    %114 = vector.shape_cast %113 : vector<1x1x128xf32> to vector<128xf32>
    %115 = vector.shape_cast %114 : vector<128xf32> to vector<1x1x1x128xf32>
    %116 = vector.broadcast %115 : vector<1x1x1x128xf32> to vector<1x8x8x128xf32>
    %117 = arith.mulf %112, %116 : vector<1x8x8x128xf32>
    %118 = arith.addf %99, %117 : vector<1x8x8x128xf32>
    %119 = vector.extract_strided_slice %11 {offsets = [1, 7, 0], sizes = [1, 1, 128], strides = [1, 1, 1]} : vector<3x9x128xf32> to vector<1x1x128xf32>
    %120 = vector.shape_cast %119 : vector<1x1x128xf32> to vector<128xf32>
    %121 = vector.shape_cast %120 : vector<128xf32> to vector<1x1x1x128xf32>
    %122 = vector.broadcast %121 : vector<1x1x1x128xf32> to vector<1x8x8x128xf32>
    %123 = arith.mulf %112, %122 : vector<1x8x8x128xf32>
    %124 = arith.addf %105, %123 : vector<1x8x8x128xf32>
    %125 = vector.extract_strided_slice %11 {offsets = [2, 7, 0], sizes = [1, 1, 128], strides = [1, 1, 1]} : vector<3x9x128xf32> to vector<1x1x128xf32>
    %126 = vector.shape_cast %125 : vector<1x1x128xf32> to vector<128xf32>
    %127 = vector.shape_cast %126 : vector<128xf32> to vector<1x1x1x128xf32>
    %128 = vector.broadcast %127 : vector<1x1x1x128xf32> to vector<1x8x8x128xf32>
    %129 = arith.mulf %112, %128 : vector<1x8x8x128xf32>
    %130 = arith.addf %111, %129 : vector<1x8x8x128xf32>
    %131 = vector.extract_strided_slice %10 {offsets = [0, 0, 2, 0], sizes = [1, 10, 8, 128], strides = [1, 1, 1, 1]} : vector<1x10x10x128xf32> to vector<1x10x8x128xf32>
    %132 = vector.extract_strided_slice %131 {offsets = [0, 0, 0, 0], sizes = [1, 8, 8, 128], strides = [1, 1, 1, 1]} : vector<1x10x8x128xf32> to vector<1x8x8x128xf32>
    %133 = vector.extract_strided_slice %11 {offsets = [0, 2, 0], sizes = [1, 1, 128], strides = [1, 1, 1]} : vector<3x9x128xf32> to vector<1x1x128xf32>
    %134 = vector.shape_cast %133 : vector<1x1x128xf32> to vector<128xf32>
    %135 = vector.shape_cast %134 : vector<128xf32> to vector<1x1x1x128xf32>
    %136 = vector.broadcast %135 : vector<1x1x1x128xf32> to vector<1x8x8x128xf32>
    %137 = arith.mulf %132, %136 : vector<1x8x8x128xf32>
    %138 = arith.addf %118, %137 : vector<1x8x8x128xf32>
    %139 = vector.extract_strided_slice %11 {offsets = [1, 2, 0], sizes = [1, 1, 128], strides = [1, 1, 1]} : vector<3x9x128xf32> to vector<1x1x128xf32>
    %140 = vector.shape_cast %139 : vector<1x1x128xf32> to vector<128xf32>
    %141 = vector.shape_cast %140 : vector<128xf32> to vector<1x1x1x128xf32>
    %142 = vector.broadcast %141 : vector<1x1x1x128xf32> to vector<1x8x8x128xf32>
    %143 = arith.mulf %132, %142 : vector<1x8x8x128xf32>
    %144 = arith.addf %124, %143 : vector<1x8x8x128xf32>
    %145 = vector.extract_strided_slice %11 {offsets = [2, 2, 0], sizes = [1, 1, 128], strides = [1, 1, 1]} : vector<3x9x128xf32> to vector<1x1x128xf32>
    %146 = vector.shape_cast %145 : vector<1x1x128xf32> to vector<128xf32>
    %147 = vector.shape_cast %146 : vector<128xf32> to vector<1x1x1x128xf32>
    %148 = vector.broadcast %147 : vector<1x1x1x128xf32> to vector<1x8x8x128xf32>
    %149 = arith.mulf %132, %148 : vector<1x8x8x128xf32>
    %150 = arith.addf %130, %149 : vector<1x8x8x128xf32>
    %151 = vector.extract_strided_slice %131 {offsets = [0, 1, 0, 0], sizes = [1, 8, 8, 128], strides = [1, 1, 1, 1]} : vector<1x10x8x128xf32> to vector<1x8x8x128xf32>
    %152 = vector.extract_strided_slice %11 {offsets = [0, 5, 0], sizes = [1, 1, 128], strides = [1, 1, 1]} : vector<3x9x128xf32> to vector<1x1x128xf32>
    %153 = vector.shape_cast %152 : vector<1x1x128xf32> to vector<128xf32>
    %154 = vector.shape_cast %153 : vector<128xf32> to vector<1x1x1x128xf32>
    %155 = vector.broadcast %154 : vector<1x1x1x128xf32> to vector<1x8x8x128xf32>
    %156 = arith.mulf %151, %155 : vector<1x8x8x128xf32>
    %157 = arith.addf %138, %156 : vector<1x8x8x128xf32>
    %158 = vector.extract_strided_slice %11 {offsets = [1, 5, 0], sizes = [1, 1, 128], strides = [1, 1, 1]} : vector<3x9x128xf32> to vector<1x1x128xf32>
    %159 = vector.shape_cast %158 : vector<1x1x128xf32> to vector<128xf32>
    %160 = vector.shape_cast %159 : vector<128xf32> to vector<1x1x1x128xf32>
    %161 = vector.broadcast %160 : vector<1x1x1x128xf32> to vector<1x8x8x128xf32>
    %162 = arith.mulf %151, %161 : vector<1x8x8x128xf32>
    %163 = arith.addf %144, %162 : vector<1x8x8x128xf32>
    %164 = vector.extract_strided_slice %11 {offsets = [2, 5, 0], sizes = [1, 1, 128], strides = [1, 1, 1]} : vector<3x9x128xf32> to vector<1x1x128xf32>
    %165 = vector.shape_cast %164 : vector<1x1x128xf32> to vector<128xf32>
    %166 = vector.shape_cast %165 : vector<128xf32> to vector<1x1x1x128xf32>
    %167 = vector.broadcast %166 : vector<1x1x1x128xf32> to vector<1x8x8x128xf32>
    %168 = arith.mulf %151, %167 : vector<1x8x8x128xf32>
    %169 = arith.addf %150, %168 : vector<1x8x8x128xf32>
    %170 = vector.extract_strided_slice %131 {offsets = [0, 2, 0, 0], sizes = [1, 8, 8, 128], strides = [1, 1, 1, 1]} : vector<1x10x8x128xf32> to vector<1x8x8x128xf32>
    %171 = vector.extract_strided_slice %11 {offsets = [0, 8, 0], sizes = [1, 1, 128], strides = [1, 1, 1]} : vector<3x9x128xf32> to vector<1x1x128xf32>
    %172 = vector.shape_cast %171 : vector<1x1x128xf32> to vector<128xf32>
    %173 = vector.shape_cast %172 : vector<128xf32> to vector<1x1x1x128xf32>
    %174 = vector.broadcast %173 : vector<1x1x1x128xf32> to vector<1x8x8x128xf32>
    %175 = arith.mulf %170, %174 : vector<1x8x8x128xf32>
    %176 = arith.addf %157, %175 : vector<1x8x8x128xf32>
    %177 = vector.extract_strided_slice %11 {offsets = [1, 8, 0], sizes = [1, 1, 128], strides = [1, 1, 1]} : vector<3x9x128xf32> to vector<1x1x128xf32>
    %178 = vector.shape_cast %177 : vector<1x1x128xf32> to vector<128xf32>
    %179 = vector.shape_cast %178 : vector<128xf32> to vector<1x1x1x128xf32>
    %180 = vector.broadcast %179 : vector<1x1x1x128xf32> to vector<1x8x8x128xf32>
    %181 = arith.mulf %170, %180 : vector<1x8x8x128xf32>
    %182 = arith.addf %163, %181 : vector<1x8x8x128xf32>
    %183 = vector.extract_strided_slice %11 {offsets = [2, 8, 0], sizes = [1, 1, 128], strides = [1, 1, 1]} : vector<3x9x128xf32> to vector<1x1x128xf32>
    %184 = vector.shape_cast %183 : vector<1x1x128xf32> to vector<128xf32>
    %185 = vector.shape_cast %184 : vector<128xf32> to vector<1x1x1x128xf32>
    %186 = vector.broadcast %185 : vector<1x1x1x128xf32> to vector<1x8x8x128xf32>
    %187 = arith.mulf %170, %186 : vector<1x8x8x128xf32>
    %188 = arith.addf %169, %187 : vector<1x8x8x128xf32>
    %c0_34 = arith.constant 0 : index
    %c0_35 = arith.constant 0 : index
    %189 = vector.load %arg4[%c0_34, %c0_35] : memref<3x128xf32, #tpu.memory_space<vmem>>, vector<3x128xf32>
    %c0_36 = arith.constant 0 : index
    %c0_37 = arith.constant 0 : index
    %190 = vector.load %arg5[%c0_36, %c0_37] : memref<3x128xf32, #tpu.memory_space<vmem>>, vector<3x128xf32>
    %c0_38 = arith.constant 0 : index
    %c0_39 = arith.constant 0 : index
    %c0_40 = arith.constant 0 : index
    %191 = vector.load %arg2[%c0_38, %c0_39, %c0_40] : memref<1x1x128xf32, #tpu.memory_space<vmem>>, vector<1x1x128xf32>
    %192 = vector.shape_cast %191 : vector<1x1x128xf32> to vector<1x128xf32>
    %193 = vector.extract_strided_slice %189 {offsets = [0, 0], sizes = [1, 128], strides = [1, 1]} : vector<3x128xf32> to vector<1x128xf32>
    %194 = vector.shape_cast %193 : vector<1x128xf32> to vector<128xf32>
    %195 = vector.shape_cast %194 : vector<128xf32> to vector<1x1x1x128xf32>
    %196 = vector.extract_strided_slice %190 {offsets = [0, 0], sizes = [1, 128], strides = [1, 1]} : vector<3x128xf32> to vector<1x128xf32>
    %197 = vector.shape_cast %196 : vector<1x128xf32> to vector<128xf32>
    %198 = vector.shape_cast %197 : vector<128xf32> to vector<1x1x1x128xf32>
    %199 = vector.broadcast %195 : vector<1x1x1x128xf32> to vector<1x8x8x128xf32>
    %200 = arith.mulf %176, %199 : vector<1x8x8x128xf32>
    %201 = vector.broadcast %198 : vector<1x1x1x128xf32> to vector<1x8x8x128xf32>
    %202 = arith.addf %200, %201 : vector<1x8x8x128xf32>
    %203 = vector.shape_cast %202 : vector<1x8x8x128xf32> to vector<64x128xf32>
    %204 = tpu.concatenate %203, %192 in 0 : vector<64x128xf32>, vector<1x128xf32> -> vector<65x128xf32>
    %205 = vector.extract_strided_slice %189 {offsets = [1, 0], sizes = [1, 128], strides = [1, 1]} : vector<3x128xf32> to vector<1x128xf32>
    %206 = vector.shape_cast %205 : vector<1x128xf32> to vector<128xf32>
    %207 = vector.shape_cast %206 : vector<128xf32> to vector<1x1x1x128xf32>
    %208 = vector.extract_strided_slice %190 {offsets = [1, 0], sizes = [1, 128], strides = [1, 1]} : vector<3x128xf32> to vector<1x128xf32>
    %209 = vector.shape_cast %208 : vector<1x128xf32> to vector<128xf32>
    %210 = vector.shape_cast %209 : vector<128xf32> to vector<1x1x1x128xf32>
    %211 = vector.broadcast %207 : vector<1x1x1x128xf32> to vector<1x8x8x128xf32>
    %212 = arith.mulf %182, %211 : vector<1x8x8x128xf32>
    %213 = vector.broadcast %210 : vector<1x1x1x128xf32> to vector<1x8x8x128xf32>
    %214 = arith.addf %212, %213 : vector<1x8x8x128xf32>
    %215 = vector.shape_cast %214 : vector<1x8x8x128xf32> to vector<64x128xf32>
    %216 = tpu.concatenate %215, %192 in 0 : vector<64x128xf32>, vector<1x128xf32> -> vector<65x128xf32>
    %217 = vector.extract_strided_slice %189 {offsets = [2, 0], sizes = [1, 128], strides = [1, 1]} : vector<3x128xf32> to vector<1x128xf32>
    %218 = vector.shape_cast %217 : vector<1x128xf32> to vector<128xf32>
    %219 = vector.shape_cast %218 : vector<128xf32> to vector<1x1x1x128xf32>
    %220 = vector.extract_strided_slice %190 {offsets = [2, 0], sizes = [1, 128], strides = [1, 1]} : vector<3x128xf32> to vector<1x128xf32>
    %221 = vector.shape_cast %220 : vector<1x128xf32> to vector<128xf32>
    %222 = vector.shape_cast %221 : vector<128xf32> to vector<1x1x1x128xf32>
    %223 = vector.broadcast %219 : vector<1x1x1x128xf32> to vector<1x8x8x128xf32>
    %224 = arith.mulf %188, %223 : vector<1x8x8x128xf32>
    %225 = vector.broadcast %222 : vector<1x1x1x128xf32> to vector<1x8x8x128xf32>
    %226 = arith.addf %224, %225 : vector<1x8x8x128xf32>
    %227 = vector.shape_cast %226 : vector<1x8x8x128xf32> to vector<64x128xf32>
    %228 = tpu.concatenate %227, %192 in 0 : vector<64x128xf32>, vector<1x128xf32> -> vector<65x128xf32>
    %229 = arith.truncf %204 : vector<65x128xf32> to vector<65x128xbf16>
    %c0_41 = arith.constant 0 : index
    %c0_42 = arith.constant 0 : index
    %c0_43 = arith.constant 0 : index
    %230 = vector.load %arg6[%c0_41, %c0_42, %c0_43] : memref<3x128x128xf32, #tpu.memory_space<vmem>>, vector<1x128x128xf32>
    %231 = vector.shape_cast %230 : vector<1x128x128xf32> to vector<128x128xf32>
    %232 = arith.truncf %231 : vector<128x128xf32> to vector<128x128xbf16>
    %cst_44 = arith.constant dense<0.000000e+00> : vector<65x128xf32>
    %233 = tpu.matmul %229, %232, %cst_44 {dimension_numbers = #tpu.dot_dimension_numbers<[1], [0], [0], [1], [0, 0, 1, 1], [], []>} : vector<65x128xbf16>, vector<128x128xbf16>, vector<65x128xf32> -> vector<65x128xf32>
    %cst_45 = arith.constant 1.250000e-01 : f32
    %234 = vector.broadcast %cst_45 : f32 to vector<65x128xf32>
    %235 = arith.mulf %233, %234 : vector<65x128xf32>
    %236 = arith.truncf %235 : vector<65x128xf32> to vector<65x128xbf16>
    %237 = arith.truncf %216 : vector<65x128xf32> to vector<65x128xbf16>
    %c1_46 = arith.constant 1 : index
    %c0_47 = arith.constant 0 : index
    %c0_48 = arith.constant 0 : index
    %238 = vector.load %arg6[%c1_46, %c0_47, %c0_48] : memref<3x128x128xf32, #tpu.memory_space<vmem>>, vector<1x128x128xf32>
    %239 = vector.shape_cast %238 : vector<1x128x128xf32> to vector<128x128xf32>
    %240 = arith.truncf %239 : vector<128x128xf32> to vector<128x128xbf16>
    %cst_49 = arith.constant dense<0.000000e+00> : vector<65x128xf32>
    %241 = tpu.matmul %237, %240, %cst_49 {dimension_numbers = #tpu.dot_dimension_numbers<[1], [0], [0], [1], [0, 0, 1, 1], [], []>} : vector<65x128xbf16>, vector<128x128xbf16>, vector<65x128xf32> -> vector<65x128xf32>
    %242 = arith.truncf %241 : vector<65x128xf32> to vector<65x128xbf16>
    %243 = arith.truncf %228 : vector<65x128xf32> to vector<65x128xbf16>
    %c2 = arith.constant 2 : index
    %c0_50 = arith.constant 0 : index
    %c0_51 = arith.constant 0 : index
    %244 = vector.load %arg6[%c2, %c0_50, %c0_51] : memref<3x128x128xf32, #tpu.memory_space<vmem>>, vector<1x128x128xf32>
    %245 = vector.shape_cast %244 : vector<1x128x128xf32> to vector<128x128xf32>
    %246 = arith.truncf %245 : vector<128x128xf32> to vector<128x128xbf16>
    %cst_52 = arith.constant dense<0.000000e+00> : vector<65x128xf32>
    %247 = tpu.matmul %243, %246, %cst_52 {dimension_numbers = #tpu.dot_dimension_numbers<[1], [0], [0], [1], [0, 0, 1, 1], [], []>} : vector<65x128xbf16>, vector<128x128xbf16>, vector<65x128xf32> -> vector<65x128xf32>
    %248 = arith.truncf %247 : vector<65x128xf32> to vector<65x128xbf16>
    %c0_53 = arith.constant 0 : index
    %c0_54 = arith.constant 0 : index
    %249 = vector.load %arg7[%c0_53, %c0_54] : memref<128x128xf32, #tpu.memory_space<vmem>>, vector<128x128xf32>
    %250 = arith.truncf %249 : vector<128x128xf32> to vector<128x128xbf16>
    %c0_55 = arith.constant 0 : index
    %c0_56 = arith.constant 0 : index
    %251 = vector.load %arg8[%c0_55, %c0_56] : memref<1x128xf32, #tpu.memory_space<vmem>>, vector<1x128xf32>
    %252 = vector.extract_strided_slice %236 {offsets = [0, 0], sizes = [64, 32], strides = [1, 1]} : vector<65x128xbf16> to vector<64x32xbf16>
    %253 = vector.extract_strided_slice %236 {offsets = [64, 0], sizes = [1, 32], strides = [1, 1]} : vector<65x128xbf16> to vector<1x32xbf16>
    %254 = tpu.concatenate %252, %253 in 0 : vector<64x32xbf16>, vector<1x32xbf16> -> vector<65x32xbf16>
    %255 = vector.extract_strided_slice %242 {offsets = [0, 0], sizes = [64, 32], strides = [1, 1]} : vector<65x128xbf16> to vector<64x32xbf16>
    %256 = vector.extract_strided_slice %242 {offsets = [64, 0], sizes = [1, 32], strides = [1, 1]} : vector<65x128xbf16> to vector<1x32xbf16>
    %257 = tpu.concatenate %255, %256 in 0 : vector<64x32xbf16>, vector<1x32xbf16> -> vector<65x32xbf16>
    %258 = vector.extract_strided_slice %248 {offsets = [0, 0], sizes = [64, 32], strides = [1, 1]} : vector<65x128xbf16> to vector<64x32xbf16>
    %259 = vector.extract_strided_slice %248 {offsets = [64, 0], sizes = [1, 32], strides = [1, 1]} : vector<65x128xbf16> to vector<1x32xbf16>
    %260 = tpu.concatenate %258, %259 in 0 : vector<64x32xbf16>, vector<1x32xbf16> -> vector<65x32xbf16>
    %cst_57 = arith.constant dense<0.000000e+00> : vector<65x65xf32>
    %261 = tpu.matmul %254, %257, %cst_57 {dimension_numbers = #tpu.dot_dimension_numbers<[1], [1], [0], [0], [0, 0, 1, 0], [], []>} : vector<65x32xbf16>, vector<65x32xbf16>, vector<65x65xf32> -> vector<65x65xf32>
    %cst_58 = arith.constant dense<0xFF800000> : vector<65xf32>
    %262 = vector.multi_reduction <maximumf>, %261, %cst_58 [1] : vector<65x65xf32> to vector<65xf32>
    %263 = vector.shape_cast %262 : vector<65xf32> to vector<65x1xf32>
    %264 = vector.broadcast %263 : vector<65x1xf32> to vector<65x65xf32>
    %265 = arith.subf %261, %264 : vector<65x65xf32>
    %266 = math.exp %265 : vector<65x65xf32>
    %cst_59 = arith.constant dense<0.000000e+00> : vector<65xf32>
    %267 = vector.multi_reduction <add>, %266, %cst_59 [1] : vector<65x65xf32> to vector<65xf32>
    %268 = vector.shape_cast %267 : vector<65xf32> to vector<65x1xf32>
    %269 = arith.truncf %266 : vector<65x65xf32> to vector<65x65xbf16>
    %cst_60 = arith.constant dense<0.000000e+00> : vector<65x32xf32>
    %270 = tpu.matmul %269, %260, %cst_60 {dimension_numbers = #tpu.dot_dimension_numbers<[1], [0], [0], [1], [0, 0, 1, 1], [], []>} : vector<65x65xbf16>, vector<65x32xbf16>, vector<65x32xf32> -> vector<65x32xf32>
    %271 = tpu.reciprocal %268 {approx = true} : vector<65x1xf32> -> vector<65x1xf32>
    %272 = vector.broadcast %271 : vector<65x1xf32> to vector<65x32xf32>
    %273 = arith.mulf %270, %272 : vector<65x32xf32>
    %274 = vector.extract_strided_slice %236 {offsets = [0, 32], sizes = [64, 32], strides = [1, 1]} : vector<65x128xbf16> to vector<64x32xbf16>
    %275 = vector.extract_strided_slice %236 {offsets = [64, 32], sizes = [1, 32], strides = [1, 1]} : vector<65x128xbf16> to vector<1x32xbf16>
    %276 = tpu.concatenate %274, %275 in 0 : vector<64x32xbf16>, vector<1x32xbf16> -> vector<65x32xbf16>
    %277 = vector.extract_strided_slice %242 {offsets = [0, 32], sizes = [64, 32], strides = [1, 1]} : vector<65x128xbf16> to vector<64x32xbf16>
    %278 = vector.extract_strided_slice %242 {offsets = [64, 32], sizes = [1, 32], strides = [1, 1]} : vector<65x128xbf16> to vector<1x32xbf16>
    %279 = tpu.concatenate %277, %278 in 0 : vector<64x32xbf16>, vector<1x32xbf16> -> vector<65x32xbf16>
    %280 = vector.extract_strided_slice %248 {offsets = [0, 32], sizes = [64, 32], strides = [1, 1]} : vector<65x128xbf16> to vector<64x32xbf16>
    %281 = vector.extract_strided_slice %248 {offsets = [64, 32], sizes = [1, 32], strides = [1, 1]} : vector<65x128xbf16> to vector<1x32xbf16>
    %282 = tpu.concatenate %280, %281 in 0 : vector<64x32xbf16>, vector<1x32xbf16> -> vector<65x32xbf16>
    %cst_61 = arith.constant dense<0.000000e+00> : vector<65x65xf32>
    %283 = tpu.matmul %276, %279, %cst_61 {dimension_numbers = #tpu.dot_dimension_numbers<[1], [1], [0], [0], [0, 0, 1, 0], [], []>} : vector<65x32xbf16>, vector<65x32xbf16>, vector<65x65xf32> -> vector<65x65xf32>
    %cst_62 = arith.constant dense<0xFF800000> : vector<65xf32>
    %284 = vector.multi_reduction <maximumf>, %283, %cst_62 [1] : vector<65x65xf32> to vector<65xf32>
    %285 = vector.shape_cast %284 : vector<65xf32> to vector<65x1xf32>
    %286 = vector.broadcast %285 : vector<65x1xf32> to vector<65x65xf32>
    %287 = arith.subf %283, %286 : vector<65x65xf32>
    %288 = math.exp %287 : vector<65x65xf32>
    %cst_63 = arith.constant dense<0.000000e+00> : vector<65xf32>
    %289 = vector.multi_reduction <add>, %288, %cst_63 [1] : vector<65x65xf32> to vector<65xf32>
    %290 = vector.shape_cast %289 : vector<65xf32> to vector<65x1xf32>
    %291 = arith.truncf %288 : vector<65x65xf32> to vector<65x65xbf16>
    %cst_64 = arith.constant dense<0.000000e+00> : vector<65x32xf32>
    %292 = tpu.matmul %291, %282, %cst_64 {dimension_numbers = #tpu.dot_dimension_numbers<[1], [0], [0], [1], [0, 0, 1, 1], [], []>} : vector<65x65xbf16>, vector<65x32xbf16>, vector<65x32xf32> -> vector<65x32xf32>
    %293 = tpu.reciprocal %290 {approx = true} : vector<65x1xf32> -> vector<65x1xf32>
    %294 = vector.broadcast %293 : vector<65x1xf32> to vector<65x32xf32>
    %295 = arith.mulf %292, %294 : vector<65x32xf32>
    %296 = vector.extract_strided_slice %236 {offsets = [0, 64], sizes = [64, 32], strides = [1, 1]} : vector<65x128xbf16> to vector<64x32xbf16>
    %297 = vector.extract_strided_slice %236 {offsets = [64, 64], sizes = [1, 32], strides = [1, 1]} : vector<65x128xbf16> to vector<1x32xbf16>
    %298 = tpu.concatenate %296, %297 in 0 : vector<64x32xbf16>, vector<1x32xbf16> -> vector<65x32xbf16>
    %299 = vector.extract_strided_slice %242 {offsets = [0, 64], sizes = [64, 32], strides = [1, 1]} : vector<65x128xbf16> to vector<64x32xbf16>
    %300 = vector.extract_strided_slice %242 {offsets = [64, 64], sizes = [1, 32], strides = [1, 1]} : vector<65x128xbf16> to vector<1x32xbf16>
    %301 = tpu.concatenate %299, %300 in 0 : vector<64x32xbf16>, vector<1x32xbf16> -> vector<65x32xbf16>
    %302 = vector.extract_strided_slice %248 {offsets = [0, 64], sizes = [64, 32], strides = [1, 1]} : vector<65x128xbf16> to vector<64x32xbf16>
    %303 = vector.extract_strided_slice %248 {offsets = [64, 64], sizes = [1, 32], strides = [1, 1]} : vector<65x128xbf16> to vector<1x32xbf16>
    %304 = tpu.concatenate %302, %303 in 0 : vector<64x32xbf16>, vector<1x32xbf16> -> vector<65x32xbf16>
    %cst_65 = arith.constant dense<0.000000e+00> : vector<65x65xf32>
    %305 = tpu.matmul %298, %301, %cst_65 {dimension_numbers = #tpu.dot_dimension_numbers<[1], [1], [0], [0], [0, 0, 1, 0], [], []>} : vector<65x32xbf16>, vector<65x32xbf16>, vector<65x65xf32> -> vector<65x65xf32>
    %cst_66 = arith.constant dense<0xFF800000> : vector<65xf32>
    %306 = vector.multi_reduction <maximumf>, %305, %cst_66 [1] : vector<65x65xf32> to vector<65xf32>
    %307 = vector.shape_cast %306 : vector<65xf32> to vector<65x1xf32>
    %308 = vector.broadcast %307 : vector<65x1xf32> to vector<65x65xf32>
    %309 = arith.subf %305, %308 : vector<65x65xf32>
    %310 = math.exp %309 : vector<65x65xf32>
    %cst_67 = arith.constant dense<0.000000e+00> : vector<65xf32>
    %311 = vector.multi_reduction <add>, %310, %cst_67 [1] : vector<65x65xf32> to vector<65xf32>
    %312 = vector.shape_cast %311 : vector<65xf32> to vector<65x1xf32>
    %313 = arith.truncf %310 : vector<65x65xf32> to vector<65x65xbf16>
    %cst_68 = arith.constant dense<0.000000e+00> : vector<65x32xf32>
    %314 = tpu.matmul %313, %304, %cst_68 {dimension_numbers = #tpu.dot_dimension_numbers<[1], [0], [0], [1], [0, 0, 1, 1], [], []>} : vector<65x65xbf16>, vector<65x32xbf16>, vector<65x32xf32> -> vector<65x32xf32>
    %315 = tpu.reciprocal %312 {approx = true} : vector<65x1xf32> -> vector<65x1xf32>
    %316 = vector.broadcast %315 : vector<65x1xf32> to vector<65x32xf32>
    %317 = arith.mulf %314, %316 : vector<65x32xf32>
    %318 = vector.extract_strided_slice %236 {offsets = [0, 96], sizes = [64, 32], strides = [1, 1]} : vector<65x128xbf16> to vector<64x32xbf16>
    %319 = vector.extract_strided_slice %236 {offsets = [64, 96], sizes = [1, 32], strides = [1, 1]} : vector<65x128xbf16> to vector<1x32xbf16>
    %320 = tpu.concatenate %318, %319 in 0 : vector<64x32xbf16>, vector<1x32xbf16> -> vector<65x32xbf16>
    %321 = vector.extract_strided_slice %242 {offsets = [0, 96], sizes = [64, 32], strides = [1, 1]} : vector<65x128xbf16> to vector<64x32xbf16>
    %322 = vector.extract_strided_slice %242 {offsets = [64, 96], sizes = [1, 32], strides = [1, 1]} : vector<65x128xbf16> to vector<1x32xbf16>
    %323 = tpu.concatenate %321, %322 in 0 : vector<64x32xbf16>, vector<1x32xbf16> -> vector<65x32xbf16>
    %324 = vector.extract_strided_slice %248 {offsets = [0, 96], sizes = [64, 32], strides = [1, 1]} : vector<65x128xbf16> to vector<64x32xbf16>
    %325 = vector.extract_strided_slice %248 {offsets = [64, 96], sizes = [1, 32], strides = [1, 1]} : vector<65x128xbf16> to vector<1x32xbf16>
    %326 = tpu.concatenate %324, %325 in 0 : vector<64x32xbf16>, vector<1x32xbf16> -> vector<65x32xbf16>
    %cst_69 = arith.constant dense<0.000000e+00> : vector<65x65xf32>
    %327 = tpu.matmul %320, %323, %cst_69 {dimension_numbers = #tpu.dot_dimension_numbers<[1], [1], [0], [0], [0, 0, 1, 0], [], []>} : vector<65x32xbf16>, vector<65x32xbf16>, vector<65x65xf32> -> vector<65x65xf32>
    %cst_70 = arith.constant dense<0xFF800000> : vector<65xf32>
    %328 = vector.multi_reduction <maximumf>, %327, %cst_70 [1] : vector<65x65xf32> to vector<65xf32>
    %329 = vector.shape_cast %328 : vector<65xf32> to vector<65x1xf32>
    %330 = vector.broadcast %329 : vector<65x1xf32> to vector<65x65xf32>
    %331 = arith.subf %327, %330 : vector<65x65xf32>
    %332 = math.exp %331 : vector<65x65xf32>
    %cst_71 = arith.constant dense<0.000000e+00> : vector<65xf32>
    %333 = vector.multi_reduction <add>, %332, %cst_71 [1] : vector<65x65xf32> to vector<65xf32>
    %334 = vector.shape_cast %333 : vector<65xf32> to vector<65x1xf32>
    %335 = arith.truncf %332 : vector<65x65xf32> to vector<65x65xbf16>
    %cst_72 = arith.constant dense<0.000000e+00> : vector<65x32xf32>
    %336 = tpu.matmul %335, %326, %cst_72 {dimension_numbers = #tpu.dot_dimension_numbers<[1], [0], [0], [1], [0, 0, 1, 1], [], []>} : vector<65x65xbf16>, vector<65x32xbf16>, vector<65x32xf32> -> vector<65x32xf32>
    %337 = tpu.reciprocal %334 {approx = true} : vector<65x1xf32> -> vector<65x1xf32>
    %338 = vector.broadcast %337 : vector<65x1xf32> to vector<65x32xf32>
    %339 = arith.mulf %336, %338 : vector<65x32xf32>
    %340 = tpu.concatenate %273, %295, %317, %339 in 1 : vector<65x32xf32>, vector<65x32xf32>, vector<65x32xf32>, vector<65x32xf32> -> vector<65x128xf32>
    %341 = arith.truncf %340 : vector<65x128xf32> to vector<65x128xbf16>
    %cst_73 = arith.constant dense<0.000000e+00> : vector<65x128xf32>
    %342 = tpu.matmul %341, %250, %cst_73 {dimension_numbers = #tpu.dot_dimension_numbers<[1], [0], [0], [1], [0, 0, 1, 1], [], []>} : vector<65x128xbf16>, vector<128x128xbf16>, vector<65x128xf32> -> vector<65x128xf32>
    %343 = vector.broadcast %251 : vector<1x128xf32> to vector<65x128xf32>
    %344 = arith.addf %342, %343 : vector<65x128xf32>
    %345 = vector.extract_strided_slice %344 {offsets = [64, 0], sizes = [1, 128], strides = [1, 1]} : vector<65x128xf32> to vector<1x128xf32>
    %c0_74 = arith.constant 0 : index
    %c0_75 = arith.constant 0 : index
    %c0_76 = arith.constant 0 : index
    %346 = vector.load %arg9[%c0_74, %c0_75, %c0_76] : memref<1x65x128xf32, #tpu.memory_space<vmem>>, vector<1x1x128xf32>
    %347 = vector.shape_cast %346 : vector<1x1x128xf32> to vector<1x128xf32>
    %348 = vector.shape_cast %345 : vector<1x128xf32> to vector<1x1x128xf32>
    tpu.vector_store %arg9[%c0_74, %c0_75, %c0_76], %348 {strides = array<i32>} : memref<1x65x128xf32, #tpu.memory_space<vmem>>, vector<1x1x128xf32>,
    %349 = vector.extract_strided_slice %344 {offsets = [0, 0], sizes = [64, 128], strides = [1, 1]} : vector<65x128xf32> to vector<64x128xf32>
    %c0_77 = arith.constant 0 : index
    %c1_78 = arith.constant 1 : index
    %c0_79 = arith.constant 0 : index
    %350 = vector.load %arg9[%c0_77, %c1_78, %c0_79] : memref<1x65x128xf32, #tpu.memory_space<vmem>>, vector<1x64x128xf32>
    %351 = vector.shape_cast %350 : vector<1x64x128xf32> to vector<64x128xf32>
    %352 = vector.shape_cast %349 : vector<64x128xf32> to vector<1x64x128xf32>
    tpu.vector_store %arg9[%c0_77, %c1_78, %c0_79], %352 {strides = array<i32>} : memref<1x65x128xf32, #tpu.memory_space<vmem>>, vector<1x64x128xf32>,
    return
  }
  func.func @transform_0(%arg0: i32) -> (i32, i32, i32, i32) {
    %c0_i32 = arith.constant 0 : i32
    %c0_i32_0 = arith.constant 0 : i32
    %c0_i32_1 = arith.constant 0 : i32
    %c0_i32_2 = arith.constant 0 : i32
    return %arg0, %c0_i32, %c0_i32_0, %c0_i32_1 : i32, i32, i32, i32
  }
  func.func @transform_1(%arg0: i32) -> (i32, i32, i32) {
    %c0_i32 = arith.constant 0 : i32
    %c0_i32_0 = arith.constant 0 : i32
    %c0_i32_1 = arith.constant 0 : i32
    return %arg0, %c0_i32, %c0_i32_0 : i32, i32, i32
  }
  func.func @transform_2(%arg0: i32) -> (i32, i32, i32) {
    %c0_i32 = arith.constant 0 : i32
    %c0_i32_0 = arith.constant 0 : i32
    %c0_i32_1 = arith.constant 0 : i32
    %c0_i32_2 = arith.constant 0 : i32
    return %c0_i32, %c0_i32_0, %c0_i32_1 : i32, i32, i32
  }
  func.func @transform_3(%arg0: i32) -> (i32, i32) {
    %c0_i32 = arith.constant 0 : i32
    %c0_i32_0 = arith.constant 0 : i32
    %c0_i32_1 = arith.constant 0 : i32
    return %c0_i32, %c0_i32_0 : i32, i32
  }
  func.func @transform_4(%arg0: i32) -> (i32, i32) {
    %c0_i32 = arith.constant 0 : i32
    %c0_i32_0 = arith.constant 0 : i32
    %c0_i32_1 = arith.constant 0 : i32
    return %c0_i32, %c0_i32_0 : i32, i32
  }
  func.func @transform_5(%arg0: i32) -> (i32, i32, i32) {
    %c0_i32 = arith.constant 0 : i32
    %c0_i32_0 = arith.constant 0 : i32
    %c0_i32_1 = arith.constant 0 : i32
    %c0_i32_2 = arith.constant 0 : i32
    return %c0_i32, %c0_i32_0, %c0_i32_1 : i32, i32, i32
  }
  func.func @transform_6(%arg0: i32) -> (i32, i32) {
    %c0_i32 = arith.constant 0 : i32
    %c0_i32_0 = arith.constant 0 : i32
    %c0_i32_1 = arith.constant 0 : i32
    return %c0_i32, %c0_i32_0 : i32, i32
  }
  func.func @transform_7(%arg0: i32) -> (i32, i32) {
    %c0_i32 = arith.constant 0 : i32
    %c0_i32_0 = arith.constant 0 : i32
    %c0_i32_1 = arith.constant 0 : i32
    return %c0_i32, %c0_i32_0 : i32, i32
  }
  func.func @transform_8(%arg0: i32) -> (i32, i32, i32) {
    %c0_i32 = arith.constant 0 : i32
    %c0_i32_0 = arith.constant 0 : i32
    %c0_i32_1 = arith.constant 0 : i32
    return %arg0, %c0_i32, %c0_i32_0 : i32, i32, i32
  }
}

</mosaic_0001>

<llo_original>
// kernel: tpu_custom_call.1
$region0: #{tpu_custom_call.1}
  #allocation0 [shape = 'u32[]', space=smem, size = 0x4, offset = 0x4, fixed_abs, tag = 'smem constant byte address 0x4 - core index']
  #allocation1 [shape = 'u32[144,128]{1,0:T(1,128)}', space=vmem, size = 0x12000, scoped, tag = 'internal scratch']
  #allocation2 [shape = 'f32[1,10,10,128]{3,2,1,0:T(8,128)}', space=vmem, size = 0x14000, scoped, tag = 'scratch operand']
  %s0 = inlined_call_operand.vmem [shape: f32[1,8,8,128], index: 0, kind: input, shape index: {}]
  %s1 = inlined_call_operand.vmem [shape: f32[1,1,128], index: 1, kind: input, shape index: {}]
  %s2 = inlined_call_operand.vmem [shape: f32[3,9,128], index: 2, kind: input, shape index: {}]
  %s3 = inlined_call_operand.vmem [shape: f32[3,128], index: 3, kind: input, shape index: {}]
  %s4 = inlined_call_operand.vmem [shape: f32[3,128], index: 4, kind: input, shape index: {}]
  %s5 = inlined_call_operand.hbm [shape: f32[3,128,128], index: 5, kind: input, shape index: {}]
  %s6 = inlined_call_operand.hbm [shape: f32[128,128], index: 6, kind: input, shape index: {}]
  %s7 = inlined_call_operand.vmem [shape: f32[1,128], index: 7, kind: input, shape index: {}]
  %s8 = inlined_call_operand.vmem [shape: f32[1,65,128], index: 8, kind: output, shape index: {}]
  %s9 = sld [smem:[#allocation0]]
  $region50: #{tpu_custom_call.1} parent=0
    _
  %s11 = ssub.s32 1, %s9
  %s12 = scalar_select 0, %s11, %s9
  $region1: #{tpu_custom_call.1} parent=0
    #allocation3 [shape = 'u8[196608]{0}', space=vmem, size = 0x30000, scoped, tag = 'input window, operand 5, single buffered']
    #allocation4 [shape = 's32[1]{0}', space=sflag, size = 0x4, scoped, tag = 'scoped memory for tpu_custom_call.1']
    #allocation5 [shape = 'u8[65536]{0}', space=vmem, size = 0x10000, scoped, tag = 'input window, operand 6, single buffered']
    #allocation6 [shape = 's32[1]{0}', space=sflag, size = 0x4, scoped, tag = 'scoped memory for tpu_custom_call.1']
    %13 = vsyncpa [#allocation4], 0
    %14 = vsyncpa [#allocation6], 0
    // Predicated region
    $region2: #{tpu_custom_call.1} parent=1 // pred_check
      _
    $region3: #{tpu_custom_call.1} parent=1 // pred_check_branch
      %16 = sbr.rel (0) target = $region5
    $region4: #{tpu_custom_call.1} parent=1 // pred_region
      _
    $region5: #{tpu_custom_call.1} parent=1 // pred_fallthru
      _
    // Predicated region
    $region6: #{tpu_custom_call.1} parent=1 // pred_check
      _
    $region7: #{tpu_custom_call.1} parent=1 // pred_check_branch
      %18 = sbr.rel (0) target = $region9
    $region8: #{tpu_custom_call.1} parent=1 // pred_region
      _
    $region9: #{tpu_custom_call.1} parent=1 // pred_fallthru
      _
    // Predicated region
    $region10: #{tpu_custom_call.1} parent=1 // pred_check
      _
    $region11: #{tpu_custom_call.1} parent=1 // pred_check_branch
      %20 = sbr.rel (0) target = $region13
    $region12: #{tpu_custom_call.1} parent=1 // pred_region
      _
    $region13: #{tpu_custom_call.1} parent=1 // pred_fallthru
      _
    // Predicated region
    $region14: #{tpu_custom_call.1} parent=1 // pred_check
      _
    $region15: #{tpu_custom_call.1} parent=1 // pred_check_branch
      %22 = sbr.rel (0) target = $region17
    $region16: #{tpu_custom_call.1} parent=1 // pred_region
      _
    $region17: #{tpu_custom_call.1} parent=1 // pred_fallthru
      _
    // Predicated region
    $region18: #{tpu_custom_call.1} parent=1 // pred_check
      _
    $region19: #{tpu_custom_call.1} parent=1 // pred_check_branch
      %24 = sbr.rel (0) target = $region21
    $region20: #{tpu_custom_call.1} parent=1 // pred_region
      _
    $region21: #{tpu_custom_call.1} parent=1 // pred_fallthru
      _
    // Predicated region
    $region22: #{tpu_custom_call.1} parent=1 // pred_check
      _
    $region23: #{tpu_custom_call.1} parent=1 // pred_check_branch
      %26 = sbr.rel (0) target = $region25
    $region24: #{tpu_custom_call.1} parent=1 // pred_region
      %s28 = ssub.s32 6144, 6144
      %29 = vsyncadd [#allocation4], %s28
      %s30 = sshll.u32 [#allocation3], 4
      %s31 = int_to_ptr.vmem [resolvable:$true] %s30
      %36 = dma.hbm_to_vmem [thread:$0]  %s5, 6144, %s31, [#allocation4], 128, 128, 8
    $region25: #{tpu_custom_call.1} parent=1 // pred_fallthru
      _
    // Predicated region
    $region26: #{tpu_custom_call.1} parent=1 // pred_check
      _
    $region27: #{tpu_custom_call.1} parent=1 // pred_check_branch
      %38 = sbr.rel (0) target = $region29
    $region28: #{tpu_custom_call.1} parent=1 // pred_region
      %s40 = ssub.s32 2048, 2048
      %41 = vsyncadd [#allocation6], %s40
      %s42 = sshll.u32 [#allocation5], 4
      %s43 = int_to_ptr.vmem [resolvable:$true] %s42
      %48 = dma.hbm_to_vmem [thread:$0]  %s6, 2048, %s43, [#allocation6], 128, 128, 8
    $region29: #{tpu_custom_call.1} parent=1 // pred_fallthru
      _
    // Predicated region
    $region30: #{tpu_custom_call.1} parent=1 // pred_check
      _
    $region31: #{tpu_custom_call.1} parent=1 // pred_check_branch
      %50 = sbr.rel (0) target = $region33
    $region32: #{tpu_custom_call.1} parent=1 // pred_region
      _
    $region33: #{tpu_custom_call.1} parent=1 // pred_fallthru
      _
    // Predicated region
    $region34: #{tpu_custom_call.1} parent=1 // pred_check
      _
    $region35: #{tpu_custom_call.1} parent=1 // pred_check_branch
      %52 = sbr.rel (0) target = $region37
    $region36: #{tpu_custom_call.1} parent=1 // pred_region
      %53 = dma.done [#allocation4], 6144
    $region37: #{tpu_custom_call.1} parent=1 // pred_fallthru
      _
    // Predicated region
    $region38: #{tpu_custom_call.1} parent=1 // pred_check
      _
    $region39: #{tpu_custom_call.1} parent=1 // pred_check_branch
      %55 = sbr.rel (0) target = $region41
    $region40: #{tpu_custom_call.1} parent=1 // pred_region
      %56 = dma.done [#allocation6], 2048
    $region41: #{tpu_custom_call.1} parent=1 // pred_fallthru
      _
    %58 = vst [vmem:[#allocation2] sm:$0xff] 0.0
    %59 = vst [vmem:[#allocation2 + $0x8] sm:$0x3] 0.0
    %s60 = scalar_lea.vmem [#allocation2], 144
    %61 = vst [vmem:[%s60] sm:$0xff] 0.0
    %62 = vst [vmem:[%s60 + $0x8] sm:$0x3] 0.0
    %s63 = scalar_lea.vmem [#allocation2], 16
    %64 = vst [vmem:[%s63] sm:$0x1] 0.0
    %65 = vst [vmem:[%s63 + $0x10] sm:$0x1] 0.0
    %66 = vst [vmem:[%s63 + $0x20] sm:$0x1] 0.0
    %67 = vst [vmem:[%s63 + $0x30] sm:$0x1] 0.0
    %68 = vst [vmem:[%s63 + $0x40] sm:$0x1] 0.0
    %69 = vst [vmem:[%s63 + $0x50] sm:$0x1] 0.0
    %70 = vst [vmem:[%s63 + $0x60] sm:$0x1] 0.0
    %71 = vst [vmem:[%s63 + $0x70] sm:$0x1] 0.0
    %72 = vst [vmem:[%s63 + $0x9] sm:$0x1] 0.0
    %73 = vst [vmem:[%s63 + $0x19] sm:$0x1] 0.0
    %74 = vst [vmem:[%s63 + $0x29] sm:$0x1] 0.0
    %75 = vst [vmem:[%s63 + $0x39] sm:$0x1] 0.0
    %76 = vst [vmem:[%s63 + $0x49] sm:$0x1] 0.0
    %77 = vst [vmem:[%s63 + $0x59] sm:$0x1] 0.0
    %78 = vst [vmem:[%s63 + $0x69] sm:$0x1] 0.0
    %79 = vst [vmem:[%s63 + $0x79] sm:$0x1] 0.0
    %v80 = vld [vmem:[%s0] sm:$0xff]
    %v81 = vld [vmem:[%s0 + $0x8] sm:$0xff]
    %v82 = vld [vmem:[%s0 + $0x10] sm:$0xff]
    %v83 = vld [vmem:[%s0 + $0x18] sm:$0xff]
    %v84 = vld [vmem:[%s0 + $0x20] sm:$0xff]
    %v85 = vld [vmem:[%s0 + $0x28] sm:$0xff]
    %v86 = vld [vmem:[%s0 + $0x30] sm:$0xff]
    %v87 = vld [vmem:[%s0 + $0x38] sm:$0xff]
    %88 = vst [vmem:[%s63 + $0x1] sm:$0xff] %v80
    %89 = vst [vmem:[%s63 + $0x11] sm:$0xff] %v81
    %90 = vst [vmem:[%s63 + $0x21] sm:$0xff] %v82
    %91 = vst [vmem:[%s63 + $0x31] sm:$0xff] %v83
    %92 = vst [vmem:[%s63 + $0x41] sm:$0xff] %v84
    %93 = vst [vmem:[%s63 + $0x51] sm:$0xff] %v85
    %94 = vst [vmem:[%s63 + $0x61] sm:$0xff] %v86
    %95 = vst [vmem:[%s63 + $0x71] sm:$0xff] %v87
    %v96 = vld [vmem:[#allocation2] sm:$0xff]
    %v97 = vld [vmem:[#allocation2 + $0x8] sm:$0x3]
    %v98 = vld [vmem:[#allocation2 + $0x10] sm:$0xff]
    %v99 = vld [vmem:[#allocation2 + $0x18] sm:$0x3]
    %v100 = vld [vmem:[#allocation2 + $0x20] sm:$0xff]
    %v101 = vld [vmem:[#allocation2 + $0x28] sm:$0x3]
    %v102 = vld [vmem:[#allocation2 + $0x30] sm:$0xff]
    %v103 = vld [vmem:[#allocation2 + $0x38] sm:$0x3]
    %v104 = vld [vmem:[#allocation2 + $0x40] sm:$0xff]
    %v105 = vld [vmem:[#allocation2 + $0x48] sm:$0x3]
    %v106 = vld [vmem:[#allocation2 + $0x50] sm:$0xff]
    %v107 = vld [vmem:[#allocation2 + $0x58] sm:$0x3]
    %v108 = vld [vmem:[#allocation2 + $0x60] sm:$0xff]
    %v109 = vld [vmem:[#allocation2 + $0x68] sm:$0x3]
    %v110 = vld [vmem:[#allocation2 + $0x70] sm:$0xff]
    %v111 = vld [vmem:[#allocation2 + $0x78] sm:$0x3]
    %v112 = vld [vmem:[#allocation2 + $0x80] sm:$0xff]
    %v113 = vld [vmem:[#allocation2 + $0x88] sm:$0x3]
    %v114 = vld [vmem:[#allocation2 + $0x90] sm:$0xff]
    %v115 = vld [vmem:[#allocation2 + $0x98] sm:$0x3]
    %v116 = vld [vmem:[%s2] sm:$0xff]
    %v117 = vld [vmem:[%s2 + $0x8] sm:$0x1]
    %v118 = vld [vmem:[%s2 + $0x10] sm:$0xff]
    %v119 = vld [vmem:[%s2 + $0x18] sm:$0x1]
    %v120 = vld [vmem:[%s2 + $0x20] sm:$0xff]
    %v121 = vld [vmem:[%s2 + $0x28] sm:$0x1]
    %v122 = vlaneseq
    %v123 = vshrl.u32 %v122, 7
    %v124 = vsub.s32 0, %v123
    %v125 = vrot.slane %v116, %v124
    %v126 = vmul.f32 %v96, %v125
    %v127 = vmul.f32 %v98, %v125
    %v128 = vmul.f32 %v100, %v125
    %v129 = vmul.f32 %v102, %v125
    %v130 = vmul.f32 %v104, %v125
    %v131 = vmul.f32 %v106, %v125
    %v132 = vmul.f32 %v108, %v125
    %v133 = vmul.f32 %v110, %v125
    %v134 = vadd.f32 %v126, 0.0
    %v135 = vadd.f32 %v127, 0.0
    %v136 = vadd.f32 %v128, 0.0
    %v137 = vadd.f32 %v129, 0.0
    %v138 = vadd.f32 %v130, 0.0
    %v139 = vadd.f32 %v131, 0.0
    %v140 = vadd.f32 %v132, 0.0
    %v141 = vadd.f32 %v133, 0.0
    %v142 = vlaneseq
    %v143 = vshrl.u32 %v142, 7
    %v144 = vsub.s32 0, %v143
    %v145 = vrot.slane %v118, %v144
    %v146 = vmul.f32 %v96, %v145
    %v147 = vmul.f32 %v98, %v145
    %v148 = vmul.f32 %v100, %v145
    %v149 = vmul.f32 %v102, %v145
    %v150 = vmul.f32 %v104, %v145
    %v151 = vmul.f32 %v106, %v145
    %v152 = vmul.f32 %v108, %v145
    %v153 = vmul.f32 %v110, %v145
    %v154 = vadd.f32 %v146, 0.0
    %v155 = vadd.f32 %v147, 0.0
    %v156 = vadd.f32 %v148, 0.0
    %v157 = vadd.f32 %v149, 0.0
    %v158 = vadd.f32 %v150, 0.0
    %v159 = vadd.f32 %v151, 0.0
    %v160 = vadd.f32 %v152, 0.0
    %v161 = vadd.f32 %v153, 0.0
    %v162 = vlaneseq
    %v163 = vshrl.u32 %v162, 7
    %v164 = vsub.s32 0, %v163
    %v165 = vrot.slane %v120, %v164
    %v166 = vmul.f32 %v96, %v165
    %v167 = vmul.f32 %v98, %v165
    %v168 = vmul.f32 %v100, %v165
    %v169 = vmul.f32 %v102, %v165
    %v170 = vmul.f32 %v104, %v165
    %v171 = vmul.f32 %v106, %v165
    %v172 = vmul.f32 %v108, %v165
    %v173 = vmul.f32 %v110, %v165
    %v174 = vadd.f32 %v166, 0.0
    %v175 = vadd.f32 %v167, 0.0
    %v176 = vadd.f32 %v168, 0.0
    %v177 = vadd.f32 %v169, 0.0
    %v178 = vadd.f32 %v170, 0.0
    %v179 = vadd.f32 %v171, 0.0
    %v180 = vadd.f32 %v172, 0.0
    %v181 = vadd.f32 %v173, 0.0
    %v182 = vlaneseq
    %v183 = vshrl.u32 %v182, 7
    %v184 = vsub.s32 3, %v183
    %v185 = vrot.slane %v116, %v184
    %v186 = vmul.f32 %v98, %v185
    %v187 = vmul.f32 %v100, %v185
    %v188 = vmul.f32 %v102, %v185
    %v189 = vmul.f32 %v104, %v185
    %v190 = vmul.f32 %v106, %v185
    %v191 = vmul.f32 %v108, %v185
    %v192 = vmul.f32 %v110, %v185
    %v193 = vmul.f32 %v112, %v185
    %v194 = vadd.f32 %v134, %v186
    %v195 = vadd.f32 %v135, %v187
    %v196 = vadd.f32 %v136, %v188
    %v197 = vadd.f32 %v137, %v189
    %v198 = vadd.f32 %v138, %v190
    %v199 = vadd.f32 %v139, %v191
    %v200 = vadd.f32 %v140, %v192
    %v201 = vadd.f32 %v141, %v193
    %v202 = vlaneseq
    %v203 = vshrl.u32 %v202, 7
    %v204 = vsub.s32 3, %v203
    %v205 = vrot.slane %v118, %v204
    %v206 = vmul.f32 %v98, %v205
    %v207 = vmul.f32 %v100, %v205
    %v208 = vmul.f32 %v102, %v205
    %v209 = vmul.f32 %v104, %v205
    %v210 = vmul.f32 %v106, %v205
    %v211 = vmul.f32 %v108, %v205
    %v212 = vmul.f32 %v110, %v205
    %v213 = vmul.f32 %v112, %v205
    %v214 = vadd.f32 %v154, %v206
    %v215 = vadd.f32 %v155, %v207
    %v216 = vadd.f32 %v156, %v208
    %v217 = vadd.f32 %v157, %v209
    %v218 = vadd.f32 %v158, %v210
    %v219 = vadd.f32 %v159, %v211
    %v220 = vadd.f32 %v160, %v212
    %v221 = vadd.f32 %v161, %v213
    %v222 = vlaneseq
    %v223 = vshrl.u32 %v222, 7
    %v224 = vsub.s32 3, %v223
    %v225 = vrot.slane %v120, %v224
    %v226 = vmul.f32 %v98, %v225
    %v227 = vmul.f32 %v100, %v225
    %v228 = vmul.f32 %v102, %v225
    %v229 = vmul.f32 %v104, %v225
    %v230 = vmul.f32 %v106, %v225
    %v231 = vmul.f32 %v108, %v225
    %v232 = vmul.f32 %v110, %v225
    %v233 = vmul.f32 %v112, %v225
    %v234 = vadd.f32 %v174, %v226
    %v235 = vadd.f32 %v175, %v227
    %v236 = vadd.f32 %v176, %v228
    %v237 = vadd.f32 %v177, %v229
    %v238 = vadd.f32 %v178, %v230
    %v239 = vadd.f32 %v179, %v231
    %v240 = vadd.f32 %v180, %v232
    %v241 = vadd.f32 %v181, %v233
    %v242 = vlaneseq
    %v243 = vshrl.u32 %v242, 7
    %v244 = vsub.s32 6, %v243
    %v245 = vrot.slane %v116, %v244
    %v246 = vmul.f32 %v100, %v245
    %v247 = vmul.f32 %v102, %v245
    %v248 = vmul.f32 %v104, %v245
    %v249 = vmul.f32 %v106, %v245
    %v250 = vmul.f32 %v108, %v245
    %v251 = vmul.f32 %v110, %v245
    %v252 = vmul.f32 %v112, %v245
    %v253 = vmul.f32 %v114, %v245
    %v254 = vadd.f32 %v194, %v246
    %v255 = vadd.f32 %v195, %v247
    %v256 = vadd.f32 %v196, %v248
    %v257 = vadd.f32 %v197, %v249
    %v258 = vadd.f32 %v198, %v250
    %v259 = vadd.f32 %v199, %v251
    %v260 = vadd.f32 %v200, %v252
    %v261 = vadd.f32 %v201, %v253
    %v262 = vlaneseq
    %v263 = vshrl.u32 %v262, 7
    %v264 = vsub.s32 6, %v263
    %v265 = vrot.slane %v118, %v264
    %v266 = vmul.f32 %v100, %v265
    %v267 = vmul.f32 %v102, %v265
    %v268 = vmul.f32 %v104, %v265
    %v269 = vmul.f32 %v106, %v265
    %v270 = vmul.f32 %v108, %v265
    %v271 = vmul.f32 %v110, %v265
    %v272 = vmul.f32 %v112, %v265
    %v273 = vmul.f32 %v114, %v265
    %v274 = vadd.f32 %v214, %v266
    %v275 = vadd.f32 %v215, %v267
    %v276 = vadd.f32 %v216, %v268
    %v277 = vadd.f32 %v217, %v269
    %v278 = vadd.f32 %v218, %v270
    %v279 = vadd.f32 %v219, %v271
    %v280 = vadd.f32 %v220, %v272
    %v281 = vadd.f32 %v221, %v273
    %v282 = vlaneseq
    %v283 = vshrl.u32 %v282, 7
    %v284 = vsub.s32 6, %v283
    %v285 = vrot.slane %v120, %v284
    %v286 = vmul.f32 %v100, %v285
    %v287 = vmul.f32 %v102, %v285
    %v288 = vmul.f32 %v104, %v285
    %v289 = vmul.f32 %v106, %v285
    %v290 = vmul.f32 %v108, %v285
    %v291 = vmul.f32 %v110, %v285
    %v292 = vmul.f32 %v112, %v285
    %v293 = vmul.f32 %v114, %v285
    %v294 = vadd.f32 %v234, %v286
    %v295 = vadd.f32 %v235, %v287
    %v296 = vadd.f32 %v236, %v288
    %v297 = vadd.f32 %v237, %v289
    %v298 = vadd.f32 %v238, %v290
    %v299 = vadd.f32 %v239, %v291
    %v300 = vadd.f32 %v240, %v292
    %v301 = vadd.f32 %v241, %v293
    %v302 = vlaneseq
    %v303 = vshrl.u32 %v302, 7
    %v304 = vsub.s32 1, %v303
    %v305 = vrot.slane %v116, %v304
    %v306 = vmul.f32 %v96, %v305
    %v307 = vmul.f32 %v97, %v305
    %v308 = vmul.f32 %v98, %v305
    %v309 = vmul.f32 %v99, %v305
    %v310 = vmul.f32 %v100, %v305
    %v311 = vmul.f32 %v101, %v305
    %v312 = vmul.f32 %v102, %v305
    %v313 = vmul.f32 %v103, %v305
    %v314 = vmul.f32 %v104, %v305
    %v315 = vmul.f32 %v105, %v305
    %v316 = vmul.f32 %v106, %v305
    %v317 = vmul.f32 %v107, %v305
    %v318 = vmul.f32 %v108, %v305
    %v319 = vmul.f32 %v109, %v305
    %v320 = vmul.f32 %v110, %v305
    %v321 = vmul.f32 %v111, %v305
    %vm338 = vcmask 1046528
    %v339 = vrot.slane %v306, 1
    %v340 = vrot.slane %v307, 1
    %v341 = vsel %vm338, %v339, %v340
    %v342 = vrot.slane %v308, 1
    %v343 = vrot.slane %v309, 1
    %v344 = vsel %vm338, %v342, %v343
    %v345 = vrot.slane %v310, 1
    %v346 = vrot.slane %v311, 1
    %v347 = vsel %vm338, %v345, %v346
    %v348 = vrot.slane %v312, 1
    %v349 = vrot.slane %v313, 1
    %v350 = vsel %vm338, %v348, %v349
    %v351 = vrot.slane %v314, 1
    %v352 = vrot.slane %v315, 1
    %v353 = vsel %vm338, %v351, %v352
    %v354 = vrot.slane %v316, 1
    %v355 = vrot.slane %v317, 1
    %v356 = vsel %vm338, %v354, %v355
    %v357 = vrot.slane %v318, 1
    %v358 = vrot.slane %v319, 1
    %v359 = vsel %vm338, %v357, %v358
    %v360 = vrot.slane %v320, 1
    %v361 = vrot.slane %v321, 1
    %v362 = vsel %vm338, %v360, %v361
    %v371 = vadd.f32 %v254, %v341
    %v372 = vadd.f32 %v255, %v344
    %v373 = vadd.f32 %v256, %v347
    %v374 = vadd.f32 %v257, %v350
    %v375 = vadd.f32 %v258, %v353
    %v376 = vadd.f32 %v259, %v356
    %v377 = vadd.f32 %v260, %v359
    %v378 = vadd.f32 %v261, %v362
    %v379 = vlaneseq
    %v380 = vshrl.u32 %v379, 7
    %v381 = vsub.s32 1, %v380
    %v382 = vrot.slane %v118, %v381
    %v383 = vmul.f32 %v96, %v382
    %v384 = vmul.f32 %v97, %v382
    %v385 = vmul.f32 %v98, %v382
    %v386 = vmul.f32 %v99, %v382
    %v387 = vmul.f32 %v100, %v382
    %v388 = vmul.f32 %v101, %v382
    %v389 = vmul.f32 %v102, %v382
    %v390 = vmul.f32 %v103, %v382
    %v391 = vmul.f32 %v104, %v382
    %v392 = vmul.f32 %v105, %v382
    %v393 = vmul.f32 %v106, %v382
    %v394 = vmul.f32 %v107, %v382
    %v395 = vmul.f32 %v108, %v382
    %v396 = vmul.f32 %v109, %v382
    %v397 = vmul.f32 %v110, %v382
    %v398 = vmul.f32 %v111, %v382
    %v415 = vrot.slane %v383, 1
    %v416 = vrot.slane %v384, 1
    %v417 = vsel %vm338, %v415, %v416
    %v418 = vrot.slane %v385, 1
    %v419 = vrot.slane %v386, 1
    %v420 = vsel %vm338, %v418, %v419
    %v421 = vrot.slane %v387, 1
    %v422 = vrot.slane %v388, 1
    %v423 = vsel %vm338, %v421, %v422
    %v424 = vrot.slane %v389, 1
    %v425 = vrot.slane %v390, 1
    %v426 = vsel %vm338, %v424, %v425
    %v427 = vrot.slane %v391, 1
    %v428 = vrot.slane %v392, 1
    %v429 = vsel %vm338, %v427, %v428
    %v430 = vrot.slane %v393, 1
    %v431 = vrot.slane %v394, 1
    %v432 = vsel %vm338, %v430, %v431
    %v433 = vrot.slane %v395, 1
    %v434 = vrot.slane %v396, 1
    %v435 = vsel %vm338, %v433, %v434
    %v436 = vrot.slane %v397, 1
    %v437 = vrot.slane %v398, 1
    %v438 = vsel %vm338, %v436, %v437
    %v447 = vadd.f32 %v274, %v417
    %v448 = vadd.f32 %v275, %v420
    %v449 = vadd.f32 %v276, %v423
    %v450 = vadd.f32 %v277, %v426
    %v451 = vadd.f32 %v278, %v429
    %v452 = vadd.f32 %v279, %v432
    %v453 = vadd.f32 %v280, %v435
    %v454 = vadd.f32 %v281, %v438
    %v455 = vlaneseq
    %v456 = vshrl.u32 %v455, 7
    %v457 = vsub.s32 1, %v456
    %v458 = vrot.slane %v120, %v457
    %v459 = vmul.f32 %v96, %v458
    %v460 = vmul.f32 %v97, %v458
    %v461 = vmul.f32 %v98, %v458
    %v462 = vmul.f32 %v99, %v458
    %v463 = vmul.f32 %v100, %v458
    %v464 = vmul.f32 %v101, %v458
    %v465 = vmul.f32 %v102, %v458
    %v466 = vmul.f32 %v103, %v458
    %v467 = vmul.f32 %v104, %v458
    %v468 = vmul.f32 %v105, %v458
    %v469 = vmul.f32 %v106, %v458
    %v470 = vmul.f32 %v107, %v458
    %v471 = vmul.f32 %v108, %v458
    %v472 = vmul.f32 %v109, %v458
    %v473 = vmul.f32 %v110, %v458
    %v474 = vmul.f32 %v111, %v458
    %v491 = vrot.slane %v459, 1
    %v492 = vrot.slane %v460, 1
    %v493 = vsel %vm338, %v491, %v492
    %v494 = vrot.slane %v461, 1
    %v495 = vrot.slane %v462, 1
    %v496 = vsel %vm338, %v494, %v495
    %v497 = vrot.slane %v463, 1
    %v498 = vrot.slane %v464, 1
    %v499 = vsel %vm338, %v497, %v498
    %v500 = vrot.slane %v465, 1
    %v501 = vrot.slane %v466, 1
    %v502 = vsel %vm338, %v500, %v501
    %v503 = vrot.slane %v467, 1
    %v504 = vrot.slane %v468, 1
    %v505 = vsel %vm338, %v503, %v504
    %v506 = vrot.slane %v469, 1
    %v507 = vrot.slane %v470, 1
    %v508 = vsel %vm338, %v506, %v507
    %v509 = vrot.slane %v471, 1
    %v510 = vrot.slane %v472, 1
    %v511 = vsel %vm338, %v509, %v510
    %v512 = vrot.slane %v473, 1
    %v513 = vrot.slane %v474, 1
    %v514 = vsel %vm338, %v512, %v513
    %v523 = vadd.f32 %v294, %v493
    %v524 = vadd.f32 %v295, %v496
    %v525 = vadd.f32 %v296, %v499
    %v526 = vadd.f32 %v297, %v502
    %v527 = vadd.f32 %v298, %v505
    %v528 = vadd.f32 %v299, %v508
    %v529 = vadd.f32 %v300, %v511
    %v530 = vadd.f32 %v301, %v514
    %v531 = vlaneseq
    %v532 = vshrl.u32 %v531, 7
    %v533 = vsub.s32 4, %v532
    %v534 = vrot.slane %v116, %v533
    %v535 = vmul.f32 %v98, %v534
    %v536 = vmul.f32 %v99, %v534
    %v537 = vmul.f32 %v100, %v534
    %v538 = vmul.f32 %v101, %v534
    %v539 = vmul.f32 %v102, %v534
    %v540 = vmul.f32 %v103, %v534
    %v541 = vmul.f32 %v104, %v534
    %v542 = vmul.f32 %v105, %v534
    %v543 = vmul.f32 %v106, %v534
    %v544 = vmul.f32 %v107, %v534
    %v545 = vmul.f32 %v108, %v534
    %v546 = vmul.f32 %v109, %v534
    %v547 = vmul.f32 %v110, %v534
    %v548 = vmul.f32 %v111, %v534
    %v549 = vmul.f32 %v112, %v534
    %v550 = vmul.f32 %v113, %v534
    %v567 = vrot.slane %v535, 1
    %v568 = vrot.slane %v536, 1
    %v569 = vsel %vm338, %v567, %v568
    %v570 = vrot.slane %v537, 1
    %v571 = vrot.slane %v538, 1
    %v572 = vsel %vm338, %v570, %v571
    %v573 = vrot.slane %v539, 1
    %v574 = vrot.slane %v540, 1
    %v575 = vsel %vm338, %v573, %v574
    %v576 = vrot.slane %v541, 1
    %v577 = vrot.slane %v542, 1
    %v578 = vsel %vm338, %v576, %v577
    %v579 = vrot.slane %v543, 1
    %v580 = vrot.slane %v544, 1
    %v581 = vsel %vm338, %v579, %v580
    %v582 = vrot.slane %v545, 1
    %v583 = vrot.slane %v546, 1
    %v584 = vsel %vm338, %v582, %v583
    %v585 = vrot.slane %v547, 1
    %v586 = vrot.slane %v548, 1
    %v587 = vsel %vm338, %v585, %v586
    %v588 = vrot.slane %v549, 1
    %v589 = vrot.slane %v550, 1
    %v590 = vsel %vm338, %v588, %v589
    %v599 = vadd.f32 %v371, %v569
    %v600 = vadd.f32 %v372, %v572
    %v601 = vadd.f32 %v373, %v575
    %v602 = vadd.f32 %v374, %v578
    %v603 = vadd.f32 %v375, %v581
    %v604 = vadd.f32 %v376, %v584
    %v605 = vadd.f32 %v377, %v587
    %v606 = vadd.f32 %v378, %v590
    %v607 = vlaneseq
    %v608 = vshrl.u32 %v607, 7
    %v609 = vsub.s32 4, %v608
    %v610 = vrot.slane %v118, %v609
    %v611 = vmul.f32 %v98, %v610
    %v612 = vmul.f32 %v99, %v610
    %v613 = vmul.f32 %v100, %v610
    %v614 = vmul.f32 %v101, %v610
    %v615 = vmul.f32 %v102, %v610
    %v616 = vmul.f32 %v103, %v610
    %v617 = vmul.f32 %v104, %v610
    %v618 = vmul.f32 %v105, %v610
    %v619 = vmul.f32 %v106, %v610
    %v620 = vmul.f32 %v107, %v610
    %v621 = vmul.f32 %v108, %v610
    %v622 = vmul.f32 %v109, %v610
    %v623 = vmul.f32 %v110, %v610
    %v624 = vmul.f32 %v111, %v610
    %v625 = vmul.f32 %v112, %v610
    %v626 = vmul.f32 %v113, %v610
    %v643 = vrot.slane %v611, 1
    %v644 = vrot.slane %v612, 1
    %v645 = vsel %vm338, %v643, %v644
    %v646 = vrot.slane %v613, 1
    %v647 = vrot.slane %v614, 1
    %v648 = vsel %vm338, %v646, %v647
    %v649 = vrot.slane %v615, 1
    %v650 = vrot.slane %v616, 1
    %v651 = vsel %vm338, %v649, %v650
    %v652 = vrot.slane %v617, 1
    %v653 = vrot.slane %v618, 1
    %v654 = vsel %vm338, %v652, %v653
    %v655 = vrot.slane %v619, 1
    %v656 = vrot.slane %v620, 1
    %v657 = vsel %vm338, %v655, %v656
    %v658 = vrot.slane %v621, 1
    %v659 = vrot.slane %v622, 1
    %v660 = vsel %vm338, %v658, %v659
    %v661 = vrot.slane %v623, 1
    %v662 = vrot.slane %v624, 1
    %v663 = vsel %vm338, %v661, %v662
    %v664 = vrot.slane %v625, 1
    %v665 = vrot.slane %v626, 1
    %v666 = vsel %vm338, %v664, %v665
    %v675 = vadd.f32 %v447, %v645
    %v676 = vadd.f32 %v448, %v648
    %v677 = vadd.f32 %v449, %v651
    %v678 = vadd.f32 %v450, %v654
    %v679 = vadd.f32 %v451, %v657
    %v680 = vadd.f32 %v452, %v660
    %v681 = vadd.f32 %v453, %v663
    %v682 = vadd.f32 %v454, %v666
    %v683 = vlaneseq
    %v684 = vshrl.u32 %v683, 7
    %v685 = vsub.s32 4, %v684
    %v686 = vrot.slane %v120, %v685
    %v687 = vmul.f32 %v98, %v686
    %v688 = vmul.f32 %v99, %v686
    %v689 = vmul.f32 %v100, %v686
    %v690 = vmul.f32 %v101, %v686
    %v691 = vmul.f32 %v102, %v686
    %v692 = vmul.f32 %v103, %v686
    %v693 = vmul.f32 %v104, %v686
    %v694 = vmul.f32 %v105, %v686
    %v695 = vmul.f32 %v106, %v686
    %v696 = vmul.f32 %v107, %v686
    %v697 = vmul.f32 %v108, %v686
    %v698 = vmul.f32 %v109, %v686
    %v699 = vmul.f32 %v110, %v686
    %v700 = vmul.f32 %v111, %v686
    %v701 = vmul.f32 %v112, %v686
    %v702 = vmul.f32 %v113, %v686
    %v719 = vrot.slane %v687, 1
    %v720 = vrot.slane %v688, 1
    %v721 = vsel %vm338, %v719, %v720
    %v722 = vrot.slane %v689, 1
    %v723 = vrot.slane %v690, 1
    %v724 = vsel %vm338, %v722, %v723
    %v725 = vrot.slane %v691, 1
    %v726 = vrot.slane %v692, 1
    %v727 = vsel %vm338, %v725, %v726
    %v728 = vrot.slane %v693, 1
    %v729 = vrot.slane %v694, 1
    %v730 = vsel %vm338, %v728, %v729
    %v731 = vrot.slane %v695, 1
    %v732 = vrot.slane %v696, 1
    %v733 = vsel %vm338, %v731, %v732
    %v734 = vrot.slane %v697, 1
    %v735 = vrot.slane %v698, 1
    %v736 = vsel %vm338, %v734, %v735
    %v737 = vrot.slane %v699, 1
    %v738 = vrot.slane %v700, 1
    %v739 = vsel %vm338, %v737, %v738
    %v740 = vrot.slane %v701, 1
    %v741 = vrot.slane %v702, 1
    %v742 = vsel %vm338, %v740, %v741
    %v751 = vadd.f32 %v523, %v721
    %v752 = vadd.f32 %v524, %v724
    %v753 = vadd.f32 %v525, %v727
    %v754 = vadd.f32 %v526, %v730
    %v755 = vadd.f32 %v527, %v733
    %v756 = vadd.f32 %v528, %v736
    %v757 = vadd.f32 %v529, %v739
    %v758 = vadd.f32 %v530, %v742
    %v759 = vlaneseq
    %v760 = vshrl.u32 %v759, 7
    %v761 = vsub.s32 7, %v760
    %v762 = vrot.slane %v116, %v761
    %v763 = vmul.f32 %v100, %v762
    %v764 = vmul.f32 %v101, %v762
    %v765 = vmul.f32 %v102, %v762
    %v766 = vmul.f32 %v103, %v762
    %v767 = vmul.f32 %v104, %v762
    %v768 = vmul.f32 %v105, %v762
    %v769 = vmul.f32 %v106, %v762
    %v770 = vmul.f32 %v107, %v762
    %v771 = vmul.f32 %v108, %v762
    %v772 = vmul.f32 %v109, %v762
    %v773 = vmul.f32 %v110, %v762
    %v774 = vmul.f32 %v111, %v762
    %v775 = vmul.f32 %v112, %v762
    %v776 = vmul.f32 %v113, %v762
    %v777 = vmul.f32 %v114, %v762
    %v778 = vmul.f32 %v115, %v762
    %v795 = vrot.slane %v763, 1
    %v796 = vrot.slane %v764, 1
    %v797 = vsel %vm338, %v795, %v796
    %v798 = vrot.slane %v765, 1
    %v799 = vrot.slane %v766, 1
    %v800 = vsel %vm338, %v798, %v799
    %v801 = vrot.slane %v767, 1
    %v802 = vrot.slane %v768, 1
    %v803 = vsel %vm338, %v801, %v802
    %v804 = vrot.slane %v769, 1
    %v805 = vrot.slane %v770, 1
    %v806 = vsel %vm338, %v804, %v805
    %v807 = vrot.slane %v771, 1
    %v808 = vrot.slane %v772, 1
    %v809 = vsel %vm338, %v807, %v808
    %v810 = vrot.slane %v773, 1
    %v811 = vrot.slane %v774, 1
    %v812 = vsel %vm338, %v810, %v811
    %v813 = vrot.slane %v775, 1
    %v814 = vrot.slane %v776, 1
    %v815 = vsel %vm338, %v813, %v814
    %v816 = vrot.slane %v777, 1
    %v817 = vrot.slane %v778, 1
    %v818 = vsel %vm338, %v816, %v817
    %v827 = vadd.f32 %v599, %v797
    %v828 = vadd.f32 %v600, %v800
    %v829 = vadd.f32 %v601, %v803
    %v830 = vadd.f32 %v602, %v806
    %v831 = vadd.f32 %v603, %v809
    %v832 = vadd.f32 %v604, %v812
    %v833 = vadd.f32 %v605, %v815
    %v834 = vadd.f32 %v606, %v818
    %v835 = vlaneseq
    %v836 = vshrl.u32 %v835, 7
    %v837 = vsub.s32 7, %v836
    %v838 = vrot.slane %v118, %v837
    %v839 = vmul.f32 %v100, %v838
    %v840 = vmul.f32 %v101, %v838
    %v841 = vmul.f32 %v102, %v838
    %v842 = vmul.f32 %v103, %v838
    %v843 = vmul.f32 %v104, %v838
    %v844 = vmul.f32 %v105, %v838
    %v845 = vmul.f32 %v106, %v838
    %v846 = vmul.f32 %v107, %v838
    %v847 = vmul.f32 %v108, %v838
    %v848 = vmul.f32 %v109, %v838
    %v849 = vmul.f32 %v110, %v838
    %v850 = vmul.f32 %v111, %v838
    %v851 = vmul.f32 %v112, %v838
    %v852 = vmul.f32 %v113, %v838
    %v853 = vmul.f32 %v114, %v838
    %v854 = vmul.f32 %v115, %v838
    %v871 = vrot.slane %v839, 1
    %v872 = vrot.slane %v840, 1
    %v873 = vsel %vm338, %v871, %v872
    %v874 = vrot.slane %v841, 1
    %v875 = vrot.slane %v842, 1
    %v876 = vsel %vm338, %v874, %v875
    %v877 = vrot.slane %v843, 1
    %v878 = vrot.slane %v844, 1
    %v879 = vsel %vm338, %v877, %v878
    %v880 = vrot.slane %v845, 1
    %v881 = vrot.slane %v846, 1
    %v882 = vsel %vm338, %v880, %v881
    %v883 = vrot.slane %v847, 1
    %v884 = vrot.slane %v848, 1
    %v885 = vsel %vm338, %v883, %v884
    %v886 = vrot.slane %v849, 1
    %v887 = vrot.slane %v850, 1
    %v888 = vsel %vm338, %v886, %v887
    %v889 = vrot.slane %v851, 1
    %v890 = vrot.slane %v852, 1
    %v891 = vsel %vm338, %v889, %v890
    %v892 = vrot.slane %v853, 1
    %v893 = vrot.slane %v854, 1
    %v894 = vsel %vm338, %v892, %v893
    %v903 = vadd.f32 %v675, %v873
    %v904 = vadd.f32 %v676, %v876
    %v905 = vadd.f32 %v677, %v879
    %v906 = vadd.f32 %v678, %v882
    %v907 = vadd.f32 %v679, %v885
    %v908 = vadd.f32 %v680, %v888
    %v909 = vadd.f32 %v681, %v891
    %v910 = vadd.f32 %v682, %v894
    %v911 = vlaneseq
    %v912 = vshrl.u32 %v911, 7
    %v913 = vsub.s32 7, %v912
    %v914 = vrot.slane %v120, %v913
    %v915 = vmul.f32 %v100, %v914
    %v916 = vmul.f32 %v101, %v914
    %v917 = vmul.f32 %v102, %v914
    %v918 = vmul.f32 %v103, %v914
    %v919 = vmul.f32 %v104, %v914
    %v920 = vmul.f32 %v105, %v914
    %v921 = vmul.f32 %v106, %v914
    %v922 = vmul.f32 %v107, %v914
    %v923 = vmul.f32 %v108, %v914
    %v924 = vmul.f32 %v109, %v914
    %v925 = vmul.f32 %v110, %v914
    %v926 = vmul.f32 %v111, %v914
    %v927 = vmul.f32 %v112, %v914
    %v928 = vmul.f32 %v113, %v914
    %v929 = vmul.f32 %v114, %v914
    %v930 = vmul.f32 %v115, %v914
    %v947 = vrot.slane %v915, 1
    %v948 = vrot.slane %v916, 1
    %v949 = vsel %vm338, %v947, %v948
    %v950 = vrot.slane %v917, 1
    %v951 = vrot.slane %v918, 1
    %v952 = vsel %vm338, %v950, %v951
    %v953 = vrot.slane %v919, 1
    %v954 = vrot.slane %v920, 1
    %v955 = vsel %vm338, %v953, %v954
    %v956 = vrot.slane %v921, 1
    %v957 = vrot.slane %v922, 1
    %v958 = vsel %vm338, %v956, %v957
    %v959 = vrot.slane %v923, 1
    %v960 = vrot.slane %v924, 1
    %v961 = vsel %vm338, %v959, %v960
    %v962 = vrot.slane %v925, 1
    %v963 = vrot.slane %v926, 1
    %v964 = vsel %vm338, %v962, %v963
    %v965 = vrot.slane %v927, 1
    %v966 = vrot.slane %v928, 1
    %v967 = vsel %vm338, %v965, %v966
    %v968 = vrot.slane %v929, 1
    %v969 = vrot.slane %v930, 1
    %v970 = vsel %vm338, %v968, %v969
    %v979 = vadd.f32 %v751, %v949
    %v980 = vadd.f32 %v752, %v952
    %v981 = vadd.f32 %v753, %v955
    %v982 = vadd.f32 %v754, %v958
    %v983 = vadd.f32 %v755, %v961
    %v984 = vadd.f32 %v756, %v964
    %v985 = vadd.f32 %v757, %v967
    %v986 = vadd.f32 %v758, %v970
    %v987 = vlaneseq
    %v988 = vshrl.u32 %v987, 7
    %v989 = vsub.s32 2, %v988
    %v990 = vrot.slane %v116, %v989
    %v991 = vmul.f32 %v96, %v990
    %v992 = vmul.f32 %v97, %v990
    %v993 = vmul.f32 %v98, %v990
    %v994 = vmul.f32 %v99, %v990
    %v995 = vmul.f32 %v100, %v990
    %v996 = vmul.f32 %v101, %v990
    %v997 = vmul.f32 %v102, %v990
    %v998 = vmul.f32 %v103, %v990
    %v999 = vmul.f32 %v104, %v990
    %v1000 = vmul.f32 %v105, %v990
    %v1001 = vmul.f32 %v106, %v990
    %v1002 = vmul.f32 %v107, %v990
    %v1003 = vmul.f32 %v108, %v990
    %v1004 = vmul.f32 %v109, %v990
    %v1005 = vmul.f32 %v110, %v990
    %v1006 = vmul.f32 %v111, %v990
    %vm1023 = vcmask 1045504
    %v1024 = vrot.slane %v991, 2
    %v1025 = vrot.slane %v992, 2
    %v1026 = vsel %vm1023, %v1024, %v1025
    %v1027 = vrot.slane %v993, 2
    %v1028 = vrot.slane %v994, 2
    %v1029 = vsel %vm1023, %v1027, %v1028
    %v1030 = vrot.slane %v995, 2
    %v1031 = vrot.slane %v996, 2
    %v1032 = vsel %vm1023, %v1030, %v1031
    %v1033 = vrot.slane %v997, 2
    %v1034 = vrot.slane %v998, 2
    %v1035 = vsel %vm1023, %v1033, %v1034
    %v1036 = vrot.slane %v999, 2
    %v1037 = vrot.slane %v1000, 2
    %v1038 = vsel %vm1023, %v1036, %v1037
    %v1039 = vrot.slane %v1001, 2
    %v1040 = vrot.slane %v1002, 2
    %v1041 = vsel %vm1023, %v1039, %v1040
    %v1042 = vrot.slane %v1003, 2
    %v1043 = vrot.slane %v1004, 2
    %v1044 = vsel %vm1023, %v1042, %v1043
    %v1045 = vrot.slane %v1005, 2
    %v1046 = vrot.slane %v1006, 2
    %v1047 = vsel %vm1023, %v1045, %v1046
    %v1056 = vadd.f32 %v827, %v1026
    %v1057 = vadd.f32 %v828, %v1029
    %v1058 = vadd.f32 %v829, %v1032
    %v1059 = vadd.f32 %v830, %v1035
    %v1060 = vadd.f32 %v831, %v1038
    %v1061 = vadd.f32 %v832, %v1041
    %v1062 = vadd.f32 %v833, %v1044
    %v1063 = vadd.f32 %v834, %v1047
    %v1064 = vlaneseq
    %v1065 = vshrl.u32 %v1064, 7
    %v1066 = vsub.s32 2, %v1065
    %v1067 = vrot.slane %v118, %v1066
    %v1068 = vmul.f32 %v96, %v1067
    %v1069 = vmul.f32 %v97, %v1067
    %v1070 = vmul.f32 %v98, %v1067
    %v1071 = vmul.f32 %v99, %v1067
    %v1072 = vmul.f32 %v100, %v1067
    %v1073 = vmul.f32 %v101, %v1067
    %v1074 = vmul.f32 %v102, %v1067
    %v1075 = vmul.f32 %v103, %v1067
    %v1076 = vmul.f32 %v104, %v1067
    %v1077 = vmul.f32 %v105, %v1067
    %v1078 = vmul.f32 %v106, %v1067
    %v1079 = vmul.f32 %v107, %v1067
    %v1080 = vmul.f32 %v108, %v1067
    %v1081 = vmul.f32 %v109, %v1067
    %v1082 = vmul.f32 %v110, %v1067
    %v1083 = vmul.f32 %v111, %v1067
    %v1100 = vrot.slane %v1068, 2
    %v1101 = vrot.slane %v1069, 2
    %v1102 = vsel %vm1023, %v1100, %v1101
    %v1103 = vrot.slane %v1070, 2
    %v1104 = vrot.slane %v1071, 2
    %v1105 = vsel %vm1023, %v1103, %v1104
    %v1106 = vrot.slane %v1072, 2
    %v1107 = vrot.slane %v1073, 2
    %v1108 = vsel %vm1023, %v1106, %v1107
    %v1109 = vrot.slane %v1074, 2
    %v1110 = vrot.slane %v1075, 2
    %v1111 = vsel %vm1023, %v1109, %v1110
    %v1112 = vrot.slane %v1076, 2
    %v1113 = vrot.slane %v1077, 2
    %v1114 = vsel %vm1023, %v1112, %v1113
    %v1115 = vrot.slane %v1078, 2
    %v1116 = vrot.slane %v1079, 2
    %v1117 = vsel %vm1023, %v1115, %v1116
    %v1118 = vrot.slane %v1080, 2
    %v1119 = vrot.slane %v1081, 2
    %v1120 = vsel %vm1023, %v1118, %v1119
    %v1121 = vrot.slane %v1082, 2
    %v1122 = vrot.slane %v1083, 2
    %v1123 = vsel %vm1023, %v1121, %v1122
    %v1132 = vadd.f32 %v903, %v1102
    %v1133 = vadd.f32 %v904, %v1105
    %v1134 = vadd.f32 %v905, %v1108
    %v1135 = vadd.f32 %v906, %v1111
    %v1136 = vadd.f32 %v907, %v1114
    %v1137 = vadd.f32 %v908, %v1117
    %v1138 = vadd.f32 %v909, %v1120
    %v1139 = vadd.f32 %v910, %v1123
    %v1140 = vlaneseq
    %v1141 = vshrl.u32 %v1140, 7
    %v1142 = vsub.s32 2, %v1141
    %v1143 = vrot.slane %v120, %v1142
    %v1144 = vmul.f32 %v96, %v1143
    %v1145 = vmul.f32 %v97, %v1143
    %v1146 = vmul.f32 %v98, %v1143
    %v1147 = vmul.f32 %v99, %v1143
    %v1148 = vmul.f32 %v100, %v1143
    %v1149 = vmul.f32 %v101, %v1143
    %v1150 = vmul.f32 %v102, %v1143
    %v1151 = vmul.f32 %v103, %v1143
    %v1152 = vmul.f32 %v104, %v1143
    %v1153 = vmul.f32 %v105, %v1143
    %v1154 = vmul.f32 %v106, %v1143
    %v1155 = vmul.f32 %v107, %v1143
    %v1156 = vmul.f32 %v108, %v1143
    %v1157 = vmul.f32 %v109, %v1143
    %v1158 = vmul.f32 %v110, %v1143
    %v1159 = vmul.f32 %v111, %v1143
    %v1176 = vrot.slane %v1144, 2
    %v1177 = vrot.slane %v1145, 2
    %v1178 = vsel %vm1023, %v1176, %v1177
    %v1179 = vrot.slane %v1146, 2
    %v1180 = vrot.slane %v1147, 2
    %v1181 = vsel %vm1023, %v1179, %v1180
    %v1182 = vrot.slane %v1148, 2
    %v1183 = vrot.slane %v1149, 2
    %v1184 = vsel %vm1023, %v1182, %v1183
    %v1185 = vrot.slane %v1150, 2
    %v1186 = vrot.slane %v1151, 2
    %v1187 = vsel %vm1023, %v1185, %v1186
    %v1188 = vrot.slane %v1152, 2
    %v1189 = vrot.slane %v1153, 2
    %v1190 = vsel %vm1023, %v1188, %v1189
    %v1191 = vrot.slane %v1154, 2
    %v1192 = vrot.slane %v1155, 2
    %v1193 = vsel %vm1023, %v1191, %v1192
    %v1194 = vrot.slane %v1156, 2
    %v1195 = vrot.slane %v1157, 2
    %v1196 = vsel %vm1023, %v1194, %v1195
    %v1197 = vrot.slane %v1158, 2
    %v1198 = vrot.slane %v1159, 2
    %v1199 = vsel %vm1023, %v1197, %v1198
    %v1208 = vadd.f32 %v979, %v1178
    %v1209 = vadd.f32 %v980, %v1181
    %v1210 = vadd.f32 %v981, %v1184
    %v1211 = vadd.f32 %v982, %v1187
    %v1212 = vadd.f32 %v983, %v1190
    %v1213 = vadd.f32 %v984, %v1193
    %v1214 = vadd.f32 %v985, %v1196
    %v1215 = vadd.f32 %v986, %v1199
    %v1216 = vlaneseq
    %v1217 = vshrl.u32 %v1216, 7
    %v1218 = vsub.s32 5, %v1217
    %v1219 = vrot.slane %v116, %v1218
    %v1220 = vmul.f32 %v98, %v1219
    %v1221 = vmul.f32 %v99, %v1219
    %v1222 = vmul.f32 %v100, %v1219
    %v1223 = vmul.f32 %v101, %v1219
    %v1224 = vmul.f32 %v102, %v1219
    %v1225 = vmul.f32 %v103, %v1219
    %v1226 = vmul.f32 %v104, %v1219
    %v1227 = vmul.f32 %v105, %v1219
    %v1228 = vmul.f32 %v106, %v1219
    %v1229 = vmul.f32 %v107, %v1219
    %v1230 = vmul.f32 %v108, %v1219
    %v1231 = vmul.f32 %v109, %v1219
    %v1232 = vmul.f32 %v110, %v1219
    %v1233 = vmul.f32 %v111, %v1219
    %v1234 = vmul.f32 %v112, %v1219
    %v1235 = vmul.f32 %v113, %v1219
    %v1252 = vrot.slane %v1220, 2
    %v1253 = vrot.slane %v1221, 2
    %v1254 = vsel %vm1023, %v1252, %v1253
    %v1255 = vrot.slane %v1222, 2
    %v1256 = vrot.slane %v1223, 2
    %v1257 = vsel %vm1023, %v1255, %v1256
    %v1258 = vrot.slane %v1224, 2
    %v1259 = vrot.slane %v1225, 2
    %v1260 = vsel %vm1023, %v1258, %v1259
    %v1261 = vrot.slane %v1226, 2
    %v1262 = vrot.slane %v1227, 2
    %v1263 = vsel %vm1023, %v1261, %v1262
    %v1264 = vrot.slane %v1228, 2
    %v1265 = vrot.slane %v1229, 2
    %v1266 = vsel %vm1023, %v1264, %v1265
    %v1267 = vrot.slane %v1230, 2
    %v1268 = vrot.slane %v1231, 2
    %v1269 = vsel %vm1023, %v1267, %v1268
    %v1270 = vrot.slane %v1232, 2
    %v1271 = vrot.slane %v1233, 2
    %v1272 = vsel %vm1023, %v1270, %v1271
    %v1273 = vrot.slane %v1234, 2
    %v1274 = vrot.slane %v1235, 2
    %v1275 = vsel %vm1023, %v1273, %v1274
    %v1284 = vadd.f32 %v1056, %v1254
    %v1285 = vadd.f32 %v1057, %v1257
    %v1286 = vadd.f32 %v1058, %v1260
    %v1287 = vadd.f32 %v1059, %v1263
    %v1288 = vadd.f32 %v1060, %v1266
    %v1289 = vadd.f32 %v1061, %v1269
    %v1290 = vadd.f32 %v1062, %v1272
    %v1291 = vadd.f32 %v1063, %v1275
    %v1292 = vlaneseq
    %v1293 = vshrl.u32 %v1292, 7
    %v1294 = vsub.s32 5, %v1293
    %v1295 = vrot.slane %v118, %v1294
    %v1296 = vmul.f32 %v98, %v1295
    %v1297 = vmul.f32 %v99, %v1295
    %v1298 = vmul.f32 %v100, %v1295
    %v1299 = vmul.f32 %v101, %v1295
    %v1300 = vmul.f32 %v102, %v1295
    %v1301 = vmul.f32 %v103, %v1295
    %v1302 = vmul.f32 %v104, %v1295
    %v1303 = vmul.f32 %v105, %v1295
    %v1304 = vmul.f32 %v106, %v1295
    %v1305 = vmul.f32 %v107, %v1295
    %v1306 = vmul.f32 %v108, %v1295
    %v1307 = vmul.f32 %v109, %v1295
    %v1308 = vmul.f32 %v110, %v1295
    %v1309 = vmul.f32 %v111, %v1295
    %v1310 = vmul.f32 %v112, %v1295
    %v1311 = vmul.f32 %v113, %v1295
    %v1328 = vrot.slane %v1296, 2
    %v1329 = vrot.slane %v1297, 2
    %v1330 = vsel %vm1023, %v1328, %v1329
    %v1331 = vrot.slane %v1298, 2
    %v1332 = vrot.slane %v1299, 2
    %v1333 = vsel %vm1023, %v1331, %v1332
    %v1334 = vrot.slane %v1300, 2
    %v1335 = vrot.slane %v1301, 2
    %v1336 = vsel %vm1023, %v1334, %v1335
    %v1337 = vrot.slane %v1302, 2
    %v1338 = vrot.slane %v1303, 2
    %v1339 = vsel %vm1023, %v1337, %v1338
    %v1340 = vrot.slane %v1304, 2
    %v1341 = vrot.slane %v1305, 2
    %v1342 = vsel %vm1023, %v1340, %v1341
    %v1343 = vrot.slane %v1306, 2
    %v1344 = vrot.slane %v1307, 2
    %v1345 = vsel %vm1023, %v1343, %v1344
    %v1346 = vrot.slane %v1308, 2
    %v1347 = vrot.slane %v1309, 2
    %v1348 = vsel %vm1023, %v1346, %v1347
    %v1349 = vrot.slane %v1310, 2
    %v1350 = vrot.slane %v1311, 2
    %v1351 = vsel %vm1023, %v1349, %v1350
    %v1360 = vadd.f32 %v1132, %v1330
    %v1361 = vadd.f32 %v1133, %v1333
    %v1362 = vadd.f32 %v1134, %v1336
    %v1363 = vadd.f32 %v1135, %v1339
    %v1364 = vadd.f32 %v1136, %v1342
    %v1365 = vadd.f32 %v1137, %v1345
    %v1366 = vadd.f32 %v1138, %v1348
    %v1367 = vadd.f32 %v1139, %v1351
    %v1368 = vlaneseq
    %v1369 = vshrl.u32 %v1368, 7
    %v1370 = vsub.s32 5, %v1369
    %v1371 = vrot.slane %v120, %v1370
    %v1372 = vmul.f32 %v98, %v1371
    %v1373 = vmul.f32 %v99, %v1371
    %v1374 = vmul.f32 %v100, %v1371
    %v1375 = vmul.f32 %v101, %v1371
    %v1376 = vmul.f32 %v102, %v1371
    %v1377 = vmul.f32 %v103, %v1371
    %v1378 = vmul.f32 %v104, %v1371
    %v1379 = vmul.f32 %v105, %v1371
    %v1380 = vmul.f32 %v106, %v1371
    %v1381 = vmul.f32 %v107, %v1371
    %v1382 = vmul.f32 %v108, %v1371
    %v1383 = vmul.f32 %v109, %v1371
    %v1384 = vmul.f32 %v110, %v1371
    %v1385 = vmul.f32 %v111, %v1371
    %v1386 = vmul.f32 %v112, %v1371
    %v1387 = vmul.f32 %v113, %v1371
    %v1404 = vrot.slane %v1372, 2
    %v1405 = vrot.slane %v1373, 2
    %v1406 = vsel %vm1023, %v1404, %v1405
    %v1407 = vrot.slane %v1374, 2
    %v1408 = vrot.slane %v1375, 2
    %v1409 = vsel %vm1023, %v1407, %v1408
    %v1410 = vrot.slane %v1376, 2
    %v1411 = vrot.slane %v1377, 2
    %v1412 = vsel %vm1023, %v1410, %v1411
    %v1413 = vrot.slane %v1378, 2
    %v1414 = vrot.slane %v1379, 2
    %v1415 = vsel %vm1023, %v1413, %v1414
    %v1416 = vrot.slane %v1380, 2
    %v1417 = vrot.slane %v1381, 2
    %v1418 = vsel %vm1023, %v1416, %v1417
    %v1419 = vrot.slane %v1382, 2
    %v1420 = vrot.slane %v1383, 2
    %v1421 = vsel %vm1023, %v1419, %v1420
    %v1422 = vrot.slane %v1384, 2
    %v1423 = vrot.slane %v1385, 2
    %v1424 = vsel %vm1023, %v1422, %v1423
    %v1425 = vrot.slane %v1386, 2
    %v1426 = vrot.slane %v1387, 2
    %v1427 = vsel %vm1023, %v1425, %v1426
    %v1436 = vadd.f32 %v1208, %v1406
    %v1437 = vadd.f32 %v1209, %v1409
    %v1438 = vadd.f32 %v1210, %v1412
    %v1439 = vadd.f32 %v1211, %v1415
    %v1440 = vadd.f32 %v1212, %v1418
    %v1441 = vadd.f32 %v1213, %v1421
    %v1442 = vadd.f32 %v1214, %v1424
    %v1443 = vadd.f32 %v1215, %v1427
    %v1444 = vlaneseq
    %v1445 = vshrl.u32 %v1444, 7
    %v1446 = vsub.s32 0, %v1445
    %v1447 = vrot.slane %v117, %v1446
    %v1448 = vmul.f32 %v100, %v1447
    %v1449 = vmul.f32 %v101, %v1447
    %v1450 = vmul.f32 %v102, %v1447
    %v1451 = vmul.f32 %v103, %v1447
    %v1452 = vmul.f32 %v104, %v1447
    %v1453 = vmul.f32 %v105, %v1447
    %v1454 = vmul.f32 %v106, %v1447
    %v1455 = vmul.f32 %v107, %v1447
    %v1456 = vmul.f32 %v108, %v1447
    %v1457 = vmul.f32 %v109, %v1447
    %v1458 = vmul.f32 %v110, %v1447
    %v1459 = vmul.f32 %v111, %v1447
    %v1460 = vmul.f32 %v112, %v1447
    %v1461 = vmul.f32 %v113, %v1447
    %v1462 = vmul.f32 %v114, %v1447
    %v1463 = vmul.f32 %v115, %v1447
    %v1480 = vrot.slane %v1448, 2
    %v1481 = vrot.slane %v1449, 2
    %v1482 = vsel %vm1023, %v1480, %v1481
    %v1483 = vrot.slane %v1450, 2
    %v1484 = vrot.slane %v1451, 2
    %v1485 = vsel %vm1023, %v1483, %v1484
    %v1486 = vrot.slane %v1452, 2
    %v1487 = vrot.slane %v1453, 2
    %v1488 = vsel %vm1023, %v1486, %v1487
    %v1489 = vrot.slane %v1454, 2
    %v1490 = vrot.slane %v1455, 2
    %v1491 = vsel %vm1023, %v1489, %v1490
    %v1492 = vrot.slane %v1456, 2
    %v1493 = vrot.slane %v1457, 2
    %v1494 = vsel %vm1023, %v1492, %v1493
    %v1495 = vrot.slane %v1458, 2
    %v1496 = vrot.slane %v1459, 2
    %v1497 = vsel %vm1023, %v1495, %v1496
    %v1498 = vrot.slane %v1460, 2
    %v1499 = vrot.slane %v1461, 2
    %v1500 = vsel %vm1023, %v1498, %v1499
    %v1501 = vrot.slane %v1462, 2
    %v1502 = vrot.slane %v1463, 2
    %v1503 = vsel %vm1023, %v1501, %v1502
    %v1512 = vadd.f32 %v1284, %v1482
    %v1513 = vadd.f32 %v1285, %v1485
    %v1514 = vadd.f32 %v1286, %v1488
    %v1515 = vadd.f32 %v1287, %v1491
    %v1516 = vadd.f32 %v1288, %v1494
    %v1517 = vadd.f32 %v1289, %v1497
    %v1518 = vadd.f32 %v1290, %v1500
    %v1519 = vadd.f32 %v1291, %v1503
    %v1520 = vlaneseq
    %v1521 = vshrl.u32 %v1520, 7
    %v1522 = vsub.s32 0, %v1521
    %v1523 = vrot.slane %v119, %v1522
    %v1524 = vmul.f32 %v100, %v1523
    %v1525 = vmul.f32 %v101, %v1523
    %v1526 = vmul.f32 %v102, %v1523
    %v1527 = vmul.f32 %v103, %v1523
    %v1528 = vmul.f32 %v104, %v1523
    %v1529 = vmul.f32 %v105, %v1523
    %v1530 = vmul.f32 %v106, %v1523
    %v1531 = vmul.f32 %v107, %v1523
    %v1532 = vmul.f32 %v108, %v1523
    %v1533 = vmul.f32 %v109, %v1523
    %v1534 = vmul.f32 %v110, %v1523
    %v1535 = vmul.f32 %v111, %v1523
    %v1536 = vmul.f32 %v112, %v1523
    %v1537 = vmul.f32 %v113, %v1523
    %v1538 = vmul.f32 %v114, %v1523
    %v1539 = vmul.f32 %v115, %v1523
    %v1556 = vrot.slane %v1524, 2
    %v1557 = vrot.slane %v1525, 2
    %v1558 = vsel %vm1023, %v1556, %v1557
    %v1559 = vrot.slane %v1526, 2
    %v1560 = vrot.slane %v1527, 2
    %v1561 = vsel %vm1023, %v1559, %v1560
    %v1562 = vrot.slane %v1528, 2
    %v1563 = vrot.slane %v1529, 2
    %v1564 = vsel %vm1023, %v1562, %v1563
    %v1565 = vrot.slane %v1530, 2
    %v1566 = vrot.slane %v1531, 2
    %v1567 = vsel %vm1023, %v1565, %v1566
    %v1568 = vrot.slane %v1532, 2
    %v1569 = vrot.slane %v1533, 2
    %v1570 = vsel %vm1023, %v1568, %v1569
    %v1571 = vrot.slane %v1534, 2
    %v1572 = vrot.slane %v1535, 2
    %v1573 = vsel %vm1023, %v1571, %v1572
    %v1574 = vrot.slane %v1536, 2
    %v1575 = vrot.slane %v1537, 2
    %v1576 = vsel %vm1023, %v1574, %v1575
    %v1577 = vrot.slane %v1538, 2
    %v1578 = vrot.slane %v1539, 2
    %v1579 = vsel %vm1023, %v1577, %v1578
    %v1588 = vadd.f32 %v1360, %v1558
    %v1589 = vadd.f32 %v1361, %v1561
    %v1590 = vadd.f32 %v1362, %v1564
    %v1591 = vadd.f32 %v1363, %v1567
    %v1592 = vadd.f32 %v1364, %v1570
    %v1593 = vadd.f32 %v1365, %v1573
    %v1594 = vadd.f32 %v1366, %v1576
    %v1595 = vadd.f32 %v1367, %v1579
    %v1596 = vlaneseq
    %v1597 = vshrl.u32 %v1596, 7
    %v1598 = vsub.s32 0, %v1597
    %v1599 = vrot.slane %v121, %v1598
    %v1600 = vmul.f32 %v100, %v1599
    %v1601 = vmul.f32 %v101, %v1599
    %v1602 = vmul.f32 %v102, %v1599
    %v1603 = vmul.f32 %v103, %v1599
    %v1604 = vmul.f32 %v104, %v1599
    %v1605 = vmul.f32 %v105, %v1599
    %v1606 = vmul.f32 %v106, %v1599
    %v1607 = vmul.f32 %v107, %v1599
    %v1608 = vmul.f32 %v108, %v1599
    %v1609 = vmul.f32 %v109, %v1599
    %v1610 = vmul.f32 %v110, %v1599
    %v1611 = vmul.f32 %v111, %v1599
    %v1612 = vmul.f32 %v112, %v1599
    %v1613 = vmul.f32 %v113, %v1599
    %v1614 = vmul.f32 %v114, %v1599
    %v1615 = vmul.f32 %v115, %v1599
    %v1632 = vrot.slane %v1600, 2
    %v1633 = vrot.slane %v1601, 2
    %v1634 = vsel %vm1023, %v1632, %v1633
    %v1635 = vrot.slane %v1602, 2
    %v1636 = vrot.slane %v1603, 2
    %v1637 = vsel %vm1023, %v1635, %v1636
    %v1638 = vrot.slane %v1604, 2
    %v1639 = vrot.slane %v1605, 2
    %v1640 = vsel %vm1023, %v1638, %v1639
    %v1641 = vrot.slane %v1606, 2
    %v1642 = vrot.slane %v1607, 2
    %v1643 = vsel %vm1023, %v1641, %v1642
    %v1644 = vrot.slane %v1608, 2
    %v1645 = vrot.slane %v1609, 2
    %v1646 = vsel %vm1023, %v1644, %v1645
    %v1647 = vrot.slane %v1610, 2
    %v1648 = vrot.slane %v1611, 2
    %v1649 = vsel %vm1023, %v1647, %v1648
    %v1650 = vrot.slane %v1612, 2
    %v1651 = vrot.slane %v1613, 2
    %v1652 = vsel %vm1023, %v1650, %v1651
    %v1653 = vrot.slane %v1614, 2
    %v1654 = vrot.slane %v1615, 2
    %v1655 = vsel %vm1023, %v1653, %v1654
    %v1664 = vadd.f32 %v1436, %v1634
    %v1665 = vadd.f32 %v1437, %v1637
    %v1666 = vadd.f32 %v1438, %v1640
    %v1667 = vadd.f32 %v1439, %v1643
    %v1668 = vadd.f32 %v1440, %v1646
    %v1669 = vadd.f32 %v1441, %v1649
    %v1670 = vadd.f32 %v1442, %v1652
    %v1671 = vadd.f32 %v1443, %v1655
    %v1672 = vld [vmem:[%s3] sm:$0x7]
    %v1673 = vld [vmem:[%s4] sm:$0x7]
    %v1674 = vld [vmem:[%s1] sm:$0x1]
    %v1675 = vlaneseq
    %v1676 = vshrl.u32 %v1675, 7
    %v1677 = vsub.s32 0, %v1676
    %v1678 = vrot.slane %v1672, %v1677
    %v1679 = vmul.f32 %v1512, %v1678
    %v1680 = vmul.f32 %v1513, %v1678
    %v1681 = vmul.f32 %v1514, %v1678
    %v1682 = vmul.f32 %v1515, %v1678
    %v1683 = vmul.f32 %v1516, %v1678
    %v1684 = vmul.f32 %v1517, %v1678
    %v1685 = vmul.f32 %v1518, %v1678
    %v1686 = vmul.f32 %v1519, %v1678
    %v1687 = vlaneseq
    %v1688 = vshrl.u32 %v1687, 7
    %v1689 = vsub.s32 0, %v1688
    %v1690 = vrot.slane %v1673, %v1689
    %v1691 = vadd.f32 %v1679, %v1690
    %v1692 = vadd.f32 %v1680, %v1690
    %v1693 = vadd.f32 %v1681, %v1690
    %v1694 = vadd.f32 %v1682, %v1690
    %v1695 = vadd.f32 %v1683, %v1690
    %v1696 = vadd.f32 %v1684, %v1690
    %v1697 = vadd.f32 %v1685, %v1690
    %v1698 = vadd.f32 %v1686, %v1690
    %v1699 = vlaneseq
    %v1700 = vshrl.u32 %v1699, 7
    %v1701 = vsub.s32 1, %v1700
    %v1702 = vrot.slane %v1672, %v1701
    %v1703 = vmul.f32 %v1588, %v1702
    %v1704 = vmul.f32 %v1589, %v1702
    %v1705 = vmul.f32 %v1590, %v1702
    %v1706 = vmul.f32 %v1591, %v1702
    %v1707 = vmul.f32 %v1592, %v1702
    %v1708 = vmul.f32 %v1593, %v1702
    %v1709 = vmul.f32 %v1594, %v1702
    %v1710 = vmul.f32 %v1595, %v1702
    %v1711 = vlaneseq
    %v1712 = vshrl.u32 %v1711, 7
    %v1713 = vsub.s32 1, %v1712
    %v1714 = vrot.slane %v1673, %v1713
    %v1715 = vadd.f32 %v1703, %v1714
    %v1716 = vadd.f32 %v1704, %v1714
    %v1717 = vadd.f32 %v1705, %v1714
    %v1718 = vadd.f32 %v1706, %v1714
    %v1719 = vadd.f32 %v1707, %v1714
    %v1720 = vadd.f32 %v1708, %v1714
    %v1721 = vadd.f32 %v1709, %v1714
    %v1722 = vadd.f32 %v1710, %v1714
    %v1723 = vlaneseq
    %v1724 = vshrl.u32 %v1723, 7
    %v1725 = vsub.s32 2, %v1724
    %v1726 = vrot.slane %v1672, %v1725
    %v1727 = vmul.f32 %v1664, %v1726
    %v1728 = vmul.f32 %v1665, %v1726
    %v1729 = vmul.f32 %v1666, %v1726
    %v1730 = vmul.f32 %v1667, %v1726
    %v1731 = vmul.f32 %v1668, %v1726
    %v1732 = vmul.f32 %v1669, %v1726
    %v1733 = vmul.f32 %v1670, %v1726
    %v1734 = vmul.f32 %v1671, %v1726
    %v1735 = vlaneseq
    %v1736 = vshrl.u32 %v1735, 7
    %v1737 = vsub.s32 2, %v1736
    %v1738 = vrot.slane %v1673, %v1737
    %v1739 = vadd.f32 %v1727, %v1738
    %v1740 = vadd.f32 %v1728, %v1738
    %v1741 = vadd.f32 %v1729, %v1738
    %v1742 = vadd.f32 %v1730, %v1738
    %v1743 = vadd.f32 %v1731, %v1738
    %v1744 = vadd.f32 %v1732, %v1738
    %v1745 = vadd.f32 %v1733, %v1738
    %v1746 = vadd.f32 %v1734, %v1738
    %v1747 = vpack.c.bf16 %v1692, %v1691
    %v1748 = vpack.c.bf16 %v1694, %v1693
    %v1749 = vpack.c.bf16 %v1696, %v1695
    %v1750 = vpack.c.bf16 %v1698, %v1697
    %v1751 = vpack.c.bf16 %v1674, %v1674
    %v1752 = vld [vmem:[#allocation3] sm:$0xff]
    %v1753 = vld [vmem:[#allocation3 + $0x8] sm:$0xff]
    %v1754 = vld [vmem:[#allocation3 + $0x10] sm:$0xff]
    %v1755 = vld [vmem:[#allocation3 + $0x18] sm:$0xff]
    %v1756 = vld [vmem:[#allocation3 + $0x20] sm:$0xff]
    %v1757 = vld [vmem:[#allocation3 + $0x28] sm:$0xff]
    %v1758 = vld [vmem:[#allocation3 + $0x30] sm:$0xff]
    %v1759 = vld [vmem:[#allocation3 + $0x38] sm:$0xff]
    %v1760 = vld [vmem:[#allocation3 + $0x40] sm:$0xff]
    %v1761 = vld [vmem:[#allocation3 + $0x48] sm:$0xff]
    %v1762 = vld [vmem:[#allocation3 + $0x50] sm:$0xff]
    %v1763 = vld [vmem:[#allocation3 + $0x58] sm:$0xff]
    %v1764 = vld [vmem:[#allocation3 + $0x60] sm:$0xff]
    %v1765 = vld [vmem:[#allocation3 + $0x68] sm:$0xff]
    %v1766 = vld [vmem:[#allocation3 + $0x70] sm:$0xff]
    %v1767 = vld [vmem:[#allocation3 + $0x78] sm:$0xff]
    %v1768 = vpack.c.bf16 %v1753, %v1752
    %v1769 = vpack.c.bf16 %v1755, %v1754
    %v1770 = vpack.c.bf16 %v1757, %v1756
    %v1771 = vpack.c.bf16 %v1759, %v1758
    %v1772 = vpack.c.bf16 %v1761, %v1760
    %v1773 = vpack.c.bf16 %v1763, %v1762
    %v1774 = vpack.c.bf16 %v1765, %v1764
    %v1775 = vpack.c.bf16 %v1767, %v1766
    %1776 = vmatprep.subr.bf16.mxu0 0
    %1777 = vmatpush1.bf16.msra.mxu0 %v1768
    %1778 = vmatprep.subr.bf16.mxu0 0
    %1779 = vmatpush1.bf16.msra.mxu0 %v1769
    %1780 = vmatprep.subr.bf16.mxu0 0
    %1781 = vmatpush1.bf16.msra.mxu0 %v1770
    %1782 = vmatprep.subr.bf16.mxu0 0
    %1783 = vmatpush1.bf16.msra.mxu0 %v1771
    %1784 = vmatprep.subr.bf16.mxu0 0
    %1785 = vmatpush1.bf16.msra.mxu0 %v1772
    %1786 = vmatprep.subr.bf16.mxu0 0
    %1787 = vmatpush1.bf16.msra.mxu0 %v1773
    %1788 = vmatprep.subr.bf16.mxu0 0
    %1789 = vmatpush1.bf16.msra.mxu0 %v1774
    %1790 = vmatprep.subr.bf16.mxu0 0
    %1791 = vmatpush1.bf16.msra.mxu0 %v1775
    %1792 = vmatprep.subr.bf16.mxu0 0
    %1793 = vmatpush1.bf16.msra.mxu0 0
    %1794 = vmatprep.subr.bf16.mxu0 0
    %1795 = vmatpush1.bf16.msra.mxu0 0
    %1796 = vmatprep.subr.bf16.mxu0 0
    %1797 = vmatpush1.bf16.msra.mxu0 0
    %1798 = vmatprep.subr.bf16.mxu0 0
    %1799 = vmatpush1.bf16.msra.mxu0 0
    %1800 = vmatprep.subr.bf16.mxu0 0
    %1801 = vmatpush1.bf16.msra.mxu0 0
    %1802 = vmatprep.subr.bf16.mxu0 0
    %1803 = vmatpush1.bf16.msra.mxu0 0
    %1804 = vmatprep.subr.bf16.mxu0 0
    %1805 = vmatpush1.bf16.msra.mxu0 0
    %1806 = vmatprep.subr.bf16.mxu0 0
    %1807 = vmatpush1.bf16.msra.mxu0 0
    %1808 = vmatprep.mubr.bf16.mxu0 0
    %1809 = vmatmul.mubr.bf16.gmra.mrb[0].mxu0 %v1747
    %v1810 = vpop.f32.mrb[0].mxu0
    %v1811 = vadd.f32 0.0, %v1810
    %v1812 = vpop.f32.mrb[0].mxu0
    %v1813 = vpop.f32.mrb[0].mxu0
    %v1814 = vadd.f32 0.0, %v1813
    %v1815 = vpop.f32.mrb[0].mxu0
    %1816 = vmatprep.mubr.bf16.mxu0 0
    %1817 = vmatmul.mubr.bf16.gmra.mrb[0].mxu0 %v1748
    %v1818 = vpop.f32.mrb[0].mxu0
    %v1819 = vadd.f32 0.0, %v1818
    %v1820 = vpop.f32.mrb[0].mxu0
    %v1821 = vpop.f32.mrb[0].mxu0
    %v1822 = vadd.f32 0.0, %v1821
    %v1823 = vpop.f32.mrb[0].mxu0
    %1824 = vmatprep.mubr.bf16.mxu0 0
    %1825 = vmatmul.mubr.bf16.gmra.mrb[0].mxu0 %v1749
    %v1826 = vpop.f32.mrb[0].mxu0
    %v1827 = vadd.f32 0.0, %v1826
    %v1828 = vpop.f32.mrb[0].mxu0
    %v1829 = vpop.f32.mrb[0].mxu0
    %v1830 = vadd.f32 0.0, %v1829
    %v1831 = vpop.f32.mrb[0].mxu0
    %1832 = vmatprep.mubr.bf16.mxu0 0
    %1833 = vmatmul.mubr.bf16.gmra.mrb[0].mxu0 %v1750
    %v1834 = vpop.f32.mrb[0].mxu0
    %v1835 = vadd.f32 0.0, %v1834
    %v1836 = vpop.f32.mrb[0].mxu0
    %v1837 = vpop.f32.mrb[0].mxu0
    %v1838 = vadd.f32 0.0, %v1837
    %v1839 = vpop.f32.mrb[0].mxu0
    %1840 = vmatprep.mubr.bf16.mxu0 0
    %1841 = vmatmul.mubr.bf16.gmra.mrb[0].mxu0 %v1751
    %v1842 = vpop.f32.mrb[0].mxu0
    %v1843 = vadd.f32 0.0, %v1842
    %v1844 = vpop.f32.mrb[0].mxu0
    %v1845 = vpop.f32.mrb[0].mxu0
    %v1846 = vpop.f32.mrb[0].mxu0
    %1847 = vdwg.mxu0
    %v1848 = vmul.f32 %v1811, 0.125
    %v1849 = vmul.f32 %v1814, 0.125
    %v1850 = vmul.f32 %v1819, 0.125
    %v1851 = vmul.f32 %v1822, 0.125
    %v1852 = vmul.f32 %v1827, 0.125
    %v1853 = vmul.f32 %v1830, 0.125
    %v1854 = vmul.f32 %v1835, 0.125
    %v1855 = vmul.f32 %v1838, 0.125
    %v1856 = vmul.f32 %v1843, 0.125
    %v1857 = vpack.c.bf16 %v1849, %v1848
    %v1858 = vpack.c.bf16 %v1851, %v1850
    %v1859 = vpack.c.bf16 %v1853, %v1852
    %v1860 = vpack.c.bf16 %v1855, %v1854
    %v1861 = vpack.c.bf16 %v1856, %v1856
    %v1862 = vpack.c.bf16 %v1716, %v1715
    %v1863 = vpack.c.bf16 %v1718, %v1717
    %v1864 = vpack.c.bf16 %v1720, %v1719
    %v1865 = vpack.c.bf16 %v1722, %v1721
    %s1866 = scalar_lea.vmem [#allocation3], 128
    %v1867 = vld [vmem:[%s1866] sm:$0xff]
    %v1868 = vld [vmem:[%s1866 + $0x8] sm:$0xff]
    %v1869 = vld [vmem:[%s1866 + $0x10] sm:$0xff]
    %v1870 = vld [vmem:[%s1866 + $0x18] sm:$0xff]
    %v1871 = vld [vmem:[%s1866 + $0x20] sm:$0xff]
    %v1872 = vld [vmem:[%s1866 + $0x28] sm:$0xff]
    %v1873 = vld [vmem:[%s1866 + $0x30] sm:$0xff]
    %v1874 = vld [vmem:[%s1866 + $0x38] sm:$0xff]
    %v1875 = vld [vmem:[%s1866 + $0x40] sm:$0xff]
    %v1876 = vld [vmem:[%s1866 + $0x48] sm:$0xff]
    %v1877 = vld [vmem:[%s1866 + $0x50] sm:$0xff]
    %v1878 = vld [vmem:[%s1866 + $0x58] sm:$0xff]
    %v1879 = vld [vmem:[%s1866 + $0x60] sm:$0xff]
    %v1880 = vld [vmem:[%s1866 + $0x68] sm:$0xff]
    %v1881 = vld [vmem:[%s1866 + $0x70] sm:$0xff]
    %v1882 = vld [vmem:[%s1866 + $0x78] sm:$0xff]
    %v1883 = vpack.c.bf16 %v1868, %v1867
    %v1884 = vpack.c.bf16 %v1870, %v1869
    %v1885 = vpack.c.bf16 %v1872, %v1871
    %v1886 = vpack.c.bf16 %v1874, %v1873
    %v1887 = vpack.c.bf16 %v1876, %v1875
    %v1888 = vpack.c.bf16 %v1878, %v1877
    %v1889 = vpack.c.bf16 %v1880, %v1879
    %v1890 = vpack.c.bf16 %v1882, %v1881
    %1891 = vmatprep.subr.bf16.mxu0 0
    %1892 = vmatpush1.bf16.msra.mxu0 %v1883
    %1893 = vmatprep.subr.bf16.mxu0 0
    %1894 = vmatpush1.bf16.msra.mxu0 %v1884
    %1895 = vmatprep.subr.bf16.mxu0 0
    %1896 = vmatpush1.bf16.msra.mxu0 %v1885
    %1897 = vmatprep.subr.bf16.mxu0 0
    %1898 = vmatpush1.bf16.msra.mxu0 %v1886
    %1899 = vmatprep.subr.bf16.mxu0 0
    %1900 = vmatpush1.bf16.msra.mxu0 %v1887
    %1901 = vmatprep.subr.bf16.mxu0 0
    %1902 = vmatpush1.bf16.msra.mxu0 %v1888
    %1903 = vmatprep.subr.bf16.mxu0 0
    %1904 = vmatpush1.bf16.msra.mxu0 %v1889
    %1905 = vmatprep.subr.bf16.mxu0 0
    %1906 = vmatpush1.bf16.msra.mxu0 %v1890
    %1907 = vmatprep.subr.bf16.mxu0 0
    %1908 = vmatpush1.bf16.msra.mxu0 0
    %1909 = vmatprep.subr.bf16.mxu0 0
    %1910 = vmatpush1.bf16.msra.mxu0 0
    %1911 = vmatprep.subr.bf16.mxu0 0
    %1912 = vmatpush1.bf16.msra.mxu0 0
    %1913 = vmatprep.subr.bf16.mxu0 0
    %1914 = vmatpush1.bf16.msra.mxu0 0
    %1915 = vmatprep.subr.bf16.mxu0 0
    %1916 = vmatpush1.bf16.msra.mxu0 0
    %1917 = vmatprep.subr.bf16.mxu0 0
    %1918 = vmatpush1.bf16.msra.mxu0 0
    %1919 = vmatprep.subr.bf16.mxu0 0
    %1920 = vmatpush1.bf16.msra.mxu0 0
    %1921 = vmatprep.subr.bf16.mxu0 0
    %1922 = vmatpush1.bf16.msra.mxu0 0
    %1923 = vmatprep.mubr.bf16.mxu0 0
    %1924 = vmatmul.mubr.bf16.gmra.mrb[0].mxu0 %v1862
    %v1925 = vpop.f32.mrb[0].mxu0
    %v1926 = vadd.f32 0.0, %v1925
    %v1927 = vpop.f32.mrb[0].mxu0
    %v1928 = vpop.f32.mrb[0].mxu0
    %v1929 = vadd.f32 0.0, %v1928
    %v1930 = vpop.f32.mrb[0].mxu0
    %1931 = vmatprep.mubr.bf16.mxu0 0
    %1932 = vmatmul.mubr.bf16.gmra.mrb[0].mxu0 %v1863
    %v1933 = vpop.f32.mrb[0].mxu0
    %v1934 = vadd.f32 0.0, %v1933
    %v1935 = vpop.f32.mrb[0].mxu0
    %v1936 = vpop.f32.mrb[0].mxu0
    %v1937 = vadd.f32 0.0, %v1936
    %v1938 = vpop.f32.mrb[0].mxu0
    %1939 = vmatprep.mubr.bf16.mxu0 0
    %1940 = vmatmul.mubr.bf16.gmra.mrb[0].mxu0 %v1864
    %v1941 = vpop.f32.mrb[0].mxu0
    %v1942 = vadd.f32 0.0, %v1941
    %v1943 = vpop.f32.mrb[0].mxu0
    %v1944 = vpop.f32.mrb[0].mxu0
    %v1945 = vadd.f32 0.0, %v1944
    %v1946 = vpop.f32.mrb[0].mxu0
    %1947 = vmatprep.mubr.bf16.mxu0 0
    %1948 = vmatmul.mubr.bf16.gmra.mrb[0].mxu0 %v1865
    %v1949 = vpop.f32.mrb[0].mxu0
    %v1950 = vadd.f32 0.0, %v1949
    %v1951 = vpop.f32.mrb[0].mxu0
    %v1952 = vpop.f32.mrb[0].mxu0
    %v1953 = vadd.f32 0.0, %v1952
    %v1954 = vpop.f32.mrb[0].mxu0
    %1955 = vmatprep.mubr.bf16.mxu0 0
    %1956 = vmatmul.mubr.bf16.gmra.mrb[0].mxu0 %v1751
    %v1957 = vpop.f32.mrb[0].mxu0
    %v1958 = vadd.f32 0.0, %v1957
    %v1959 = vpop.f32.mrb[0].mxu0
    %v1960 = vpop.f32.mrb[0].mxu0
    %v1961 = vpop.f32.mrb[0].mxu0
    %1962 = vdwg.mxu0
    %v1963 = vpack.c.bf16 %v1929, %v1926
    %v1964 = vpack.c.bf16 %v1937, %v1934
    %v1965 = vpack.c.bf16 %v1945, %v1942
    %v1966 = vpack.c.bf16 %v1953, %v1950
    %v1967 = vpack.c.bf16 %v1958, %v1958
    %v1968 = vpack.c.bf16 %v1740, %v1739
    %v1969 = vpack.c.bf16 %v1742, %v1741
    %v1970 = vpack.c.bf16 %v1744, %v1743
    %v1971 = vpack.c.bf16 %v1746, %v1745
    %s1972 = scalar_lea.vmem [#allocation3], 256
    %v1973 = vld [vmem:[%s1972] sm:$0xff]
    %v1974 = vld [vmem:[%s1972 + $0x8] sm:$0xff]
    %v1975 = vld [vmem:[%s1972 + $0x10] sm:$0xff]
    %v1976 = vld [vmem:[%s1972 + $0x18] sm:$0xff]
    %v1977 = vld [vmem:[%s1972 + $0x20] sm:$0xff]
    %v1978 = vld [vmem:[%s1972 + $0x28] sm:$0xff]
    %v1979 = vld [vmem:[%s1972 + $0x30] sm:$0xff]
    %v1980 = vld [vmem:[%s1972 + $0x38] sm:$0xff]
    %v1981 = vld [vmem:[%s1972 + $0x40] sm:$0xff]
    %v1982 = vld [vmem:[%s1972 + $0x48] sm:$0xff]
    %v1983 = vld [vmem:[%s1972 + $0x50] sm:$0xff]
    %v1984 = vld [vmem:[%s1972 + $0x58] sm:$0xff]
    %v1985 = vld [vmem:[%s1972 + $0x60] sm:$0xff]
    %v1986 = vld [vmem:[%s1972 + $0x68] sm:$0xff]
    %v1987 = vld [vmem:[%s1972 + $0x70] sm:$0xff]
    %v1988 = vld [vmem:[%s1972 + $0x78] sm:$0xff]
    %v1989 = vpack.c.bf16 %v1974, %v1973
    %v1990 = vpack.c.bf16 %v1976, %v1975
    %v1991 = vpack.c.bf16 %v1978, %v1977
    %v1992 = vpack.c.bf16 %v1980, %v1979
    %v1993 = vpack.c.bf16 %v1982, %v1981
    %v1994 = vpack.c.bf16 %v1984, %v1983
    %v1995 = vpack.c.bf16 %v1986, %v1985
    %v1996 = vpack.c.bf16 %v1988, %v1987
    %1997 = vmatprep.subr.bf16.mxu0 0
    %1998 = vmatpush1.bf16.msra.mxu0 %v1989
    %1999 = vmatprep.subr.bf16.mxu0 0
    %2000 = vmatpush1.bf16.msra.mxu0 %v1990
    %2001 = vmatprep.subr.bf16.mxu0 0
    %2002 = vmatpush1.bf16.msra.mxu0 %v1991
    %2003 = vmatprep.subr.bf16.mxu0 0
    %2004 = vmatpush1.bf16.msra.mxu0 %v1992
    %2005 = vmatprep.subr.bf16.mxu0 0
    %2006 = vmatpush1.bf16.msra.mxu0 %v1993
    %2007 = vmatprep.subr.bf16.mxu0 0
    %2008 = vmatpush1.bf16.msra.mxu0 %v1994
    %2009 = vmatprep.subr.bf16.mxu0 0
    %2010 = vmatpush1.bf16.msra.mxu0 %v1995
    %2011 = vmatprep.subr.bf16.mxu0 0
    %2012 = vmatpush1.bf16.msra.mxu0 %v1996
    %2013 = vmatprep.subr.bf16.mxu0 0
    %2014 = vmatpush1.bf16.msra.mxu0 0
    %2015 = vmatprep.subr.bf16.mxu0 0
    %2016 = vmatpush1.bf16.msra.mxu0 0
    %2017 = vmatprep.subr.bf16.mxu0 0
    %2018 = vmatpush1.bf16.msra.mxu0 0
    %2019 = vmatprep.subr.bf16.mxu0 0
    %2020 = vmatpush1.bf16.msra.mxu0 0
    %2021 = vmatprep.subr.bf16.mxu0 0
    %2022 = vmatpush1.bf16.msra.mxu0 0
    %2023 = vmatprep.subr.bf16.mxu0 0
    %2024 = vmatpush1.bf16.msra.mxu0 0
    %2025 = vmatprep.subr.bf16.mxu0 0
    %2026 = vmatpush1.bf16.msra.mxu0 0
    %2027 = vmatprep.subr.bf16.mxu0 0
    %2028 = vmatpush1.bf16.msra.mxu0 0
    %2029 = vmatprep.mubr.bf16.mxu0 0
    %2030 = vmatmul.mubr.bf16.gmra.mrb[0].mxu0 %v1968
    %v2031 = vpop.f32.mrb[0].mxu0
    %v2032 = vadd.f32 0.0, %v2031
    %v2033 = vpop.f32.mrb[0].mxu0
    %v2034 = vpop.f32.mrb[0].mxu0
    %v2035 = vadd.f32 0.0, %v2034
    %v2036 = vpop.f32.mrb[0].mxu0
    %2037 = vmatprep.mubr.bf16.mxu0 0
    %2038 = vmatmul.mubr.bf16.gmra.mrb[0].mxu0 %v1969
    %v2039 = vpop.f32.mrb[0].mxu0
    %v2040 = vadd.f32 0.0, %v2039
    %v2041 = vpop.f32.mrb[0].mxu0
    %v2042 = vpop.f32.mrb[0].mxu0
    %v2043 = vadd.f32 0.0, %v2042
    %v2044 = vpop.f32.mrb[0].mxu0
    %2045 = vmatprep.mubr.bf16.mxu0 0
    %2046 = vmatmul.mubr.bf16.gmra.mrb[0].mxu0 %v1970
    %v2047 = vpop.f32.mrb[0].mxu0
    %v2048 = vadd.f32 0.0, %v2047
    %v2049 = vpop.f32.mrb[0].mxu0
    %v2050 = vpop.f32.mrb[0].mxu0
    %v2051 = vadd.f32 0.0, %v2050
    %v2052 = vpop.f32.mrb[0].mxu0
    %2053 = vmatprep.mubr.bf16.mxu0 0
    %2054 = vmatmul.mubr.bf16.gmra.mrb[0].mxu0 %v1971
    %v2055 = vpop.f32.mrb[0].mxu0
    %v2056 = vadd.f32 0.0, %v2055
    %v2057 = vpop.f32.mrb[0].mxu0
    %v2058 = vpop.f32.mrb[0].mxu0
    %v2059 = vadd.f32 0.0, %v2058
    %v2060 = vpop.f32.mrb[0].mxu0
    %2061 = vmatprep.mubr.bf16.mxu0 0
    %2062 = vmatmul.mubr.bf16.gmra.mrb[0].mxu0 %v1751
    %v2063 = vpop.f32.mrb[0].mxu0
    %v2064 = vadd.f32 0.0, %v2063
    %v2065 = vpop.f32.mrb[0].mxu0
    %v2066 = vpop.f32.mrb[0].mxu0
    %v2067 = vpop.f32.mrb[0].mxu0
    %2068 = vdwg.mxu0
    %v2069 = vpack.c.bf16 %v2035, %v2032
    %v2070 = vpack.c.bf16 %v2043, %v2040
    %v2071 = vpack.c.bf16 %v2051, %v2048
    %v2072 = vpack.c.bf16 %v2059, %v2056
    %v2073 = vpack.c.bf16 %v2064, %v2064
    %v2074 = vld [vmem:[#allocation5] sm:$0xff]
    %v2075 = vld [vmem:[#allocation5 + $0x8] sm:$0xff]
    %v2076 = vld [vmem:[#allocation5 + $0x10] sm:$0xff]
    %v2077 = vld [vmem:[#allocation5 + $0x18] sm:$0xff]
    %v2078 = vld [vmem:[#allocation5 + $0x20] sm:$0xff]
    %v2079 = vld [vmem:[#allocation5 + $0x28] sm:$0xff]
    %v2080 = vld [vmem:[#allocation5 + $0x30] sm:$0xff]
    %v2081 = vld [vmem:[#allocation5 + $0x38] sm:$0xff]
    %v2082 = vld [vmem:[#allocation5 + $0x40] sm:$0xff]
    %v2083 = vld [vmem:[#allocation5 + $0x48] sm:$0xff]
    %v2084 = vld [vmem:[#allocation5 + $0x50] sm:$0xff]
    %v2085 = vld [vmem:[#allocation5 + $0x58] sm:$0xff]
    %v2086 = vld [vmem:[#allocation5 + $0x60] sm:$0xff]
    %v2087 = vld [vmem:[#allocation5 + $0x68] sm:$0xff]
    %v2088 = vld [vmem:[#allocation5 + $0x70] sm:$0xff]
    %v2089 = vld [vmem:[#allocation5 + $0x78] sm:$0xff]
    %v2090 = vpack.c.bf16 %v2075, %v2074
    %v2091 = vpack.c.bf16 %v2077, %v2076
    %v2092 = vpack.c.bf16 %v2079, %v2078
    %v2093 = vpack.c.bf16 %v2081, %v2080
    %v2094 = vpack.c.bf16 %v2083, %v2082
    %v2095 = vpack.c.bf16 %v2085, %v2084
    %v2096 = vpack.c.bf16 %v2087, %v2086
    %v2097 = vpack.c.bf16 %v2089, %v2088
    %v2098 = vld [vmem:[%s7] sm:$0x1]
    %vm2099 = vcmask 261120
    %v2101 = vsel %vm2099, %v1857, 0
    %v2104 = vsel %vm2099, %v1858, 0
    %v2107 = vsel %vm2099, %v1859, 0
    %v2110 = vsel %vm2099, %v1860, 0
    %v2113 = vsel %vm2099, %v1861, 0
    %v2116 = vsel %vm2099, %v1963, 0
    %v2119 = vsel %vm2099, %v1964, 0
    %v2122 = vsel %vm2099, %v1965, 0
    %v2125 = vsel %vm2099, %v1966, 0
    %v2128 = vsel %vm2099, %v1967, 0
    %2130 = vmatprep.subr.bf16.mxu0 0
    %2131 = vmatpush1.bf16.xpose.msra.mxu0 %v2116
    %2132 = vmatprep.subr.bf16.mxu0 0
    %2133 = vmatpush1.bf16.xpose.msra.mxu0 %v2119
    %2134 = vmatprep.subr.bf16.mxu0 0
    %2135 = vmatpush1.bf16.xpose.msra.mxu0 %v2122
    %2136 = vmatprep.subr.bf16.mxu0 0
    %2137 = vmatpush1.bf16.xpose.msra.mxu0 %v2125
    %2138 = vmatprep.subr.bf16.mxu0 0
    %2139 = vmatpush1.bf16.xpose.msra.mxu0 %v2128
    %2140 = vmatprep.subr.bf16.mxu0 0
    %2141 = vmatpush1.bf16.xpose.msra.mxu0 0
    %2142 = vmatprep.subr.bf16.mxu0 0
    %2143 = vmatpush1.bf16.xpose.msra.mxu0 0
    %2144 = vmatprep.subr.bf16.mxu0 0
    %2145 = vmatpush1.bf16.xpose.msra.mxu0 0
    %2146 = vmatprep.subr.bf16.mxu0 0
    %2147 = vmatpush1.bf16.xpose.msra.mxu0 0
    %2148 = vmatprep.subr.bf16.mxu0 0
    %2149 = vmatpush1.bf16.xpose.msra.mxu0 0
    %2150 = vmatprep.subr.bf16.mxu0 0
    %2151 = vmatpush1.bf16.xpose.msra.mxu0 0
    %2152 = vmatprep.subr.bf16.mxu0 0
    %2153 = vmatpush1.bf16.xpose.msra.mxu0 0
    %2154 = vmatprep.subr.bf16.mxu0 0
    %2155 = vmatpush1.bf16.xpose.msra.mxu0 0
    %2156 = vmatprep.subr.bf16.mxu0 0
    %2157 = vmatpush1.bf16.xpose.msra.mxu0 0
    %2158 = vmatprep.subr.bf16.mxu0 0
    %2159 = vmatpush1.bf16.xpose.msra.mxu0 0
    %2160 = vmatprep.subr.bf16.mxu0 0
    %2161 = vmatpush1.bf16.xpose.msra.mxu0 0
    %2162 = vmatprep.mubr.bf16.mxu0 0
    %2163 = vmatmul.mubr.bf16.gmra.mrb[0].mxu0 %v2101
    %v2164 = vpop.f32.mrb[0].mxu0
    %v2165 = vadd.f32 0.0, %v2164
    %v2166 = vpop.f32.mrb[0].mxu0
    %v2167 = vpop.f32.mrb[0].mxu0
    %v2168 = vadd.f32 0.0, %v2167
    %v2169 = vpop.f32.mrb[0].mxu0
    %2170 = vmatprep.mubr.bf16.mxu0 0
    %2171 = vmatmul.mubr.bf16.gmra.mrb[0].mxu0 %v2104
    %v2172 = vpop.f32.mrb[0].mxu0
    %v2173 = vadd.f32 0.0, %v2172
    %v2174 = vpop.f32.mrb[0].mxu0
    %v2175 = vpop.f32.mrb[0].mxu0
    %v2176 = vadd.f32 0.0, %v2175
    %v2177 = vpop.f32.mrb[0].mxu0
    %2178 = vmatprep.mubr.bf16.mxu0 0
    %2179 = vmatmul.mubr.bf16.gmra.mrb[0].mxu0 %v2107
    %v2180 = vpop.f32.mrb[0].mxu0
    %v2181 = vadd.f32 0.0, %v2180
    %v2182 = vpop.f32.mrb[0].mxu0
    %v2183 = vpop.f32.mrb[0].mxu0
    %v2184 = vadd.f32 0.0, %v2183
    %v2185 = vpop.f32.mrb[0].mxu0
    %2186 = vmatprep.mubr.bf16.mxu0 0
    %2187 = vmatmul.mubr.bf16.gmra.mrb[0].mxu0 %v2110
    %v2188 = vpop.f32.mrb[0].mxu0
    %v2189 = vadd.f32 0.0, %v2188
    %v2190 = vpop.f32.mrb[0].mxu0
    %v2191 = vpop.f32.mrb[0].mxu0
    %v2192 = vadd.f32 0.0, %v2191
    %v2193 = vpop.f32.mrb[0].mxu0
    %2194 = vmatprep.mubr.bf16.mxu0 0
    %2195 = vmatmul.mubr.bf16.gmra.mrb[0].mxu0 %v2113
    %v2196 = vpop.f32.mrb[0].mxu0
    %v2197 = vadd.f32 0.0, %v2196
    %v2198 = vpop.f32.mrb[0].mxu0
    %v2199 = vpop.f32.mrb[0].mxu0
    %v2200 = vpop.f32.mrb[0].mxu0
    %2201 = vdwg.mxu0
    %vm2202 = vcmask 531456
    %v2203 = vsel %vm2202, %v2165, -inf
    %2204 = vmax.xlane.f32.xlu0 %v2203
    %v2205 = vpop.xlane.xlu0 %2204
    %v2206 = vsel %vm2202, %v2168, -inf
    %2207 = vmax.xlane.f32.xlu0 %v2206
    %v2208 = vpop.xlane.xlu0 %2207
    %v2209 = vsel %vm2202, %v2173, -inf
    %2210 = vmax.xlane.f32.xlu0 %v2209
    %v2211 = vpop.xlane.xlu0 %2210
    %v2212 = vsel %vm2202, %v2176, -inf
    %2213 = vmax.xlane.f32.xlu0 %v2212
    %v2214 = vpop.xlane.xlu0 %2213
    %v2215 = vsel %vm2202, %v2181, -inf
    %2216 = vmax.xlane.f32.xlu0 %v2215
    %v2217 = vpop.xlane.xlu0 %2216
    %v2218 = vsel %vm2202, %v2184, -inf
    %2219 = vmax.xlane.f32.xlu0 %v2218
    %v2220 = vpop.xlane.xlu0 %2219
    %v2221 = vsel %vm2202, %v2189, -inf
    %2222 = vmax.xlane.f32.xlu0 %v2221
    %v2223 = vpop.xlane.xlu0 %2222
    %v2224 = vsel %vm2202, %v2192, -inf
    %2225 = vmax.xlane.f32.xlu0 %v2224
    %v2226 = vpop.xlane.xlu0 %2225
    %vm2227 = vcmask 524288
    %v2228 = vsel %vm2227, %v2197, -inf
    %2229 = vmax.xlane.f32.xlu0 %v2228
    %v2230 = vpop.xlane.xlu0 %2229
    %v2231 = vsub.f32 %v2165, %v2205
    %v2232 = vsub.f32 %v2168, %v2208
    %v2233 = vsub.f32 %v2173, %v2211
    %v2234 = vsub.f32 %v2176, %v2214
    %v2235 = vsub.f32 %v2181, %v2217
    %v2236 = vsub.f32 %v2184, %v2220
    %v2237 = vsub.f32 %v2189, %v2223
    %v2238 = vsub.f32 %v2192, %v2226
    %v2239 = vsub.f32 %v2197, %v2230
    %v2240 = vmul.f32 %v2231, 1.442695
    %v2241 = vpow.pop %v2240
    %v2242 = vmul.f32 %v2232, 1.442695
    %v2243 = vpow.pop %v2242
    %v2244 = vmul.f32 %v2233, 1.442695
    %v2245 = vpow.pop %v2244
    %v2246 = vmul.f32 %v2234, 1.442695
    %v2247 = vpow.pop %v2246
    %v2248 = vmul.f32 %v2235, 1.442695
    %v2249 = vpow.pop %v2248
    %v2250 = vmul.f32 %v2236, 1.442695
    %v2251 = vpow.pop %v2250
    %v2252 = vmul.f32 %v2237, 1.442695
    %v2253 = vpow.pop %v2252
    %v2254 = vmul.f32 %v2238, 1.442695
    %v2255 = vpow.pop %v2254
    %v2256 = vmul.f32 %v2239, 1.442695
    %v2257 = vpow.pop %v2256
    %v2258 = vsel %vm2202, %v2241, 0.0
    %2259 = vadd.xlane.f32.xlu0 %v2258
    %v2260 = vpop.xlane.xlu0 %2259
    %v2261 = vsel %vm2202, %v2243, 0.0
    %2262 = vadd.xlane.f32.xlu0 %v2261
    %v2263 = vpop.xlane.xlu0 %2262
    %v2264 = vsel %vm2202, %v2245, 0.0
    %2265 = vadd.xlane.f32.xlu0 %v2264
    %v2266 = vpop.xlane.xlu0 %2265
    %v2267 = vsel %vm2202, %v2247, 0.0
    %2268 = vadd.xlane.f32.xlu0 %v2267
    %v2269 = vpop.xlane.xlu0 %2268
    %v2270 = vsel %vm2202, %v2249, 0.0
    %2271 = vadd.xlane.f32.xlu0 %v2270
    %v2272 = vpop.xlane.xlu0 %2271
    %v2273 = vsel %vm2202, %v2251, 0.0
    %2274 = vadd.xlane.f32.xlu0 %v2273
    %v2275 = vpop.xlane.xlu0 %2274
    %v2276 = vsel %vm2202, %v2253, 0.0
    %2277 = vadd.xlane.f32.xlu0 %v2276
    %v2278 = vpop.xlane.xlu0 %2277
    %v2279 = vsel %vm2202, %v2255, 0.0
    %2280 = vadd.xlane.f32.xlu0 %v2279
    %v2281 = vpop.xlane.xlu0 %2280
    %v2282 = vsel %vm2227, %v2257, 0.0
    %2283 = vadd.xlane.f32.xlu0 %v2282
    %v2284 = vpop.xlane.xlu0 %2283
    %v2285 = vpack.c.bf16 %v2243, %v2241
    %v2286 = vpack.c.bf16 %v2247, %v2245
    %v2287 = vpack.c.bf16 %v2251, %v2249
    %v2288 = vpack.c.bf16 %v2255, %v2253
    %v2289 = vpack.c.bf16 %v2257, %v2257
    %v2291 = vsel %vm2202, %v2285, 0
    %v2294 = vsel %vm2202, %v2286, 0
    %v2297 = vsel %vm2202, %v2287, 0
    %v2300 = vsel %vm2202, %v2288, 0
    %v2303 = vsel %vm2202, %v2289, 0
    %vm2305 = vcmask 1040384
    %v2306 = vsel 0, 4294967295, 65535
    %v2307 = vsel %vm2305, %v2306, 0
    %v2309 = vand.u32 %v2073, %v2307
    %2311 = vmatprep.subr.bf16.mxu0 0
    %2312 = vmatpush1.bf16.msra.mxu0 %v2069
    %2313 = vmatprep.subr.bf16.mxu0 0
    %2314 = vmatpush1.bf16.msra.mxu0 %v2070
    %2315 = vmatprep.subr.bf16.mxu0 0
    %2316 = vmatpush1.bf16.msra.mxu0 %v2071
    %2317 = vmatprep.subr.bf16.mxu0 0
    %2318 = vmatpush1.bf16.msra.mxu0 %v2072
    %2319 = vmatprep.subr.bf16.mxu0 0
    %2320 = vmatpush1.bf16.msra.mxu0 %v2309
    %2321 = vmatprep.subr.bf16.mxu0 0
    %2322 = vmatpush1.bf16.msra.mxu0 0
    %2323 = vmatprep.subr.bf16.mxu0 0
    %2324 = vmatpush1.bf16.msra.mxu0 0
    %2325 = vmatprep.subr.bf16.mxu0 0
    %2326 = vmatpush1.bf16.msra.mxu0 0
    %2327 = vmatprep.subr.bf16.mxu0 0
    %2328 = vmatpush1.bf16.msra.mxu0 0
    %2329 = vmatprep.subr.bf16.mxu0 0
    %2330 = vmatpush1.bf16.msra.mxu0 0
    %2331 = vmatprep.subr.bf16.mxu0 0
    %2332 = vmatpush1.bf16.msra.mxu0 0
    %2333 = vmatprep.subr.bf16.mxu0 0
    %2334 = vmatpush1.bf16.msra.mxu0 0
    %2335 = vmatprep.subr.bf16.mxu0 0
    %2336 = vmatpush1.bf16.msra.mxu0 0
    %2337 = vmatprep.subr.bf16.mxu0 0
    %2338 = vmatpush1.bf16.msra.mxu0 0
    %2339 = vmatprep.subr.bf16.mxu0 0
    %2340 = vmatpush1.bf16.msra.mxu0 0
    %2341 = vmatprep.subr.bf16.mxu0 0
    %2342 = vmatpush1.bf16.msra.mxu0 0
    %2343 = vmatprep.mubr.bf16.mxu0 0
    %2344 = vmatmul.mubr.bf16.gmra.mrb[0].mxu0 %v2291
    %v2345 = vpop.f32.mrb[0].mxu0
    %v2346 = vadd.f32 0.0, %v2345
    %v2347 = vpop.f32.mrb[0].mxu0
    %v2348 = vpop.f32.mrb[0].mxu0
    %v2349 = vadd.f32 0.0, %v2348
    %v2350 = vpop.f32.mrb[0].mxu0
    %2351 = vmatprep.mubr.bf16.mxu0 0
    %2352 = vmatmul.mubr.bf16.gmra.mrb[0].mxu0 %v2294
    %v2353 = vpop.f32.mrb[0].mxu0
    %v2354 = vadd.f32 0.0, %v2353
    %v2355 = vpop.f32.mrb[0].mxu0
    %v2356 = vpop.f32.mrb[0].mxu0
    %v2357 = vadd.f32 0.0, %v2356
    %v2358 = vpop.f32.mrb[0].mxu0
    %2359 = vmatprep.mubr.bf16.mxu0 0
    %2360 = vmatmul.mubr.bf16.gmra.mrb[0].mxu0 %v2297
    %v2361 = vpop.f32.mrb[0].mxu0
    %v2362 = vadd.f32 0.0, %v2361
    %v2363 = vpop.f32.mrb[0].mxu0
    %v2364 = vpop.f32.mrb[0].mxu0
    %v2365 = vadd.f32 0.0, %v2364
    %v2366 = vpop.f32.mrb[0].mxu0
    %2367 = vmatprep.mubr.bf16.mxu0 0
    %2368 = vmatmul.mubr.bf16.gmra.mrb[0].mxu0 %v2300
    %v2369 = vpop.f32.mrb[0].mxu0
    %v2370 = vadd.f32 0.0, %v2369
    %v2371 = vpop.f32.mrb[0].mxu0
    %v2372 = vpop.f32.mrb[0].mxu0
    %v2373 = vadd.f32 0.0, %v2372
    %v2374 = vpop.f32.mrb[0].mxu0
    %2375 = vmatprep.mubr.bf16.mxu0 0
    %2376 = vmatmul.mubr.bf16.gmra.mrb[0].mxu0 %v2303
    %v2377 = vpop.f32.mrb[0].mxu0
    %v2378 = vadd.f32 0.0, %v2377
    %v2379 = vpop.f32.mrb[0].mxu0
    %v2380 = vpop.f32.mrb[0].mxu0
    %v2381 = vpop.f32.mrb[0].mxu0
    %2382 = vdwg.mxu0
    %v2383 = vrcp.pop %v2260
    %v2384 = vrcp.pop %v2263
    %v2385 = vrcp.pop %v2266
    %v2386 = vrcp.pop %v2269
    %v2387 = vrcp.pop %v2272
    %v2388 = vrcp.pop %v2275
    %v2389 = vrcp.pop %v2278
    %v2390 = vrcp.pop %v2281
    %v2391 = vrcp.pop %v2284
    %v2392 = vmul.f32 %v2346, %v2383
    %v2393 = vmul.f32 %v2349, %v2384
    %v2394 = vmul.f32 %v2354, %v2385
    %v2395 = vmul.f32 %v2357, %v2386
    %v2396 = vmul.f32 %v2362, %v2387
    %v2397 = vmul.f32 %v2365, %v2388
    %v2398 = vmul.f32 %v2370, %v2389
    %v2399 = vmul.f32 %v2373, %v2390
    %v2400 = vmul.f32 %v2378, %v2391
    %2406 = vrot.lane.b32.xlu0 %v1857, 96
    %v2407 = vpop.permute.xlu0 %2406
    %2408 = vrot.lane.b32.xlu0 %v1858, 96
    %v2409 = vpop.permute.xlu0 %2408
    %2410 = vrot.lane.b32.xlu0 %v1859, 96
    %v2411 = vpop.permute.xlu0 %2410
    %2412 = vrot.lane.b32.xlu0 %v1860, 96
    %v2413 = vpop.permute.xlu0 %2412
    %2414 = vrot.lane.b32.xlu0 %v1861, 96
    %v2415 = vpop.permute.xlu0 %2414
    %2421 = vrot.lane.b32.xlu0 %v1963, 96
    %v2422 = vpop.permute.xlu0 %2421
    %2423 = vrot.lane.b32.xlu0 %v1964, 96
    %v2424 = vpop.permute.xlu0 %2423
    %2425 = vrot.lane.b32.xlu0 %v1965, 96
    %v2426 = vpop.permute.xlu0 %2425
    %2427 = vrot.lane.b32.xlu0 %v1966, 96
    %v2428 = vpop.permute.xlu0 %2427
    %2429 = vrot.lane.b32.xlu0 %v1967, 96
    %v2430 = vpop.permute.xlu0 %2429
    %v2432 = vsel %vm2099, %v2407, 0
    %v2435 = vsel %vm2099, %v2409, 0
    %v2438 = vsel %vm2099, %v2411, 0
    %v2441 = vsel %vm2099, %v2413, 0
    %v2444 = vsel %vm2099, %v2415, 0
    %v2447 = vsel %vm2099, %v2422, 0
    %v2450 = vsel %vm2099, %v2424, 0
    %v2453 = vsel %vm2099, %v2426, 0
    %v2456 = vsel %vm2099, %v2428, 0
    %v2459 = vsel %vm2099, %v2430, 0
    %2461 = vmatprep.subr.bf16.mxu0 0
    %2462 = vmatpush1.bf16.xpose.msra.mxu0 %v2447
    %2463 = vmatprep.subr.bf16.mxu0 0
    %2464 = vmatpush1.bf16.xpose.msra.mxu0 %v2450
    %2465 = vmatprep.subr.bf16.mxu0 0
    %2466 = vmatpush1.bf16.xpose.msra.mxu0 %v2453
    %2467 = vmatprep.subr.bf16.mxu0 0
    %2468 = vmatpush1.bf16.xpose.msra.mxu0 %v2456
    %2469 = vmatprep.subr.bf16.mxu0 0
    %2470 = vmatpush1.bf16.xpose.msra.mxu0 %v2459
    %2471 = vmatprep.subr.bf16.mxu0 0
    %2472 = vmatpush1.bf16.xpose.msra.mxu0 0
    %2473 = vmatprep.subr.bf16.mxu0 0
    %2474 = vmatpush1.bf16.xpose.msra.mxu0 0
    %2475 = vmatprep.subr.bf16.mxu0 0
    %2476 = vmatpush1.bf16.xpose.msra.mxu0 0
    %2477 = vmatprep.subr.bf16.mxu0 0
    %2478 = vmatpush1.bf16.xpose.msra.mxu0 0
    %2479 = vmatprep.subr.bf16.mxu0 0
    %2480 = vmatpush1.bf16.xpose.msra.mxu0 0
    %2481 = vmatprep.subr.bf16.mxu0 0
    %2482 = vmatpush1.bf16.xpose.msra.mxu0 0
    %2483 = vmatprep.subr.bf16.mxu0 0
    %2484 = vmatpush1.bf16.xpose.msra.mxu0 0
    %2485 = vmatprep.subr.bf16.mxu0 0
    %2486 = vmatpush1.bf16.xpose.msra.mxu0 0
    %2487 = vmatprep.subr.bf16.mxu0 0
    %2488 = vmatpush1.bf16.xpose.msra.mxu0 0
    %2489 = vmatprep.subr.bf16.mxu0 0
    %2490 = vmatpush1.bf16.xpose.msra.mxu0 0
    %2491 = vmatprep.subr.bf16.mxu0 0
    %2492 = vmatpush1.bf16.xpose.msra.mxu0 0
    %2493 = vmatprep.mubr.bf16.mxu0 0
    %2494 = vmatmul.mubr.bf16.gmra.mrb[0].mxu0 %v2432
    %v2495 = vpop.f32.mrb[0].mxu0
    %v2496 = vadd.f32 0.0, %v2495
    %v2497 = vpop.f32.mrb[0].mxu0
    %v2498 = vpop.f32.mrb[0].mxu0
    %v2499 = vadd.f32 0.0, %v2498
    %v2500 = vpop.f32.mrb[0].mxu0
    %2501 = vmatprep.mubr.bf16.mxu0 0
    %2502 = vmatmul.mubr.bf16.gmra.mrb[0].mxu0 %v2435
    %v2503 = vpop.f32.mrb[0].mxu0
    %v2504 = vadd.f32 0.0, %v2503
    %v2505 = vpop.f32.mrb[0].mxu0
    %v2506 = vpop.f32.mrb[0].mxu0
    %v2507 = vadd.f32 0.0, %v2506
    %v2508 = vpop.f32.mrb[0].mxu0
    %2509 = vmatprep.mubr.bf16.mxu0 0
    %2510 = vmatmul.mubr.bf16.gmra.mrb[0].mxu0 %v2438
    %v2511 = vpop.f32.mrb[0].mxu0
    %v2512 = vadd.f32 0.0, %v2511
    %v2513 = vpop.f32.mrb[0].mxu0
    %v2514 = vpop.f32.mrb[0].mxu0
    %v2515 = vadd.f32 0.0, %v2514
    %v2516 = vpop.f32.mrb[0].mxu0
    %2517 = vmatprep.mubr.bf16.mxu0 0
    %2518 = vmatmul.mubr.bf16.gmra.mrb[0].mxu0 %v2441
    %v2519 = vpop.f32.mrb[0].mxu0
    %v2520 = vadd.f32 0.0, %v2519
    %v2521 = vpop.f32.mrb[0].mxu0
    %v2522 = vpop.f32.mrb[0].mxu0
    %v2523 = vadd.f32 0.0, %v2522
    %v2524 = vpop.f32.mrb[0].mxu0
    %2525 = vmatprep.mubr.bf16.mxu0 0
    %2526 = vmatmul.mubr.bf16.gmra.mrb[0].mxu0 %v2444
    %v2527 = vpop.f32.mrb[0].mxu0
    %v2528 = vadd.f32 0.0, %v2527
    %v2529 = vpop.f32.mrb[0].mxu0
    %v2530 = vpop.f32.mrb[0].mxu0
    %v2531 = vpop.f32.mrb[0].mxu0
    %2532 = vdwg.mxu0
    %v2533 = vsel %vm2202, %v2496, -inf
    %2534 = vmax.xlane.f32.xlu0 %v2533
    %v2535 = vpop.xlane.xlu0 %2534
    %v2536 = vsel %vm2202, %v2499, -inf
    %2537 = vmax.xlane.f32.xlu0 %v2536
    %v2538 = vpop.xlane.xlu0 %2537
    %v2539 = vsel %vm2202, %v2504, -inf
    %2540 = vmax.xlane.f32.xlu0 %v2539
    %v2541 = vpop.xlane.xlu0 %2540
    %v2542 = vsel %vm2202, %v2507, -inf
    %2543 = vmax.xlane.f32.xlu0 %v2542
    %v2544 = vpop.xlane.xlu0 %2543
    %v2545 = vsel %vm2202, %v2512, -inf
    %2546 = vmax.xlane.f32.xlu0 %v2545
    %v2547 = vpop.xlane.xlu0 %2546
    %v2548 = vsel %vm2202, %v2515, -inf
    %2549 = vmax.xlane.f32.xlu0 %v2548
    %v2550 = vpop.xlane.xlu0 %2549
    %v2551 = vsel %vm2202, %v2520, -inf
    %2552 = vmax.xlane.f32.xlu0 %v2551
    %v2553 = vpop.xlane.xlu0 %2552
    %v2554 = vsel %vm2202, %v2523, -inf
    %2555 = vmax.xlane.f32.xlu0 %v2554
    %v2556 = vpop.xlane.xlu0 %2555
    %v2557 = vsel %vm2227, %v2528, -inf
    %2558 = vmax.xlane.f32.xlu0 %v2557
    %v2559 = vpop.xlane.xlu0 %2558
    %v2560 = vsub.f32 %v2496, %v2535
    %v2561 = vsub.f32 %v2499, %v2538
    %v2562 = vsub.f32 %v2504, %v2541
    %v2563 = vsub.f32 %v2507, %v2544
    %v2564 = vsub.f32 %v2512, %v2547
    %v2565 = vsub.f32 %v2515, %v2550
    %v2566 = vsub.f32 %v2520, %v2553
    %v2567 = vsub.f32 %v2523, %v2556
    %v2568 = vsub.f32 %v2528, %v2559
    %v2569 = vmul.f32 %v2560, 1.442695
    %v2570 = vpow.pop %v2569
    %v2571 = vmul.f32 %v2561, 1.442695
    %v2572 = vpow.pop %v2571
    %v2573 = vmul.f32 %v2562, 1.442695
    %v2574 = vpow.pop %v2573
    %v2575 = vmul.f32 %v2563, 1.442695
    %v2576 = vpow.pop %v2575
    %v2577 = vmul.f32 %v2564, 1.442695
    %v2578 = vpow.pop %v2577
    %v2579 = vmul.f32 %v2565, 1.442695
    %v2580 = vpow.pop %v2579
    %v2581 = vmul.f32 %v2566, 1.442695
    %v2582 = vpow.pop %v2581
    %v2583 = vmul.f32 %v2567, 1.442695
    %v2584 = vpow.pop %v2583
    %v2585 = vmul.f32 %v2568, 1.442695
    %v2586 = vpow.pop %v2585
    %v2587 = vsel %vm2202, %v2570, 0.0
    %2588 = vadd.xlane.f32.xlu0 %v2587
    %v2589 = vpop.xlane.xlu0 %2588
    %v2590 = vsel %vm2202, %v2572, 0.0
    %2591 = vadd.xlane.f32.xlu0 %v2590
    %v2592 = vpop.xlane.xlu0 %2591
    %v2593 = vsel %vm2202, %v2574, 0.0
    %2594 = vadd.xlane.f32.xlu0 %v2593
    %v2595 = vpop.xlane.xlu0 %2594
    %v2596 = vsel %vm2202, %v2576, 0.0
    %2597 = vadd.xlane.f32.xlu0 %v2596
    %v2598 = vpop.xlane.xlu0 %2597
    %v2599 = vsel %vm2202, %v2578, 0.0
    %2600 = vadd.xlane.f32.xlu0 %v2599
    %v2601 = vpop.xlane.xlu0 %2600
    %v2602 = vsel %vm2202, %v2580, 0.0
    %2603 = vadd.xlane.f32.xlu0 %v2602
    %v2604 = vpop.xlane.xlu0 %2603
    %v2605 = vsel %vm2202, %v2582, 0.0
    %2606 = vadd.xlane.f32.xlu0 %v2605
    %v2607 = vpop.xlane.xlu0 %2606
    %v2608 = vsel %vm2202, %v2584, 0.0
    %2609 = vadd.xlane.f32.xlu0 %v2608
    %v2610 = vpop.xlane.xlu0 %2609
    %v2611 = vsel %vm2227, %v2586, 0.0
    %2612 = vadd.xlane.f32.xlu0 %v2611
    %v2613 = vpop.xlane.xlu0 %2612
    %v2614 = vpack.c.bf16 %v2572, %v2570
    %v2615 = vpack.c.bf16 %v2576, %v2574
    %v2616 = vpack.c.bf16 %v2580, %v2578
    %v2617 = vpack.c.bf16 %v2584, %v2582
    %v2618 = vpack.c.bf16 %v2586, %v2586
    %2624 = vrot.lane.b32.xlu0 %v2069, 96
    %v2625 = vpop.permute.xlu0 %2624
    %2626 = vrot.lane.b32.xlu0 %v2070, 96
    %v2627 = vpop.permute.xlu0 %2626
    %2628 = vrot.lane.b32.xlu0 %v2071, 96
    %v2629 = vpop.permute.xlu0 %2628
    %2630 = vrot.lane.b32.xlu0 %v2072, 96
    %v2631 = vpop.permute.xlu0 %2630
    %2632 = vrot.lane.b32.xlu0 %v2073, 96
    %v2633 = vpop.permute.xlu0 %2632
    %v2639 = vsel %vm2202, %v2614, 0
    %v2642 = vsel %vm2202, %v2615, 0
    %v2645 = vsel %vm2202, %v2616, 0
    %v2648 = vsel %vm2202, %v2617, 0
    %v2651 = vsel %vm2202, %v2618, 0
    %v2654 = vand.u32 %v2633, %v2307
    %2656 = vmatprep.subr.bf16.mxu0 0
    %2657 = vmatpush1.bf16.msra.mxu0 %v2625
    %2658 = vmatprep.subr.bf16.mxu0 0
    %2659 = vmatpush1.bf16.msra.mxu0 %v2627
    %2660 = vmatprep.subr.bf16.mxu0 0
    %2661 = vmatpush1.bf16.msra.mxu0 %v2629
    %2662 = vmatprep.subr.bf16.mxu0 0
    %2663 = vmatpush1.bf16.msra.mxu0 %v2631
    %2664 = vmatprep.subr.bf16.mxu0 0
    %2665 = vmatpush1.bf16.msra.mxu0 %v2654
    %2666 = vmatprep.subr.bf16.mxu0 0
    %2667 = vmatpush1.bf16.msra.mxu0 0
    %2668 = vmatprep.subr.bf16.mxu0 0
    %2669 = vmatpush1.bf16.msra.mxu0 0
    %2670 = vmatprep.subr.bf16.mxu0 0
    %2671 = vmatpush1.bf16.msra.mxu0 0
    %2672 = vmatprep.subr.bf16.mxu0 0
    %2673 = vmatpush1.bf16.msra.mxu0 0
    %2674 = vmatprep.subr.bf16.mxu0 0
    %2675 = vmatpush1.bf16.msra.mxu0 0
    %2676 = vmatprep.subr.bf16.mxu0 0
    %2677 = vmatpush1.bf16.msra.mxu0 0
    %2678 = vmatprep.subr.bf16.mxu0 0
    %2679 = vmatpush1.bf16.msra.mxu0 0
    %2680 = vmatprep.subr.bf16.mxu0 0
    %2681 = vmatpush1.bf16.msra.mxu0 0
    %2682 = vmatprep.subr.bf16.mxu0 0
    %2683 = vmatpush1.bf16.msra.mxu0 0
    %2684 = vmatprep.subr.bf16.mxu0 0
    %2685 = vmatpush1.bf16.msra.mxu0 0
    %2686 = vmatprep.subr.bf16.mxu0 0
    %2687 = vmatpush1.bf16.msra.mxu0 0
    %2688 = vmatprep.mubr.bf16.mxu0 0
    %2689 = vmatmul.mubr.bf16.gmra.mrb[0].mxu0 %v2639
    %v2690 = vpop.f32.mrb[0].mxu0
    %v2691 = vadd.f32 0.0, %v2690
    %v2692 = vpop.f32.mrb[0].mxu0
    %v2693 = vpop.f32.mrb[0].mxu0
    %v2694 = vadd.f32 0.0, %v2693
    %v2695 = vpop.f32.mrb[0].mxu0
    %2696 = vmatprep.mubr.bf16.mxu0 0
    %2697 = vmatmul.mubr.bf16.gmra.mrb[0].mxu0 %v2642
    %v2698 = vpop.f32.mrb[0].mxu0
    %v2699 = vadd.f32 0.0, %v2698
    %v2700 = vpop.f32.mrb[0].mxu0
    %v2701 = vpop.f32.mrb[0].mxu0
    %v2702 = vadd.f32 0.0, %v2701
    %v2703 = vpop.f32.mrb[0].mxu0
    %2704 = vmatprep.mubr.bf16.mxu0 0
    %2705 = vmatmul.mubr.bf16.gmra.mrb[0].mxu0 %v2645
    %v2706 = vpop.f32.mrb[0].mxu0
    %v2707 = vadd.f32 0.0, %v2706
    %v2708 = vpop.f32.mrb[0].mxu0
    %v2709 = vpop.f32.mrb[0].mxu0
    %v2710 = vadd.f32 0.0, %v2709
    %v2711 = vpop.f32.mrb[0].mxu0
    %2712 = vmatprep.mubr.bf16.mxu0 0
    %2713 = vmatmul.mubr.bf16.gmra.mrb[0].mxu0 %v2648
    %v2714 = vpop.f32.mrb[0].mxu0
    %v2715 = vadd.f32 0.0, %v2714
    %v2716 = vpop.f32.mrb[0].mxu0
    %v2717 = vpop.f32.mrb[0].mxu0
    %v2718 = vadd.f32 0.0, %v2717
    %v2719 = vpop.f32.mrb[0].mxu0
    %2720 = vmatprep.mubr.bf16.mxu0 0
    %2721 = vmatmul.mubr.bf16.gmra.mrb[0].mxu0 %v2651
    %v2722 = vpop.f32.mrb[0].mxu0
    %v2723 = vadd.f32 0.0, %v2722
    %v2724 = vpop.f32.mrb[0].mxu0
    %v2725 = vpop.f32.mrb[0].mxu0
    %v2726 = vpop.f32.mrb[0].mxu0
    %2727 = vdwg.mxu0
    %v2728 = vrcp.pop %v2589
    %v2729 = vrcp.pop %v2592
    %v2730 = vrcp.pop %v2595
    %v2731 = vrcp.pop %v2598
    %v2732 = vrcp.pop %v2601
    %v2733 = vrcp.pop %v2604
    %v2734 = vrcp.pop %v2607
    %v2735 = vrcp.pop %v2610
    %v2736 = vrcp.pop %v2613
    %v2737 = vmul.f32 %v2691, %v2728
    %v2738 = vmul.f32 %v2694, %v2729
    %v2739 = vmul.f32 %v2699, %v2730
    %v2740 = vmul.f32 %v2702, %v2731
    %v2741 = vmul.f32 %v2707, %v2732
    %v2742 = vmul.f32 %v2710, %v2733
    %v2743 = vmul.f32 %v2715, %v2734
    %v2744 = vmul.f32 %v2718, %v2735
    %v2745 = vmul.f32 %v2723, %v2736
    %2746 = vrot.lane.b32.xlu0 %v1857, 64
    %v2747 = vpop.permute.xlu0 %2746
    %2748 = vrot.lane.b32.xlu0 %v1858, 64
    %v2749 = vpop.permute.xlu0 %2748
    %2750 = vrot.lane.b32.xlu0 %v1859, 64
    %v2751 = vpop.permute.xlu0 %2750
    %2752 = vrot.lane.b32.xlu0 %v1860, 64
    %v2753 = vpop.permute.xlu0 %2752
    %2754 = vrot.lane.b32.xlu0 %v1861, 64
    %v2755 = vpop.permute.xlu0 %2754
    %2756 = vrot.lane.b32.xlu0 %v1963, 64
    %v2757 = vpop.permute.xlu0 %2756
    %2758 = vrot.lane.b32.xlu0 %v1964, 64
    %v2759 = vpop.permute.xlu0 %2758
    %2760 = vrot.lane.b32.xlu0 %v1965, 64
    %v2761 = vpop.permute.xlu0 %2760
    %2762 = vrot.lane.b32.xlu0 %v1966, 64
    %v2763 = vpop.permute.xlu0 %2762
    %2764 = vrot.lane.b32.xlu0 %v1967, 64
    %v2765 = vpop.permute.xlu0 %2764
    %v2767 = vsel %vm2099, %v2747, 0
    %v2770 = vsel %vm2099, %v2749, 0
    %v2773 = vsel %vm2099, %v2751, 0
    %v2776 = vsel %vm2099, %v2753, 0
    %v2779 = vsel %vm2099, %v2755, 0
    %v2782 = vsel %vm2099, %v2757, 0
    %v2785 = vsel %vm2099, %v2759, 0
    %v2788 = vsel %vm2099, %v2761, 0
    %v2791 = vsel %vm2099, %v2763, 0
    %v2794 = vsel %vm2099, %v2765, 0
    %2796 = vmatprep.subr.bf16.mxu0 0
    %2797 = vmatpush1.bf16.xpose.msra.mxu0 %v2782
    %2798 = vmatprep.subr.bf16.mxu0 0
    %2799 = vmatpush1.bf16.xpose.msra.mxu0 %v2785
    %2800 = vmatprep.subr.bf16.mxu0 0
    %2801 = vmatpush1.bf16.xpose.msra.mxu0 %v2788
    %2802 = vmatprep.subr.bf16.mxu0 0
    %2803 = vmatpush1.bf16.xpose.msra.mxu0 %v2791
    %2804 = vmatprep.subr.bf16.mxu0 0
    %2805 = vmatpush1.bf16.xpose.msra.mxu0 %v2794
    %2806 = vmatprep.subr.bf16.mxu0 0
    %2807 = vmatpush1.bf16.xpose.msra.mxu0 0
    %2808 = vmatprep.subr.bf16.mxu0 0
    %2809 = vmatpush1.bf16.xpose.msra.mxu0 0
    %2810 = vmatprep.subr.bf16.mxu0 0
    %2811 = vmatpush1.bf16.xpose.msra.mxu0 0
    %2812 = vmatprep.subr.bf16.mxu0 0
    %2813 = vmatpush1.bf16.xpose.msra.mxu0 0
    %2814 = vmatprep.subr.bf16.mxu0 0
    %2815 = vmatpush1.bf16.xpose.msra.mxu0 0
    %2816 = vmatprep.subr.bf16.mxu0 0
    %2817 = vmatpush1.bf16.xpose.msra.mxu0 0
    %2818 = vmatprep.subr.bf16.mxu0 0
    %2819 = vmatpush1.bf16.xpose.msra.mxu0 0
    %2820 = vmatprep.subr.bf16.mxu0 0
    %2821 = vmatpush1.bf16.xpose.msra.mxu0 0
    %2822 = vmatprep.subr.bf16.mxu0 0
    %2823 = vmatpush1.bf16.xpose.msra.mxu0 0
    %2824 = vmatprep.subr.bf16.mxu0 0
    %2825 = vmatpush1.bf16.xpose.msra.mxu0 0
    %2826 = vmatprep.subr.bf16.mxu0 0
    %2827 = vmatpush1.bf16.xpose.msra.mxu0 0
    %2828 = vmatprep.mubr.bf16.mxu0 0
    %2829 = vmatmul.mubr.bf16.gmra.mrb[0].mxu0 %v2767
    %v2830 = vpop.f32.mrb[0].mxu0
    %v2831 = vadd.f32 0.0, %v2830
    %v2832 = vpop.f32.mrb[0].mxu0
    %v2833 = vpop.f32.mrb[0].mxu0
    %v2834 = vadd.f32 0.0, %v2833
    %v2835 = vpop.f32.mrb[0].mxu0
    %2836 = vmatprep.mubr.bf16.mxu0 0
    %2837 = vmatmul.mubr.bf16.gmra.mrb[0].mxu0 %v2770
    %v2838 = vpop.f32.mrb[0].mxu0
    %v2839 = vadd.f32 0.0, %v2838
    %v2840 = vpop.f32.mrb[0].mxu0
    %v2841 = vpop.f32.mrb[0].mxu0
    %v2842 = vadd.f32 0.0, %v2841
    %v2843 = vpop.f32.mrb[0].mxu0
    %2844 = vmatprep.mubr.bf16.mxu0 0
    %2845 = vmatmul.mubr.bf16.gmra.mrb[0].mxu0 %v2773
    %v2846 = vpop.f32.mrb[0].mxu0
    %v2847 = vadd.f32 0.0, %v2846
    %v2848 = vpop.f32.mrb[0].mxu0
    %v2849 = vpop.f32.mrb[0].mxu0
    %v2850 = vadd.f32 0.0, %v2849
    %v2851 = vpop.f32.mrb[0].mxu0
    %2852 = vmatprep.mubr.bf16.mxu0 0
    %2853 = vmatmul.mubr.bf16.gmra.mrb[0].mxu0 %v2776
    %v2854 = vpop.f32.mrb[0].mxu0
    %v2855 = vadd.f32 0.0, %v2854
    %v2856 = vpop.f32.mrb[0].mxu0
    %v2857 = vpop.f32.mrb[0].mxu0
    %v2858 = vadd.f32 0.0, %v2857
    %v2859 = vpop.f32.mrb[0].mxu0
    %2860 = vmatprep.mubr.bf16.mxu0 0
    %2861 = vmatmul.mubr.bf16.gmra.mrb[0].mxu0 %v2779
    %v2862 = vpop.f32.mrb[0].mxu0
    %v2863 = vadd.f32 0.0, %v2862
    %v2864 = vpop.f32.mrb[0].mxu0
    %v2865 = vpop.f32.mrb[0].mxu0
    %v2866 = vpop.f32.mrb[0].mxu0
    %2867 = vdwg.mxu0
    %v2868 = vsel %vm2202, %v2831, -inf
    %2869 = vmax.xlane.f32.xlu0 %v2868
    %v2870 = vpop.xlane.xlu0 %2869
    %v2871 = vsel %vm2202, %v2834, -inf
    %2872 = vmax.xlane.f32.xlu0 %v2871
    %v2873 = vpop.xlane.xlu0 %2872
    %v2874 = vsel %vm2202, %v2839, -inf
    %2875 = vmax.xlane.f32.xlu0 %v2874
    %v2876 = vpop.xlane.xlu0 %2875
    %v2877 = vsel %vm2202, %v2842, -inf
    %2878 = vmax.xlane.f32.xlu0 %v2877
    %v2879 = vpop.xlane.xlu0 %2878
    %v2880 = vsel %vm2202, %v2847, -inf
    %2881 = vmax.xlane.f32.xlu0 %v2880
    %v2882 = vpop.xlane.xlu0 %2881
    %v2883 = vsel %vm2202, %v2850, -inf
    %2884 = vmax.xlane.f32.xlu0 %v2883
    %v2885 = vpop.xlane.xlu0 %2884
    %v2886 = vsel %vm2202, %v2855, -inf
    %2887 = vmax.xlane.f32.xlu0 %v2886
    %v2888 = vpop.xlane.xlu0 %2887
    %v2889 = vsel %vm2202, %v2858, -inf
    %2890 = vmax.xlane.f32.xlu0 %v2889
    %v2891 = vpop.xlane.xlu0 %2890
    %v2892 = vsel %vm2227, %v2863, -inf
    %2893 = vmax.xlane.f32.xlu0 %v2892
    %v2894 = vpop.xlane.xlu0 %2893
    %v2895 = vsub.f32 %v2831, %v2870
    %v2896 = vsub.f32 %v2834, %v2873
    %v2897 = vsub.f32 %v2839, %v2876
    %v2898 = vsub.f32 %v2842, %v2879
    %v2899 = vsub.f32 %v2847, %v2882
    %v2900 = vsub.f32 %v2850, %v2885
    %v2901 = vsub.f32 %v2855, %v2888
    %v2902 = vsub.f32 %v2858, %v2891
    %v2903 = vsub.f32 %v2863, %v2894
    %v2904 = vmul.f32 %v2895, 1.442695
    %v2905 = vpow.pop %v2904
    %v2906 = vmul.f32 %v2896, 1.442695
    %v2907 = vpow.pop %v2906
    %v2908 = vmul.f32 %v2897, 1.442695
    %v2909 = vpow.pop %v2908
    %v2910 = vmul.f32 %v2898, 1.442695
    %v2911 = vpow.pop %v2910
    %v2912 = vmul.f32 %v2899, 1.442695
    %v2913 = vpow.pop %v2912
    %v2914 = vmul.f32 %v2900, 1.442695
    %v2915 = vpow.pop %v2914
    %v2916 = vmul.f32 %v2901, 1.442695
    %v2917 = vpow.pop %v2916
    %v2918 = vmul.f32 %v2902, 1.442695
    %v2919 = vpow.pop %v2918
    %v2920 = vmul.f32 %v2903, 1.442695
    %v2921 = vpow.pop %v2920
    %v2922 = vsel %vm2202, %v2905, 0.0
    %2923 = vadd.xlane.f32.xlu0 %v2922
    %v2924 = vpop.xlane.xlu0 %2923
    %v2925 = vsel %vm2202, %v2907, 0.0
    %2926 = vadd.xlane.f32.xlu0 %v2925
    %v2927 = vpop.xlane.xlu0 %2926
    %v2928 = vsel %vm2202, %v2909, 0.0
    %2929 = vadd.xlane.f32.xlu0 %v2928
    %v2930 = vpop.xlane.xlu0 %2929
    %v2931 = vsel %vm2202, %v2911, 0.0
    %2932 = vadd.xlane.f32.xlu0 %v2931
    %v2933 = vpop.xlane.xlu0 %2932
    %v2934 = vsel %vm2202, %v2913, 0.0
    %2935 = vadd.xlane.f32.xlu0 %v2934
    %v2936 = vpop.xlane.xlu0 %2935
    %v2937 = vsel %vm2202, %v2915, 0.0
    %2938 = vadd.xlane.f32.xlu0 %v2937
    %v2939 = vpop.xlane.xlu0 %2938
    %v2940 = vsel %vm2202, %v2917, 0.0
    %2941 = vadd.xlane.f32.xlu0 %v2940
    %v2942 = vpop.xlane.xlu0 %2941
    %v2943 = vsel %vm2202, %v2919, 0.0
    %2944 = vadd.xlane.f32.xlu0 %v2943
    %v2945 = vpop.xlane.xlu0 %2944
    %v2946 = vsel %vm2227, %v2921, 0.0
    %2947 = vadd.xlane.f32.xlu0 %v2946
    %v2948 = vpop.xlane.xlu0 %2947
    %v2949 = vpack.c.bf16 %v2907, %v2905
    %v2950 = vpack.c.bf16 %v2911, %v2909
    %v2951 = vpack.c.bf16 %v2915, %v2913
    %v2952 = vpack.c.bf16 %v2919, %v2917
    %v2953 = vpack.c.bf16 %v2921, %v2921
    %2954 = vrot.lane.b32.xlu0 %v2069, 64
    %v2955 = vpop.permute.xlu0 %2954
    %2956 = vrot.lane.b32.xlu0 %v2070, 64
    %v2957 = vpop.permute.xlu0 %2956
    %2958 = vrot.lane.b32.xlu0 %v2071, 64
    %v2959 = vpop.permute.xlu0 %2958
    %2960 = vrot.lane.b32.xlu0 %v2072, 64
    %v2961 = vpop.permute.xlu0 %2960
    %2962 = vrot.lane.b32.xlu0 %v2073, 64
    %v2963 = vpop.permute.xlu0 %2962
    %v2969 = vsel %vm2202, %v2949, 0
    %v2972 = vsel %vm2202, %v2950, 0
    %v2975 = vsel %vm2202, %v2951, 0
    %v2978 = vsel %vm2202, %v2952, 0
    %v2981 = vsel %vm2202, %v2953, 0
    %v2984 = vand.u32 %v2963, %v2307
    %2986 = vmatprep.subr.bf16.mxu0 0
    %2987 = vmatpush1.bf16.msra.mxu0 %v2955
    %2988 = vmatprep.subr.bf16.mxu0 0
    %2989 = vmatpush1.bf16.msra.mxu0 %v2957
    %2990 = vmatprep.subr.bf16.mxu0 0
    %2991 = vmatpush1.bf16.msra.mxu0 %v2959
    %2992 = vmatprep.subr.bf16.mxu0 0
    %2993 = vmatpush1.bf16.msra.mxu0 %v2961
    %2994 = vmatprep.subr.bf16.mxu0 0
    %2995 = vmatpush1.bf16.msra.mxu0 %v2984
    %2996 = vmatprep.subr.bf16.mxu0 0
    %2997 = vmatpush1.bf16.msra.mxu0 0
    %2998 = vmatprep.subr.bf16.mxu0 0
    %2999 = vmatpush1.bf16.msra.mxu0 0
    %3000 = vmatprep.subr.bf16.mxu0 0
    %3001 = vmatpush1.bf16.msra.mxu0 0
    %3002 = vmatprep.subr.bf16.mxu0 0
    %3003 = vmatpush1.bf16.msra.mxu0 0
    %3004 = vmatprep.subr.bf16.mxu0 0
    %3005 = vmatpush1.bf16.msra.mxu0 0
    %3006 = vmatprep.subr.bf16.mxu0 0
    %3007 = vmatpush1.bf16.msra.mxu0 0
    %3008 = vmatprep.subr.bf16.mxu0 0
    %3009 = vmatpush1.bf16.msra.mxu0 0
    %3010 = vmatprep.subr.bf16.mxu0 0
    %3011 = vmatpush1.bf16.msra.mxu0 0
    %3012 = vmatprep.subr.bf16.mxu0 0
    %3013 = vmatpush1.bf16.msra.mxu0 0
    %3014 = vmatprep.subr.bf16.mxu0 0
    %3015 = vmatpush1.bf16.msra.mxu0 0
    %3016 = vmatprep.subr.bf16.mxu0 0
    %3017 = vmatpush1.bf16.msra.mxu0 0
    %3018 = vmatprep.mubr.bf16.mxu0 0
    %3019 = vmatmul.mubr.bf16.gmra.mrb[0].mxu0 %v2969
    %v3020 = vpop.f32.mrb[0].mxu0
    %v3021 = vadd.f32 0.0, %v3020
    %v3022 = vpop.f32.mrb[0].mxu0
    %v3023 = vpop.f32.mrb[0].mxu0
    %v3024 = vadd.f32 0.0, %v3023
    %v3025 = vpop.f32.mrb[0].mxu0
    %3026 = vmatprep.mubr.bf16.mxu0 0
    %3027 = vmatmul.mubr.bf16.gmra.mrb[0].mxu0 %v2972
    %v3028 = vpop.f32.mrb[0].mxu0
    %v3029 = vadd.f32 0.0, %v3028
    %v3030 = vpop.f32.mrb[0].mxu0
    %v3031 = vpop.f32.mrb[0].mxu0
    %v3032 = vadd.f32 0.0, %v3031
    %v3033 = vpop.f32.mrb[0].mxu0
    %3034 = vmatprep.mubr.bf16.mxu0 0
    %3035 = vmatmul.mubr.bf16.gmra.mrb[0].mxu0 %v2975
    %v3036 = vpop.f32.mrb[0].mxu0
    %v3037 = vadd.f32 0.0, %v3036
    %v3038 = vpop.f32.mrb[0].mxu0
    %v3039 = vpop.f32.mrb[0].mxu0
    %v3040 = vadd.f32 0.0, %v3039
    %v3041 = vpop.f32.mrb[0].mxu0
    %3042 = vmatprep.mubr.bf16.mxu0 0
    %3043 = vmatmul.mubr.bf16.gmra.mrb[0].mxu0 %v2978
    %v3044 = vpop.f32.mrb[0].mxu0
    %v3045 = vadd.f32 0.0, %v3044
    %v3046 = vpop.f32.mrb[0].mxu0
    %v3047 = vpop.f32.mrb[0].mxu0
    %v3048 = vadd.f32 0.0, %v3047
    %v3049 = vpop.f32.mrb[0].mxu0
    %3050 = vmatprep.mubr.bf16.mxu0 0
    %3051 = vmatmul.mubr.bf16.gmra.mrb[0].mxu0 %v2981
    %v3052 = vpop.f32.mrb[0].mxu0
    %v3053 = vadd.f32 0.0, %v3052
    %v3054 = vpop.f32.mrb[0].mxu0
    %v3055 = vpop.f32.mrb[0].mxu0
    %v3056 = vpop.f32.mrb[0].mxu0
    %3057 = vdwg.mxu0
    %v3058 = vrcp.pop %v2924
    %v3059 = vrcp.pop %v2927
    %v3060 = vrcp.pop %v2930
    %v3061 = vrcp.pop %v2933
    %v3062 = vrcp.pop %v2936
    %v3063 = vrcp.pop %v2939
    %v3064 = vrcp.pop %v2942
    %v3065 = vrcp.pop %v2945
    %v3066 = vrcp.pop %v2948
    %v3067 = vmul.f32 %v3021, %v3058
    %v3068 = vmul.f32 %v3024, %v3059
    %v3069 = vmul.f32 %v3029, %v3060
    %v3070 = vmul.f32 %v3032, %v3061
    %v3071 = vmul.f32 %v3037, %v3062
    %v3072 = vmul.f32 %v3040, %v3063
    %v3073 = vmul.f32 %v3045, %v3064
    %v3074 = vmul.f32 %v3048, %v3065
    %v3075 = vmul.f32 %v3053, %v3066
    %3076 = vrot.lane.b32.xlu0 %v1857, 32
    %v3077 = vpop.permute.xlu0 %3076
    %3078 = vrot.lane.b32.xlu0 %v1858, 32
    %v3079 = vpop.permute.xlu0 %3078
    %3080 = vrot.lane.b32.xlu0 %v1859, 32
    %v3081 = vpop.permute.xlu0 %3080
    %3082 = vrot.lane.b32.xlu0 %v1860, 32
    %v3083 = vpop.permute.xlu0 %3082
    %3084 = vrot.lane.b32.xlu0 %v1861, 32
    %v3085 = vpop.permute.xlu0 %3084
    %3086 = vrot.lane.b32.xlu0 %v1963, 32
    %v3087 = vpop.permute.xlu0 %3086
    %3088 = vrot.lane.b32.xlu0 %v1964, 32
    %v3089 = vpop.permute.xlu0 %3088
    %3090 = vrot.lane.b32.xlu0 %v1965, 32
    %v3091 = vpop.permute.xlu0 %3090
    %3092 = vrot.lane.b32.xlu0 %v1966, 32
    %v3093 = vpop.permute.xlu0 %3092
    %3094 = vrot.lane.b32.xlu0 %v1967, 32
    %v3095 = vpop.permute.xlu0 %3094
    %v3097 = vsel %vm2099, %v3077, 0
    %v3100 = vsel %vm2099, %v3079, 0
    %v3103 = vsel %vm2099, %v3081, 0
    %v3106 = vsel %vm2099, %v3083, 0
    %v3109 = vsel %vm2099, %v3085, 0
    %v3112 = vsel %vm2099, %v3087, 0
    %v3115 = vsel %vm2099, %v3089, 0
    %v3118 = vsel %vm2099, %v3091, 0
    %v3121 = vsel %vm2099, %v3093, 0
    %v3124 = vsel %vm2099, %v3095, 0
    %3126 = vmatprep.subr.bf16.mxu0 0
    %3127 = vmatpush1.bf16.xpose.msra.mxu0 %v3112
    %3128 = vmatprep.subr.bf16.mxu0 0
    %3129 = vmatpush1.bf16.xpose.msra.mxu0 %v3115
    %3130 = vmatprep.subr.bf16.mxu0 0
    %3131 = vmatpush1.bf16.xpose.msra.mxu0 %v3118
    %3132 = vmatprep.subr.bf16.mxu0 0
    %3133 = vmatpush1.bf16.xpose.msra.mxu0 %v3121
    %3134 = vmatprep.subr.bf16.mxu0 0
    %3135 = vmatpush1.bf16.xpose.msra.mxu0 %v3124
    %3136 = vmatprep.subr.bf16.mxu0 0
    %3137 = vmatpush1.bf16.xpose.msra.mxu0 0
    %3138 = vmatprep.subr.bf16.mxu0 0
    %3139 = vmatpush1.bf16.xpose.msra.mxu0 0
    %3140 = vmatprep.subr.bf16.mxu0 0
    %3141 = vmatpush1.bf16.xpose.msra.mxu0 0
    %3142 = vmatprep.subr.bf16.mxu0 0
    %3143 = vmatpush1.bf16.xpose.msra.mxu0 0
    %3144 = vmatprep.subr.bf16.mxu0 0
    %3145 = vmatpush1.bf16.xpose.msra.mxu0 0
    %3146 = vmatprep.subr.bf16.mxu0 0
    %3147 = vmatpush1.bf16.xpose.msra.mxu0 0
    %3148 = vmatprep.subr.bf16.mxu0 0
    %3149 = vmatpush1.bf16.xpose.msra.mxu0 0
    %3150 = vmatprep.subr.bf16.mxu0 0
    %3151 = vmatpush1.bf16.xpose.msra.mxu0 0
    %3152 = vmatprep.subr.bf16.mxu0 0
    %3153 = vmatpush1.bf16.xpose.msra.mxu0 0
    %3154 = vmatprep.subr.bf16.mxu0 0
    %3155 = vmatpush1.bf16.xpose.msra.mxu0 0
    %3156 = vmatprep.subr.bf16.mxu0 0
    %3157 = vmatpush1.bf16.xpose.msra.mxu0 0
    %3158 = vmatprep.mubr.bf16.mxu0 0
    %3159 = vmatmul.mubr.bf16.gmra.mrb[0].mxu0 %v3097
    %v3160 = vpop.f32.mrb[0].mxu0
    %v3161 = vadd.f32 0.0, %v3160
    %v3162 = vpop.f32.mrb[0].mxu0
    %v3163 = vpop.f32.mrb[0].mxu0
    %v3164 = vadd.f32 0.0, %v3163
    %v3165 = vpop.f32.mrb[0].mxu0
    %3166 = vmatprep.mubr.bf16.mxu0 0
    %3167 = vmatmul.mubr.bf16.gmra.mrb[0].mxu0 %v3100
    %v3168 = vpop.f32.mrb[0].mxu0
    %v3169 = vadd.f32 0.0, %v3168
    %v3170 = vpop.f32.mrb[0].mxu0
    %v3171 = vpop.f32.mrb[0].mxu0
    %v3172 = vadd.f32 0.0, %v3171
    %v3173 = vpop.f32.mrb[0].mxu0
    %3174 = vmatprep.mubr.bf16.mxu0 0
    %3175 = vmatmul.mubr.bf16.gmra.mrb[0].mxu0 %v3103
    %v3176 = vpop.f32.mrb[0].mxu0
    %v3177 = vadd.f32 0.0, %v3176
    %v3178 = vpop.f32.mrb[0].mxu0
    %v3179 = vpop.f32.mrb[0].mxu0
    %v3180 = vadd.f32 0.0, %v3179
    %v3181 = vpop.f32.mrb[0].mxu0
    %3182 = vmatprep.mubr.bf16.mxu0 0
    %3183 = vmatmul.mubr.bf16.gmra.mrb[0].mxu0 %v3106
    %v3184 = vpop.f32.mrb[0].mxu0
    %v3185 = vadd.f32 0.0, %v3184
    %v3186 = vpop.f32.mrb[0].mxu0
    %v3187 = vpop.f32.mrb[0].mxu0
    %v3188 = vadd.f32 0.0, %v3187
    %v3189 = vpop.f32.mrb[0].mxu0
    %3190 = vmatprep.mubr.bf16.mxu0 0
    %3191 = vmatmul.mubr.bf16.gmra.mrb[0].mxu0 %v3109
    %v3192 = vpop.f32.mrb[0].mxu0
    %v3193 = vadd.f32 0.0, %v3192
    %v3194 = vpop.f32.mrb[0].mxu0
    %v3195 = vpop.f32.mrb[0].mxu0
    %v3196 = vpop.f32.mrb[0].mxu0
    %3197 = vdwg.mxu0
    %v3198 = vsel %vm2202, %v3161, -inf
    %3199 = vmax.xlane.f32.xlu0 %v3198
    %v3200 = vpop.xlane.xlu0 %3199
    %v3201 = vsel %vm2202, %v3164, -inf
    %3202 = vmax.xlane.f32.xlu0 %v3201
    %v3203 = vpop.xlane.xlu0 %3202
    %v3204 = vsel %vm2202, %v3169, -inf
    %3205 = vmax.xlane.f32.xlu0 %v3204
    %v3206 = vpop.xlane.xlu0 %3205
    %v3207 = vsel %vm2202, %v3172, -inf
    %3208 = vmax.xlane.f32.xlu0 %v3207
    %v3209 = vpop.xlane.xlu0 %3208
    %v3210 = vsel %vm2202, %v3177, -inf
    %3211 = vmax.xlane.f32.xlu0 %v3210
    %v3212 = vpop.xlane.xlu0 %3211
    %v3213 = vsel %vm2202, %v3180, -inf
    %3214 = vmax.xlane.f32.xlu0 %v3213
    %v3215 = vpop.xlane.xlu0 %3214
    %v3216 = vsel %vm2202, %v3185, -inf
    %3217 = vmax.xlane.f32.xlu0 %v3216
    %v3218 = vpop.xlane.xlu0 %3217
    %v3219 = vsel %vm2202, %v3188, -inf
    %3220 = vmax.xlane.f32.xlu0 %v3219
    %v3221 = vpop.xlane.xlu0 %3220
    %v3222 = vsel %vm2227, %v3193, -inf
    %3223 = vmax.xlane.f32.xlu0 %v3222
    %v3224 = vpop.xlane.xlu0 %3223
    %v3225 = vsub.f32 %v3161, %v3200
    %v3226 = vsub.f32 %v3164, %v3203
    %v3227 = vsub.f32 %v3169, %v3206
    %v3228 = vsub.f32 %v3172, %v3209
    %v3229 = vsub.f32 %v3177, %v3212
    %v3230 = vsub.f32 %v3180, %v3215
    %v3231 = vsub.f32 %v3185, %v3218
    %v3232 = vsub.f32 %v3188, %v3221
    %v3233 = vsub.f32 %v3193, %v3224
    %v3234 = vmul.f32 %v3225, 1.442695
    %v3235 = vpow.pop %v3234
    %v3236 = vmul.f32 %v3226, 1.442695
    %v3237 = vpow.pop %v3236
    %v3238 = vmul.f32 %v3227, 1.442695
    %v3239 = vpow.pop %v3238
    %v3240 = vmul.f32 %v3228, 1.442695
    %v3241 = vpow.pop %v3240
    %v3242 = vmul.f32 %v3229, 1.442695
    %v3243 = vpow.pop %v3242
    %v3244 = vmul.f32 %v3230, 1.442695
    %v3245 = vpow.pop %v3244
    %v3246 = vmul.f32 %v3231, 1.442695
    %v3247 = vpow.pop %v3246
    %v3248 = vmul.f32 %v3232, 1.442695
    %v3249 = vpow.pop %v3248
    %v3250 = vmul.f32 %v3233, 1.442695
    %v3251 = vpow.pop %v3250
    %v3252 = vsel %vm2202, %v3235, 0.0
    %3253 = vadd.xlane.f32.xlu0 %v3252
    %v3254 = vpop.xlane.xlu0 %3253
    %v3255 = vsel %vm2202, %v3237, 0.0
    %3256 = vadd.xlane.f32.xlu0 %v3255
    %v3257 = vpop.xlane.xlu0 %3256
    %v3258 = vsel %vm2202, %v3239, 0.0
    %3259 = vadd.xlane.f32.xlu0 %v3258
    %v3260 = vpop.xlane.xlu0 %3259
    %v3261 = vsel %vm2202, %v3241, 0.0
    %3262 = vadd.xlane.f32.xlu0 %v3261
    %v3263 = vpop.xlane.xlu0 %3262
    %v3264 = vsel %vm2202, %v3243, 0.0
    %3265 = vadd.xlane.f32.xlu0 %v3264
    %v3266 = vpop.xlane.xlu0 %3265
    %v3267 = vsel %vm2202, %v3245, 0.0
    %3268 = vadd.xlane.f32.xlu0 %v3267
    %v3269 = vpop.xlane.xlu0 %3268
    %v3270 = vsel %vm2202, %v3247, 0.0
    %3271 = vadd.xlane.f32.xlu0 %v3270
    %v3272 = vpop.xlane.xlu0 %3271
    %v3273 = vsel %vm2202, %v3249, 0.0
    %3274 = vadd.xlane.f32.xlu0 %v3273
    %v3275 = vpop.xlane.xlu0 %3274
    %v3276 = vsel %vm2227, %v3251, 0.0
    %3277 = vadd.xlane.f32.xlu0 %v3276
    %v3278 = vpop.xlane.xlu0 %3277
    %v3279 = vpack.c.bf16 %v3237, %v3235
    %v3280 = vpack.c.bf16 %v3241, %v3239
    %v3281 = vpack.c.bf16 %v3245, %v3243
    %v3282 = vpack.c.bf16 %v3249, %v3247
    %v3283 = vpack.c.bf16 %v3251, %v3251
    %3284 = vrot.lane.b32.xlu0 %v2069, 32
    %v3285 = vpop.permute.xlu0 %3284
    %3286 = vrot.lane.b32.xlu0 %v2070, 32
    %v3287 = vpop.permute.xlu0 %3286
    %3288 = vrot.lane.b32.xlu0 %v2071, 32
    %v3289 = vpop.permute.xlu0 %3288
    %3290 = vrot.lane.b32.xlu0 %v2072, 32
    %v3291 = vpop.permute.xlu0 %3290
    %3292 = vrot.lane.b32.xlu0 %v2073, 32
    %v3293 = vpop.permute.xlu0 %3292
    %v3299 = vsel %vm2202, %v3279, 0
    %v3302 = vsel %vm2202, %v3280, 0
    %v3305 = vsel %vm2202, %v3281, 0
    %v3308 = vsel %vm2202, %v3282, 0
    %v3311 = vsel %vm2202, %v3283, 0
    %v3314 = vand.u32 %v3293, %v2307
    %3316 = vmatprep.subr.bf16.mxu0 0
    %3317 = vmatpush1.bf16.msra.mxu0 %v3285
    %3318 = vmatprep.subr.bf16.mxu0 0
    %3319 = vmatpush1.bf16.msra.mxu0 %v3287
    %3320 = vmatprep.subr.bf16.mxu0 0
    %3321 = vmatpush1.bf16.msra.mxu0 %v3289
    %3322 = vmatprep.subr.bf16.mxu0 0
    %3323 = vmatpush1.bf16.msra.mxu0 %v3291
    %3324 = vmatprep.subr.bf16.mxu0 0
    %3325 = vmatpush1.bf16.msra.mxu0 %v3314
    %3326 = vmatprep.subr.bf16.mxu0 0
    %3327 = vmatpush1.bf16.msra.mxu0 0
    %3328 = vmatprep.subr.bf16.mxu0 0
    %3329 = vmatpush1.bf16.msra.mxu0 0
    %3330 = vmatprep.subr.bf16.mxu0 0
    %3331 = vmatpush1.bf16.msra.mxu0 0
    %3332 = vmatprep.subr.bf16.mxu0 0
    %3333 = vmatpush1.bf16.msra.mxu0 0
    %3334 = vmatprep.subr.bf16.mxu0 0
    %3335 = vmatpush1.bf16.msra.mxu0 0
    %3336 = vmatprep.subr.bf16.mxu0 0
    %3337 = vmatpush1.bf16.msra.mxu0 0
    %3338 = vmatprep.subr.bf16.mxu0 0
    %3339 = vmatpush1.bf16.msra.mxu0 0
    %3340 = vmatprep.subr.bf16.mxu0 0
    %3341 = vmatpush1.bf16.msra.mxu0 0
    %3342 = vmatprep.subr.bf16.mxu0 0
    %3343 = vmatpush1.bf16.msra.mxu0 0
    %3344 = vmatprep.subr.bf16.mxu0 0
    %3345 = vmatpush1.bf16.msra.mxu0 0
    %3346 = vmatprep.subr.bf16.mxu0 0
    %3347 = vmatpush1.bf16.msra.mxu0 0
    %3348 = vmatprep.mubr.bf16.mxu0 0
    %3349 = vmatmul.mubr.bf16.gmra.mrb[0].mxu0 %v3299
    %v3350 = vpop.f32.mrb[0].mxu0
    %v3351 = vadd.f32 0.0, %v3350
    %v3352 = vpop.f32.mrb[0].mxu0
    %v3353 = vpop.f32.mrb[0].mxu0
    %v3354 = vadd.f32 0.0, %v3353
    %v3355 = vpop.f32.mrb[0].mxu0
    %3356 = vmatprep.mubr.bf16.mxu0 0
    %3357 = vmatmul.mubr.bf16.gmra.mrb[0].mxu0 %v3302
    %v3358 = vpop.f32.mrb[0].mxu0
    %v3359 = vadd.f32 0.0, %v3358
    %v3360 = vpop.f32.mrb[0].mxu0
    %v3361 = vpop.f32.mrb[0].mxu0
    %v3362 = vadd.f32 0.0, %v3361
    %v3363 = vpop.f32.mrb[0].mxu0
    %3364 = vmatprep.mubr.bf16.mxu0 0
    %3365 = vmatmul.mubr.bf16.gmra.mrb[0].mxu0 %v3305
    %v3366 = vpop.f32.mrb[0].mxu0
    %v3367 = vadd.f32 0.0, %v3366
    %v3368 = vpop.f32.mrb[0].mxu0
    %v3369 = vpop.f32.mrb[0].mxu0
    %v3370 = vadd.f32 0.0, %v3369
    %v3371 = vpop.f32.mrb[0].mxu0
    %3372 = vmatprep.mubr.bf16.mxu0 0
    %3373 = vmatmul.mubr.bf16.gmra.mrb[0].mxu0 %v3308
    %v3374 = vpop.f32.mrb[0].mxu0
    %v3375 = vadd.f32 0.0, %v3374
    %v3376 = vpop.f32.mrb[0].mxu0
    %v3377 = vpop.f32.mrb[0].mxu0
    %v3378 = vadd.f32 0.0, %v3377
    %v3379 = vpop.f32.mrb[0].mxu0
    %3380 = vmatprep.mubr.bf16.mxu0 0
    %3381 = vmatmul.mubr.bf16.gmra.mrb[0].mxu0 %v3311
    %v3382 = vpop.f32.mrb[0].mxu0
    %v3383 = vadd.f32 0.0, %v3382
    %v3384 = vpop.f32.mrb[0].mxu0
    %v3385 = vpop.f32.mrb[0].mxu0
    %v3386 = vpop.f32.mrb[0].mxu0
    %3387 = vdwg.mxu0
    %v3388 = vrcp.pop %v3254
    %v3389 = vrcp.pop %v3257
    %v3390 = vrcp.pop %v3260
    %v3391 = vrcp.pop %v3263
    %v3392 = vrcp.pop %v3266
    %v3393 = vrcp.pop %v3269
    %v3394 = vrcp.pop %v3272
    %v3395 = vrcp.pop %v3275
    %v3396 = vrcp.pop %v3278
    %v3397 = vmul.f32 %v3351, %v3388
    %v3398 = vmul.f32 %v3354, %v3389
    %v3399 = vmul.f32 %v3359, %v3390
    %v3400 = vmul.f32 %v3362, %v3391
    %v3401 = vmul.f32 %v3367, %v3392
    %v3402 = vmul.f32 %v3370, %v3393
    %v3403 = vmul.f32 %v3375, %v3394
    %v3404 = vmul.f32 %v3378, %v3395
    %v3405 = vmul.f32 %v3383, %v3396
    %3415 = vrot.lane.b32.xlu0 %v2737, 32
    %v3416 = vpop.permute.xlu0 %3415
    %3417 = vrot.lane.b32.xlu0 %v2738, 32
    %v3418 = vpop.permute.xlu0 %3417
    %3419 = vrot.lane.b32.xlu0 %v2739, 32
    %v3420 = vpop.permute.xlu0 %3419
    %3421 = vrot.lane.b32.xlu0 %v2740, 32
    %v3422 = vpop.permute.xlu0 %3421
    %3423 = vrot.lane.b32.xlu0 %v2741, 32
    %v3424 = vpop.permute.xlu0 %3423
    %3425 = vrot.lane.b32.xlu0 %v2742, 32
    %v3426 = vpop.permute.xlu0 %3425
    %3427 = vrot.lane.b32.xlu0 %v2743, 32
    %v3428 = vpop.permute.xlu0 %3427
    %3429 = vrot.lane.b32.xlu0 %v2744, 32
    %v3430 = vpop.permute.xlu0 %3429
    %3431 = vrot.lane.b32.xlu0 %v2745, 32
    %v3432 = vpop.permute.xlu0 %3431
    %3451 = vrot.lane.b32.xlu0 %v3067, 64
    %v3452 = vpop.permute.xlu0 %3451
    %3453 = vrot.lane.b32.xlu0 %v3068, 64
    %v3454 = vpop.permute.xlu0 %3453
    %3455 = vrot.lane.b32.xlu0 %v3069, 64
    %v3456 = vpop.permute.xlu0 %3455
    %3457 = vrot.lane.b32.xlu0 %v3070, 64
    %v3458 = vpop.permute.xlu0 %3457
    %3459 = vrot.lane.b32.xlu0 %v3071, 64
    %v3460 = vpop.permute.xlu0 %3459
    %3461 = vrot.lane.b32.xlu0 %v3072, 64
    %v3462 = vpop.permute.xlu0 %3461
    %3463 = vrot.lane.b32.xlu0 %v3073, 64
    %v3464 = vpop.permute.xlu0 %3463
    %3465 = vrot.lane.b32.xlu0 %v3074, 64
    %v3466 = vpop.permute.xlu0 %3465
    %3467 = vrot.lane.b32.xlu0 %v3075, 64
    %v3468 = vpop.permute.xlu0 %3467
    %3487 = vrot.lane.b32.xlu0 %v3397, 96
    %v3488 = vpop.permute.xlu0 %3487
    %3489 = vrot.lane.b32.xlu0 %v3398, 96
    %v3490 = vpop.permute.xlu0 %3489
    %3491 = vrot.lane.b32.xlu0 %v3399, 96
    %v3492 = vpop.permute.xlu0 %3491
    %3493 = vrot.lane.b32.xlu0 %v3400, 96
    %v3494 = vpop.permute.xlu0 %3493
    %3495 = vrot.lane.b32.xlu0 %v3401, 96
    %v3496 = vpop.permute.xlu0 %3495
    %3497 = vrot.lane.b32.xlu0 %v3402, 96
    %v3498 = vpop.permute.xlu0 %3497
    %3499 = vrot.lane.b32.xlu0 %v3403, 96
    %v3500 = vpop.permute.xlu0 %3499
    %3501 = vrot.lane.b32.xlu0 %v3404, 96
    %v3502 = vpop.permute.xlu0 %3501
    %3503 = vrot.lane.b32.xlu0 %v3405, 96
    %v3504 = vpop.permute.xlu0 %3503
    %v3514 = vsel %vm2099, %v2392, %v3416
    %v3515 = vsel %vm2099, %v2393, %v3418
    %v3516 = vsel %vm2099, %v2394, %v3420
    %v3517 = vsel %vm2099, %v2395, %v3422
    %v3518 = vsel %vm2099, %v2396, %v3424
    %v3519 = vsel %vm2099, %v2397, %v3426
    %v3520 = vsel %vm2099, %v2398, %v3428
    %v3521 = vsel %vm2099, %v2399, %v3430
    %v3522 = vsel %vm2099, %v2400, %v3432
    %vm3523 = vcmask 523264
    %v3524 = vsel %vm3523, %v3514, %v3452
    %v3525 = vsel %vm3523, %v3515, %v3454
    %v3526 = vsel %vm3523, %v3516, %v3456
    %v3527 = vsel %vm3523, %v3517, %v3458
    %v3528 = vsel %vm3523, %v3518, %v3460
    %v3529 = vsel %vm3523, %v3519, %v3462
    %v3530 = vsel %vm3523, %v3520, %v3464
    %v3531 = vsel %vm3523, %v3521, %v3466
    %v3532 = vsel %vm3523, %v3522, %v3468
    %vm3533 = vcmask 785408
    %v3534 = vsel %vm3533, %v3524, %v3488
    %v3535 = vsel %vm3533, %v3525, %v3490
    %v3536 = vsel %vm3533, %v3526, %v3492
    %v3537 = vsel %vm3533, %v3527, %v3494
    %v3538 = vsel %vm3533, %v3528, %v3496
    %v3539 = vsel %vm3533, %v3529, %v3498
    %v3540 = vsel %vm3533, %v3530, %v3500
    %v3541 = vsel %vm3533, %v3531, %v3502
    %v3542 = vsel %vm3533, %v3532, %v3504
    %v3543 = vpack.c.bf16 %v3535, %v3534
    %v3544 = vpack.c.bf16 %v3537, %v3536
    %v3545 = vpack.c.bf16 %v3539, %v3538
    %v3546 = vpack.c.bf16 %v3541, %v3540
    %v3547 = vpack.c.bf16 %v3542, %v3542
    %v3549 = vlaneseq
    %v3550 = vshrl.u32 %v3549, 7
    %v3551 = vsub.s32 0, %v3550
    %v3552 = vrot.slane %v2098, %v3551
    %3554 = vmatprep.subr.bf16.mxu0 0
    %3555 = vmatpush1.bf16.msra.mxu0 %v2090
    %3556 = vmatprep.subr.bf16.mxu0 0
    %3557 = vmatpush1.bf16.msra.mxu0 %v2091
    %3558 = vmatprep.subr.bf16.mxu0 0
    %3559 = vmatpush1.bf16.msra.mxu0 %v2092
    %3560 = vmatprep.subr.bf16.mxu0 0
    %3561 = vmatpush1.bf16.msra.mxu0 %v2093
    %3562 = vmatprep.subr.bf16.mxu0 0
    %3563 = vmatpush1.bf16.msra.mxu0 %v2094
    %3564 = vmatprep.subr.bf16.mxu0 0
    %3565 = vmatpush1.bf16.msra.mxu0 %v2095
    %3566 = vmatprep.subr.bf16.mxu0 0
    %3567 = vmatpush1.bf16.msra.mxu0 %v2096
    %3568 = vmatprep.subr.bf16.mxu0 0
    %3569 = vmatpush1.bf16.msra.mxu0 %v2097
    %3570 = vmatprep.subr.bf16.mxu0 0
    %3571 = vmatpush1.bf16.msra.mxu0 0
    %3572 = vmatprep.subr.bf16.mxu0 0
    %3573 = vmatpush1.bf16.msra.mxu0 0
    %3574 = vmatprep.subr.bf16.mxu0 0
    %3575 = vmatpush1.bf16.msra.mxu0 0
    %3576 = vmatprep.subr.bf16.mxu0 0
    %3577 = vmatpush1.bf16.msra.mxu0 0
    %3578 = vmatprep.subr.bf16.mxu0 0
    %3579 = vmatpush1.bf16.msra.mxu0 0
    %3580 = vmatprep.subr.bf16.mxu0 0
    %3581 = vmatpush1.bf16.msra.mxu0 0
    %3582 = vmatprep.subr.bf16.mxu0 0
    %3583 = vmatpush1.bf16.msra.mxu0 0
    %3584 = vmatprep.subr.bf16.mxu0 0
    %3585 = vmatpush1.bf16.msra.mxu0 0
    %3586 = vmatprep.mubr.bf16.mxu0 0
    %3587 = vmatmul.mubr.bf16.gmra.mrb[0].mxu0 %v3543
    %v3588 = vpop.f32.mrb[0].mxu0
    %v3589 = vadd.f32 %v3552, %v3588
    %v3590 = vpop.f32.mrb[0].mxu0
    %v3591 = vpop.f32.mrb[0].mxu0
    %v3592 = vadd.f32 %v3552, %v3591
    %v3593 = vpop.f32.mrb[0].mxu0
    %3594 = vmatprep.mubr.bf16.mxu0 0
    %3595 = vmatmul.mubr.bf16.gmra.mrb[0].mxu0 %v3544
    %v3596 = vpop.f32.mrb[0].mxu0
    %v3597 = vadd.f32 %v3552, %v3596
    %v3598 = vpop.f32.mrb[0].mxu0
    %v3599 = vpop.f32.mrb[0].mxu0
    %v3600 = vadd.f32 %v3552, %v3599
    %v3601 = vpop.f32.mrb[0].mxu0
    %3602 = vmatprep.mubr.bf16.mxu0 0
    %3603 = vmatmul.mubr.bf16.gmra.mrb[0].mxu0 %v3545
    %v3604 = vpop.f32.mrb[0].mxu0
    %v3605 = vadd.f32 %v3552, %v3604
    %v3606 = vpop.f32.mrb[0].mxu0
    %v3607 = vpop.f32.mrb[0].mxu0
    %v3608 = vadd.f32 %v3552, %v3607
    %v3609 = vpop.f32.mrb[0].mxu0
    %3610 = vmatprep.mubr.bf16.mxu0 0
    %3611 = vmatmul.mubr.bf16.gmra.mrb[0].mxu0 %v3546
    %v3612 = vpop.f32.mrb[0].mxu0
    %v3613 = vadd.f32 %v3552, %v3612
    %v3614 = vpop.f32.mrb[0].mxu0
    %v3615 = vpop.f32.mrb[0].mxu0
    %v3616 = vadd.f32 %v3552, %v3615
    %v3617 = vpop.f32.mrb[0].mxu0
    %3618 = vmatprep.mubr.bf16.mxu0 0
    %3619 = vmatmul.mubr.bf16.gmra.mrb[0].mxu0 %v3547
    %v3620 = vpop.f32.mrb[0].mxu0
    %v3621 = vadd.f32 %v3552, %v3620
    %v3622 = vpop.f32.mrb[0].mxu0
    %v3623 = vpop.f32.mrb[0].mxu0
    %v3624 = vpop.f32.mrb[0].mxu0
    %3625 = vdwg.mxu0
    %3626 = vst [vmem:[%s8] sm:$0x1] %v3621
    %3627 = vst [vmem:[%s8 + $0x1] sm:$0xff] %v3589
    %3628 = vst [vmem:[%s8 + $0x9] sm:$0xff] %v3592
    %3629 = vst [vmem:[%s8 + $0x11] sm:$0xff] %v3597
    %3630 = vst [vmem:[%s8 + $0x19] sm:$0xff] %v3600
    %3631 = vst [vmem:[%s8 + $0x21] sm:$0xff] %v3605
    %3632 = vst [vmem:[%s8 + $0x29] sm:$0xff] %v3608
    %3633 = vst [vmem:[%s8 + $0x31] sm:$0xff] %v3613
    %3634 = vst [vmem:[%s8 + $0x39] sm:$0xff] %v3616
    // Predicated region
    $region42: #{tpu_custom_call.1} parent=1 // pred_check
      _
    $region43: #{tpu_custom_call.1} parent=1 // pred_check_branch
      %3636 = sbr.rel (0) target = $region45
    $region44: #{tpu_custom_call.1} parent=1 // pred_region
      _
    $region45: #{tpu_custom_call.1} parent=1 // pred_fallthru
      _
    // Predicated region
    $region46: #{tpu_custom_call.1} parent=1 // pred_check
      _
    $region47: #{tpu_custom_call.1} parent=1 // pred_check_branch
      %3638 = sbr.rel (0) target = $region49
    $region48: #{tpu_custom_call.1} parent=1 // pred_region
      _
    $region49: #{tpu_custom_call.1} parent=1 // pred_fallthru
      _
    %3639 = vsyncpa [#allocation4], 1
    %3640 = vsyncpa [#allocation6], 1

</llo_original>
